<compile_context>
chip_gen: v6e
topology: v6e:2x2x1
jax: 0.10.0
libtpu: 0.0.40
codegen_flags: <defaults>
</compile_context>

<pallas_src>
import functools

import jax
import jax.numpy as jnp
from jax import lax
from jax.experimental import pallas as pl
from jax.experimental.pallas import tpu as pltpu


_VMEM_SPEC = pl.BlockSpec(memory_space=pltpu.MemorySpace.VMEM)

_LANE = 128      # vreg lane width  -> gate / feature alignment
_SUBLANE = 8     # vreg sublane width -> batch alignment
_UNROLL_T = 32   # fully unroll the time loop up to this length


def _round_up(x, m):
    return ((x + m - 1) // m) * m


# ----------------------------------------------------------------------------
# Fused kernel: all GRU layers + projection + L2 normalization
# ----------------------------------------------------------------------------
def _make_fused_kernel(n_layers, T, B, H_pad):
    """Build the fused kernel for static (n_layers, T, B_pad, H_pad)."""

    def kernel(*refs):
        x_ref = refs[0]                               # (T, B, D_pad)
        wrefs = refs[1:1 + 4 * n_layers]              # per layer: w_ih_t, w_hh_t, b_ih, b_hh
        proj_w_ref = refs[1 + 4 * n_layers]           # (H_pad, F_pad)
        proj_b_ref = refs[2 + 4 * n_layers]           # (1, F_pad)
        out_ref = refs[3 + 4 * n_layers]              # (B, F_pad)
        gi_buf = refs[4 + 4 * n_layers]               # scratch (T, B, 3*H_pad)
        seq_buf = refs[5 + 4 * n_layers]              # scratch (T, B, H_pad)

        h_last = jnp.zeros((B, H_pad), jnp.float32)

        for l in range(n_layers):                     # static unroll over layers
            w_ih = wrefs[4 * l][...]
            w_hh = wrefs[4 * l + 1][...]
            b_ih = wrefs[4 * l + 2][...]
            b_hh = wrefs[4 * l + 3][...]
            d_in = w_ih.shape[0]
            is_last = (l == n_layers - 1)

            # Hoisted input-to-hidden matmul over the whole sequence: one
            # MXU-efficient (T*B, d_in) x (d_in, 3*H_pad) matmul instead of T
            # tiny matmuls on the serialized recurrence path.  d_in is a
            # 128-lane multiple for every layer, so load + reshape are dense.
            src = x_ref[...] if l == 0 else seq_buf[...]
            gi_all = jnp.dot(src.reshape(T * B, d_in), w_ih,
                             preferred_element_type=jnp.float32) + b_ih
            gi_buf[...] = gi_all.reshape(T, B, 3 * H_pad)

            def step(t, h_prev, w_hh=w_hh, b_hh=b_hh, is_last=is_last):
                gi = gi_buf[t]                                        # (B, 3*H_pad)
                gh = jnp.dot(h_prev, w_hh,
                             preferred_element_type=jnp.float32) + b_hh
                # Gate blocks are 128-lane aligned (H_pad % 128 == 0), so these
                # slices are whole-vreg: no lane shuffles / masked selects.
                r = jax.nn.sigmoid(gi[:, 0:H_pad] + gh[:, 0:H_pad])
                z = jax.nn.sigmoid(gi[:, H_pad:2 * H_pad] + gh[:, H_pad:2 * H_pad])
                n = jnp.tanh(gi[:, 2 * H_pad:3 * H_pad] +
                             r * gh[:, 2 * H_pad:3 * H_pad])
                # (1-z)*n + z*h  ==  n + z*(h - n): one fewer VALU op per step.
                h_new = n + z * (h_prev - n)
                if not is_last:
                    # Feeds the next layer's hoisted matmul; the final layer
                    # never writes its sequence anywhere.
                    seq_buf[t] = h_new
                return h_new

            h0 = jnp.zeros((B, H_pad), jnp.float32)
            if T <= _UNROLL_T:
                # Full static unroll: LLO scheduler visibility; h stays purely
                # in vregs (no scratch load/store on the recurrence path).
                h = h0
                for t in range(T):
                    h = step(t, h)
                h_last = h
            else:
                h_last = lax.fori_loop(0, T, step, h0)

        # Fused projection + L2-normalize epilogue on the last frame only.
        e = jnp.dot(h_last, proj_w_ref[...],
                    preferred_element_type=jnp.float32) + proj_b_ref[...]
        ss = jnp.sum(e * e, axis=1, keepdims=True)
        # e / max(||e||, 1e-12) == e * rsqrt(max(||e||^2, 1e-24)); rsqrt -> EUP.
        out_ref[...] = e * lax.rsqrt(jnp.maximum(ss, 1e-24))

    return kernel


def _fused_forward(x_tbd, layers, proj_w_t, proj_b):
    T, B, _ = x_tbd.shape
    n_layers = len(layers)
    H_pad = layers[0]["w_hh_t"].shape[0]
    F_pad = proj_w_t.shape[1]

    args = [x_tbd]
    for layer in layers:
        args += [layer["w_ih_t"], layer["w_hh_t"], layer["b_ih"], layer["b_hh"]]
    args += [proj_w_t, proj_b]

    # Explicit VMEM budget derived from the actual shapes (all f32), with 2x
    # headroom, capped at v7x's 64 MiB physical VMEM.
    arg_bytes = sum(int(a.size) * 4 for a in args)
    scratch_bytes = 4 * (T * B * 3 * H_pad + T * B * H_pad)
    out_bytes = 4 * B * F_pad
    vmem_limit = int(min(64 * 1024 * 1024,
                         max(16 * 1024 * 1024,
                             2 * (arg_bytes + scratch_bytes + out_bytes))))
    # TODO(synk): for long sequences (full-sequence residency approaching
    # physical VMEM, especially v7x's 64 MiB) tile T with a grid + persistent
    # hidden-state scratch instead of whole-sequence residency; on v7x the
    # batch could additionally be split across the two TensorCores.

    return pl.pallas_call(
        _make_fused_kernel(n_layers, T, B, H_pad),
        out_shape=jax.ShapeDtypeStruct((B, F_pad), jnp.float32),
        in_specs=[_VMEM_SPEC] * len(args),
        out_specs=_VMEM_SPEC,
        scratch_shapes=[pltpu.VMEM((T, B, 3 * H_pad), jnp.float32),   # gi_buf
                        pltpu.VMEM((T, B, H_pad), jnp.float32)],      # seq_buf
        compiler_params=pltpu.CompilerParams(vmem_limit_bytes=vmem_limit),
    )(*args)


# ----------------------------------------------------------------------------
# Wrapper (batch-first in, unit-norm embeddings out)
# ----------------------------------------------------------------------------
@functools.partial(jax.jit, static_argnames=("fc_dim",))
def speaker_embedder_forward(x_btd, packed, *, fc_dim):
    """
    x_btd : (B, T, n_mels)  batch-first input (PyTorch convention)
    packed: prepare_params(...) output (lane/sublane-aligned weights)
    returns (B, fc_dim) unit-norm embeddings
    """
    B, T, D = x_btd.shape
    B_pad = _round_up(max(B, 1), _SUBLANE)
    D_pad = packed["layers"][0]["w_ih_t"].shape[0]            # lane-padded n_mels
    x = jnp.transpose(x_btd.astype(jnp.float32), (1, 0, 2))   # (T, B, n_mels)
    # Sublane-pad batch and lane-pad features so every kernel access is dense.
    x = jnp.pad(x, ((0, 0), (0, B_pad - B), (0, D_pad - D)))
    out = _fused_forward(x, packed["layers"], packed["proj_w_t"], packed["proj_b"])
    return out[:B, :fc_dim]


# ----------------------------------------------------------------------------
# Parameters: PyTorch-style raw init + padded/packed kernel layout
# ----------------------------------------------------------------------------
def init_params(key, n_hid, n_mels, n_layers, fc_dim):
    """Raw PyTorch-layout parameters (uniform(-k, k), gate order [r, z, n])."""
    k_gru = 1.0 / float(n_hid) ** 0.5
    k_fc = 1.0 / float(n_hid) ** 0.5

    def uni(key, shape, k):
        return jax.random.uniform(key, shape, jnp.float32, -k, k)

    layers = []
    for l in range(n_layers):
        d_in = n_mels if l == 0 else n_hid
        key, k1, k2, k3, k4 = jax.random.split(key, 5)
        layers.append(dict(
            w_ih=uni(k1, (3 * n_hid, d_in), k_gru),
            w_hh=uni(k2, (3 * n_hid, n_hid), k_gru),
            b_ih=uni(k3, (3 * n_hid,), k_gru),
            b_hh=uni(k4, (3 * n_hid,), k_gru)))
    key, k5, k6 = jax.random.split(key, 3)
    return dict(layers=layers,
                proj_w=uni(k5, (fc_dim, n_hid), k_fc),
                proj_b=uni(k6, (fc_dim,), k_fc))


def prepare_params(raw):
    """Pad/transpose raw params into the lane/sublane-aligned kernel layout.

    Hidden/gate/fc blocks (and the layer-0 input feature dim) are padded to
    multiples of 128 lanes with zeros; zero-padded weights + zero initial
    state + zero-padded inputs keep padded hidden columns identically zero
    through the recurrence, so results match exactly.
    """
    H = raw["layers"][0]["w_hh"].shape[1]
    H_pad = _round_up(H, _LANE)
    F = raw["proj_w"].shape[0]
    F_pad = _round_up(F, _LANE)

    def pack_w(w, d_in_pad):
        # w: (3H, D_in) PyTorch layout -> (D_in_pad, 3*H_pad), gates lane-aligned.
        out = jnp.zeros((d_in_pad, 3 * H_pad), jnp.float32)
        d_in = w.shape[1]
        for g in range(3):
            out = out.at[:d_in, g * H_pad:g * H_pad + H].set(
                w[g * H:(g + 1) * H, :].T)
        return out

    def pack_b(b):
        out = jnp.zeros((1, 3 * H_pad), jnp.float32)
        for g in range(3):
            out = out.at[0, g * H_pad:g * H_pad + H].set(b[g * H:(g + 1) * H])
        return out

    layers = []
    for l, layer in enumerate(raw["layers"]):
        # Lane-pad the layer-0 input feature dim too (dense hoisted matmul).
        d_in_pad = _round_up(layer["w_ih"].shape[1], _LANE) if l == 0 else H_pad
        layers.append(dict(
            w_ih_t=pack_w(layer["w_ih"], d_in_pad),
            w_hh_t=pack_w(layer["w_hh"], H_pad),
            b_ih=pack_b(layer["b_ih"]),
            b_hh=pack_b(layer["b_hh"])))

    proj_w_t = jnp.zeros((H_pad, F_pad), jnp.float32).at[:H, :F].set(raw["proj_w"].T)
    proj_b = jnp.zeros((1, F_pad), jnp.float32).at[0, :F].set(raw["proj_b"])
    return dict(layers=layers, proj_w_t=proj_w_t, proj_b=proj_b)


# ----------------------------------------------------------------------------
# Pure-JAX reference (raw, unpadded params) for a sanity check
# ----------------------------------------------------------------------------
def reference_forward(x_btd, raw):
    h = jnp.transpose(x_btd, (1, 0, 2)).astype(jnp.float32)    # (T, B, D)
    for layer in raw["layers"]:
        w_ih, w_hh = layer["w_ih"], layer["w_hh"]
        b_ih, b_hh = layer["b_ih"], layer["b_hh"]
        H = w_hh.shape[1]
        B = h.shape[1]

        def step(h_prev, x_t):
            gi = x_t @ w_ih.T + b_ih
            gh = h_prev @ w_hh.T + b_hh
            r = jax.nn.sigmoid(gi[:, :H] + gh[:, :H])
            z = jax.nn.sigmoid(gi[:, H:2 * H] + gh[:, H:2 * H])
            n = jnp.tanh(gi[:, 2 * H:] + r * gh[:, 2 * H:])
            h_new = (1.0 - z) * n + z * h_prev
            return h_new, h_new

        _, outs = lax.scan(step, jnp.zeros((B, H), jnp.float32), h)
        h = outs
    e = h[-1] @ raw["proj_w"].T + raw["proj_b"]
    nrm = jnp.linalg.norm(e, axis=1, keepdims=True)
    return e / jnp.maximum(nrm, 1e-12)


if __name__ == "__main__":
    # Small, module-consistent shapes
    B, T = 2, 8
    n_mels, n_hid, n_layers, fc_dim, hidden_p = 32, 32, 2, 16, 0.1  # hidden_p inactive at eval

    key = jax.random.PRNGKey(0)
    key, kx, kp = jax.random.split(key, 3)
    x = jax.random.normal(kx, (B, T, n_mels), jnp.float32)

    raw_params = init_params(kp, n_hid, n_mels, n_layers, fc_dim)
    packed_params = prepare_params(raw_params)

    out = speaker_embedder_forward(x, packed_params, fc_dim=fc_dim)
    out = jax.block_until_ready(out)

    ref = reference_forward(x, raw_params)
    assert out.shape == (B, fc_dim)
    assert jnp.allclose(out, ref, atol=1e-5, rtol=1e-5), "mismatch vs JAX reference"
    # embeddings are unit-norm
    assert jnp.allclose(jnp.linalg.norm(out, axis=1), 1.0, atol=1e-5)

    print("KERNEL_OK")
</pallas_src>

<mosaic_0001>
module attributes {stable_mosaic.version = 11 : i64} {
  func.func @kernel(%arg0: memref<8x8x128xf32, #tpu.memory_space<vmem>>, %arg1: memref<128x384xf32, #tpu.memory_space<vmem>>, %arg2: memref<128x384xf32, #tpu.memory_space<vmem>>, %arg3: memref<1x384xf32, #tpu.memory_space<vmem>>, %arg4: memref<1x384xf32, #tpu.memory_space<vmem>>, %arg5: memref<128x384xf32, #tpu.memory_space<vmem>>, %arg6: memref<128x384xf32, #tpu.memory_space<vmem>>, %arg7: memref<1x384xf32, #tpu.memory_space<vmem>>, %arg8: memref<1x384xf32, #tpu.memory_space<vmem>>, %arg9: memref<128x128xf32, #tpu.memory_space<vmem>>, %arg10: memref<1x128xf32, #tpu.memory_space<vmem>>, %arg11: memref<8x128xf32, #tpu.memory_space<vmem>>, %arg12: memref<8x8x384xf32, #tpu.memory_space<vmem>>, %arg13: memref<8x8x128xf32, #tpu.memory_space<vmem>>) attributes {dimension_semantics = [], scalar_prefetch = 0 : i64, scratch_operands = 2 : i64, tpu.core_type = #tpu.core_type<tc>} {
    %c0 = arith.constant 0 : index
    %c0_0 = arith.constant 0 : index
    %0 = vector.load %arg1[%c0, %c0_0] : memref<128x384xf32, #tpu.memory_space<vmem>>, vector<128x384xf32>
    %c0_1 = arith.constant 0 : index
    %c0_2 = arith.constant 0 : index
    %1 = vector.load %arg2[%c0_1, %c0_2] : memref<128x384xf32, #tpu.memory_space<vmem>>, vector<128x384xf32>
    %c0_3 = arith.constant 0 : index
    %c0_4 = arith.constant 0 : index
    %2 = vector.load %arg3[%c0_3, %c0_4] : memref<1x384xf32, #tpu.memory_space<vmem>>, vector<1x384xf32>
    %c0_5 = arith.constant 0 : index
    %c0_6 = arith.constant 0 : index
    %3 = vector.load %arg4[%c0_5, %c0_6] : memref<1x384xf32, #tpu.memory_space<vmem>>, vector<1x384xf32>
    %c0_7 = arith.constant 0 : index
    %c0_8 = arith.constant 0 : index
    %c0_9 = arith.constant 0 : index
    %4 = vector.load %arg0[%c0_7, %c0_8, %c0_9] : memref<8x8x128xf32, #tpu.memory_space<vmem>>, vector<8x8x128xf32>
    %5 = vector.shape_cast %4 : vector<8x8x128xf32> to vector<64x128xf32>
    %cst = arith.constant dense<0.000000e+00> : vector<64x384xf32>
    %6 = tpu.matmul %5, %0, %cst {dimension_numbers = #tpu.dot_dimension_numbers<[1], [0], [0], [1], [0, 0, 1, 1], [], []>} : vector<64x128xf32>, vector<128x384xf32>, vector<64x384xf32> -> vector<64x384xf32>
    %7 = vector.broadcast %2 : vector<1x384xf32> to vector<64x384xf32>
    %8 = arith.addf %6, %7 : vector<64x384xf32>
    %9 = vector.shape_cast %8 : vector<64x384xf32> to vector<8x8x384xf32>
    %c0_10 = arith.constant 0 : index
    %c0_11 = arith.constant 0 : index
    %c0_12 = arith.constant 0 : index
    %10 = vector.load %arg12[%c0_10, %c0_11, %c0_12] : memref<8x8x384xf32, #tpu.memory_space<vmem>>, vector<8x8x384xf32>
    tpu.vector_store %arg12[%c0_10, %c0_11, %c0_12], %9 {strides = array<i32>} : memref<8x8x384xf32, #tpu.memory_space<vmem>>, vector<8x8x384xf32>,
    %cst_13 = arith.constant 0.000000e+00 : f32
    %11 = vector.broadcast %cst_13 : f32 to vector<8x128xf32>
    %c0_14 = arith.constant 0 : index
    %c0_15 = arith.constant 0 : index
    %c0_16 = arith.constant 0 : index
    %12 = vector.load %arg12[%c0_14, %c0_15, %c0_16] : memref<8x8x384xf32, #tpu.memory_space<vmem>>, vector<1x8x384xf32>
    %13 = vector.shape_cast %12 : vector<1x8x384xf32> to vector<8x384xf32>
    %cst_17 = arith.constant dense<0.000000e+00> : vector<8x384xf32>
    %14 = tpu.matmul %11, %1, %cst_17 {dimension_numbers = #tpu.dot_dimension_numbers<[1], [0], [0], [1], [0, 0, 1, 1], [], []>} : vector<8x128xf32>, vector<128x384xf32>, vector<8x384xf32> -> vector<8x384xf32>
    %15 = vector.broadcast %3 : vector<1x384xf32> to vector<8x384xf32>
    %16 = arith.addf %14, %15 : vector<8x384xf32>
    %17 = vector.extract_strided_slice %13 {offsets = [0, 0], sizes = [8, 128], strides = [1, 1]} : vector<8x384xf32> to vector<8x128xf32>
    %18 = vector.extract_strided_slice %16 {offsets = [0, 0], sizes = [8, 128], strides = [1, 1]} : vector<8x384xf32> to vector<8x128xf32>
    %19 = arith.addf %17, %18 : vector<8x128xf32>
    %20 = arith.negf %19 : vector<8x128xf32>
    %21 = math.exp %20 : vector<8x128xf32>
    %cst_18 = arith.constant 1.000000e+00 : f32
    %22 = vector.broadcast %cst_18 : f32 to vector<8x128xf32>
    %23 = arith.addf %22, %21 : vector<8x128xf32>
    %24 = arith.divf %22, %23 : vector<8x128xf32>
    %25 = vector.extract_strided_slice %13 {offsets = [0, 128], sizes = [8, 128], strides = [1, 1]} : vector<8x384xf32> to vector<8x128xf32>
    %26 = vector.extract_strided_slice %16 {offsets = [0, 128], sizes = [8, 128], strides = [1, 1]} : vector<8x384xf32> to vector<8x128xf32>
    %27 = arith.addf %25, %26 : vector<8x128xf32>
    %28 = arith.negf %27 : vector<8x128xf32>
    %29 = math.exp %28 : vector<8x128xf32>
    %cst_19 = arith.constant 1.000000e+00 : f32
    %30 = vector.broadcast %cst_19 : f32 to vector<8x128xf32>
    %31 = arith.addf %30, %29 : vector<8x128xf32>
    %32 = arith.divf %30, %31 : vector<8x128xf32>
    %33 = vector.extract_strided_slice %13 {offsets = [0, 256], sizes = [8, 128], strides = [1, 1]} : vector<8x384xf32> to vector<8x128xf32>
    %34 = vector.extract_strided_slice %16 {offsets = [0, 256], sizes = [8, 128], strides = [1, 1]} : vector<8x384xf32> to vector<8x128xf32>
    %35 = arith.mulf %24, %34 : vector<8x128xf32>
    %36 = arith.addf %33, %35 : vector<8x128xf32>
    %37 = math.tanh %36 : vector<8x128xf32>
    %38 = arith.subf %11, %37 : vector<8x128xf32>
    %39 = arith.mulf %32, %38 : vector<8x128xf32>
    %40 = arith.addf %37, %39 : vector<8x128xf32>
    %c0_20 = arith.constant 0 : index
    %c0_21 = arith.constant 0 : index
    %c0_22 = arith.constant 0 : index
    %41 = vector.load %arg13[%c0_20, %c0_21, %c0_22] : memref<8x8x128xf32, #tpu.memory_space<vmem>>, vector<1x8x128xf32>
    %42 = vector.shape_cast %41 : vector<1x8x128xf32> to vector<8x128xf32>
    %43 = vector.shape_cast %40 : vector<8x128xf32> to vector<1x8x128xf32>
    tpu.vector_store %arg13[%c0_20, %c0_21, %c0_22], %43 {strides = array<i32>} : memref<8x8x128xf32, #tpu.memory_space<vmem>>, vector<1x8x128xf32>,
    %c1 = arith.constant 1 : index
    %c0_23 = arith.constant 0 : index
    %c0_24 = arith.constant 0 : index
    %44 = vector.load %arg12[%c1, %c0_23, %c0_24] : memref<8x8x384xf32, #tpu.memory_space<vmem>>, vector<1x8x384xf32>
    %45 = vector.shape_cast %44 : vector<1x8x384xf32> to vector<8x384xf32>
    %cst_25 = arith.constant dense<0.000000e+00> : vector<8x384xf32>
    %46 = tpu.matmul %40, %1, %cst_25 {dimension_numbers = #tpu.dot_dimension_numbers<[1], [0], [0], [1], [0, 0, 1, 1], [], []>} : vector<8x128xf32>, vector<128x384xf32>, vector<8x384xf32> -> vector<8x384xf32>
    %47 = vector.broadcast %3 : vector<1x384xf32> to vector<8x384xf32>
    %48 = arith.addf %46, %47 : vector<8x384xf32>
    %49 = vector.extract_strided_slice %45 {offsets = [0, 0], sizes = [8, 128], strides = [1, 1]} : vector<8x384xf32> to vector<8x128xf32>
    %50 = vector.extract_strided_slice %48 {offsets = [0, 0], sizes = [8, 128], strides = [1, 1]} : vector<8x384xf32> to vector<8x128xf32>
    %51 = arith.addf %49, %50 : vector<8x128xf32>
    %52 = arith.negf %51 : vector<8x128xf32>
    %53 = math.exp %52 : vector<8x128xf32>
    %cst_26 = arith.constant 1.000000e+00 : f32
    %54 = vector.broadcast %cst_26 : f32 to vector<8x128xf32>
    %55 = arith.addf %54, %53 : vector<8x128xf32>
    %56 = arith.divf %54, %55 : vector<8x128xf32>
    %57 = vector.extract_strided_slice %45 {offsets = [0, 128], sizes = [8, 128], strides = [1, 1]} : vector<8x384xf32> to vector<8x128xf32>
    %58 = vector.extract_strided_slice %48 {offsets = [0, 128], sizes = [8, 128], strides = [1, 1]} : vector<8x384xf32> to vector<8x128xf32>
    %59 = arith.addf %57, %58 : vector<8x128xf32>
    %60 = arith.negf %59 : vector<8x128xf32>
    %61 = math.exp %60 : vector<8x128xf32>
    %cst_27 = arith.constant 1.000000e+00 : f32
    %62 = vector.broadcast %cst_27 : f32 to vector<8x128xf32>
    %63 = arith.addf %62, %61 : vector<8x128xf32>
    %64 = arith.divf %62, %63 : vector<8x128xf32>
    %65 = vector.extract_strided_slice %45 {offsets = [0, 256], sizes = [8, 128], strides = [1, 1]} : vector<8x384xf32> to vector<8x128xf32>
    %66 = vector.extract_strided_slice %48 {offsets = [0, 256], sizes = [8, 128], strides = [1, 1]} : vector<8x384xf32> to vector<8x128xf32>
    %67 = arith.mulf %56, %66 : vector<8x128xf32>
    %68 = arith.addf %65, %67 : vector<8x128xf32>
    %69 = math.tanh %68 : vector<8x128xf32>
    %70 = arith.subf %40, %69 : vector<8x128xf32>
    %71 = arith.mulf %64, %70 : vector<8x128xf32>
    %72 = arith.addf %69, %71 : vector<8x128xf32>
    %c1_28 = arith.constant 1 : index
    %c0_29 = arith.constant 0 : index
    %c0_30 = arith.constant 0 : index
    %73 = vector.load %arg13[%c1_28, %c0_29, %c0_30] : memref<8x8x128xf32, #tpu.memory_space<vmem>>, vector<1x8x128xf32>
    %74 = vector.shape_cast %73 : vector<1x8x128xf32> to vector<8x128xf32>
    %75 = vector.shape_cast %72 : vector<8x128xf32> to vector<1x8x128xf32>
    tpu.vector_store %arg13[%c1_28, %c0_29, %c0_30], %75 {strides = array<i32>} : memref<8x8x128xf32, #tpu.memory_space<vmem>>, vector<1x8x128xf32>,
    %c2 = arith.constant 2 : index
    %c0_31 = arith.constant 0 : index
    %c0_32 = arith.constant 0 : index
    %76 = vector.load %arg12[%c2, %c0_31, %c0_32] : memref<8x8x384xf32, #tpu.memory_space<vmem>>, vector<1x8x384xf32>
    %77 = vector.shape_cast %76 : vector<1x8x384xf32> to vector<8x384xf32>
    %cst_33 = arith.constant dense<0.000000e+00> : vector<8x384xf32>
    %78 = tpu.matmul %72, %1, %cst_33 {dimension_numbers = #tpu.dot_dimension_numbers<[1], [0], [0], [1], [0, 0, 1, 1], [], []>} : vector<8x128xf32>, vector<128x384xf32>, vector<8x384xf32> -> vector<8x384xf32>
    %79 = vector.broadcast %3 : vector<1x384xf32> to vector<8x384xf32>
    %80 = arith.addf %78, %79 : vector<8x384xf32>
    %81 = vector.extract_strided_slice %77 {offsets = [0, 0], sizes = [8, 128], strides = [1, 1]} : vector<8x384xf32> to vector<8x128xf32>
    %82 = vector.extract_strided_slice %80 {offsets = [0, 0], sizes = [8, 128], strides = [1, 1]} : vector<8x384xf32> to vector<8x128xf32>
    %83 = arith.addf %81, %82 : vector<8x128xf32>
    %84 = arith.negf %83 : vector<8x128xf32>
    %85 = math.exp %84 : vector<8x128xf32>
    %cst_34 = arith.constant 1.000000e+00 : f32
    %86 = vector.broadcast %cst_34 : f32 to vector<8x128xf32>
    %87 = arith.addf %86, %85 : vector<8x128xf32>
    %88 = arith.divf %86, %87 : vector<8x128xf32>
    %89 = vector.extract_strided_slice %77 {offsets = [0, 128], sizes = [8, 128], strides = [1, 1]} : vector<8x384xf32> to vector<8x128xf32>
    %90 = vector.extract_strided_slice %80 {offsets = [0, 128], sizes = [8, 128], strides = [1, 1]} : vector<8x384xf32> to vector<8x128xf32>
    %91 = arith.addf %89, %90 : vector<8x128xf32>
    %92 = arith.negf %91 : vector<8x128xf32>
    %93 = math.exp %92 : vector<8x128xf32>
    %cst_35 = arith.constant 1.000000e+00 : f32
    %94 = vector.broadcast %cst_35 : f32 to vector<8x128xf32>
    %95 = arith.addf %94, %93 : vector<8x128xf32>
    %96 = arith.divf %94, %95 : vector<8x128xf32>
    %97 = vector.extract_strided_slice %77 {offsets = [0, 256], sizes = [8, 128], strides = [1, 1]} : vector<8x384xf32> to vector<8x128xf32>
    %98 = vector.extract_strided_slice %80 {offsets = [0, 256], sizes = [8, 128], strides = [1, 1]} : vector<8x384xf32> to vector<8x128xf32>
    %99 = arith.mulf %88, %98 : vector<8x128xf32>
    %100 = arith.addf %97, %99 : vector<8x128xf32>
    %101 = math.tanh %100 : vector<8x128xf32>
    %102 = arith.subf %72, %101 : vector<8x128xf32>
    %103 = arith.mulf %96, %102 : vector<8x128xf32>
    %104 = arith.addf %101, %103 : vector<8x128xf32>
    %c2_36 = arith.constant 2 : index
    %c0_37 = arith.constant 0 : index
    %c0_38 = arith.constant 0 : index
    %105 = vector.load %arg13[%c2_36, %c0_37, %c0_38] : memref<8x8x128xf32, #tpu.memory_space<vmem>>, vector<1x8x128xf32>
    %106 = vector.shape_cast %105 : vector<1x8x128xf32> to vector<8x128xf32>
    %107 = vector.shape_cast %104 : vector<8x128xf32> to vector<1x8x128xf32>
    tpu.vector_store %arg13[%c2_36, %c0_37, %c0_38], %107 {strides = array<i32>} : memref<8x8x128xf32, #tpu.memory_space<vmem>>, vector<1x8x128xf32>,
    %c3 = arith.constant 3 : index
    %c0_39 = arith.constant 0 : index
    %c0_40 = arith.constant 0 : index
    %108 = vector.load %arg12[%c3, %c0_39, %c0_40] : memref<8x8x384xf32, #tpu.memory_space<vmem>>, vector<1x8x384xf32>
    %109 = vector.shape_cast %108 : vector<1x8x384xf32> to vector<8x384xf32>
    %cst_41 = arith.constant dense<0.000000e+00> : vector<8x384xf32>
    %110 = tpu.matmul %104, %1, %cst_41 {dimension_numbers = #tpu.dot_dimension_numbers<[1], [0], [0], [1], [0, 0, 1, 1], [], []>} : vector<8x128xf32>, vector<128x384xf32>, vector<8x384xf32> -> vector<8x384xf32>
    %111 = vector.broadcast %3 : vector<1x384xf32> to vector<8x384xf32>
    %112 = arith.addf %110, %111 : vector<8x384xf32>
    %113 = vector.extract_strided_slice %109 {offsets = [0, 0], sizes = [8, 128], strides = [1, 1]} : vector<8x384xf32> to vector<8x128xf32>
    %114 = vector.extract_strided_slice %112 {offsets = [0, 0], sizes = [8, 128], strides = [1, 1]} : vector<8x384xf32> to vector<8x128xf32>
    %115 = arith.addf %113, %114 : vector<8x128xf32>
    %116 = arith.negf %115 : vector<8x128xf32>
    %117 = math.exp %116 : vector<8x128xf32>
    %cst_42 = arith.constant 1.000000e+00 : f32
    %118 = vector.broadcast %cst_42 : f32 to vector<8x128xf32>
    %119 = arith.addf %118, %117 : vector<8x128xf32>
    %120 = arith.divf %118, %119 : vector<8x128xf32>
    %121 = vector.extract_strided_slice %109 {offsets = [0, 128], sizes = [8, 128], strides = [1, 1]} : vector<8x384xf32> to vector<8x128xf32>
    %122 = vector.extract_strided_slice %112 {offsets = [0, 128], sizes = [8, 128], strides = [1, 1]} : vector<8x384xf32> to vector<8x128xf32>
    %123 = arith.addf %121, %122 : vector<8x128xf32>
    %124 = arith.negf %123 : vector<8x128xf32>
    %125 = math.exp %124 : vector<8x128xf32>
    %cst_43 = arith.constant 1.000000e+00 : f32
    %126 = vector.broadcast %cst_43 : f32 to vector<8x128xf32>
    %127 = arith.addf %126, %125 : vector<8x128xf32>
    %128 = arith.divf %126, %127 : vector<8x128xf32>
    %129 = vector.extract_strided_slice %109 {offsets = [0, 256], sizes = [8, 128], strides = [1, 1]} : vector<8x384xf32> to vector<8x128xf32>
    %130 = vector.extract_strided_slice %112 {offsets = [0, 256], sizes = [8, 128], strides = [1, 1]} : vector<8x384xf32> to vector<8x128xf32>
    %131 = arith.mulf %120, %130 : vector<8x128xf32>
    %132 = arith.addf %129, %131 : vector<8x128xf32>
    %133 = math.tanh %132 : vector<8x128xf32>
    %134 = arith.subf %104, %133 : vector<8x128xf32>
    %135 = arith.mulf %128, %134 : vector<8x128xf32>
    %136 = arith.addf %133, %135 : vector<8x128xf32>
    %c3_44 = arith.constant 3 : index
    %c0_45 = arith.constant 0 : index
    %c0_46 = arith.constant 0 : index
    %137 = vector.load %arg13[%c3_44, %c0_45, %c0_46] : memref<8x8x128xf32, #tpu.memory_space<vmem>>, vector<1x8x128xf32>
    %138 = vector.shape_cast %137 : vector<1x8x128xf32> to vector<8x128xf32>
    %139 = vector.shape_cast %136 : vector<8x128xf32> to vector<1x8x128xf32>
    tpu.vector_store %arg13[%c3_44, %c0_45, %c0_46], %139 {strides = array<i32>} : memref<8x8x128xf32, #tpu.memory_space<vmem>>, vector<1x8x128xf32>,
    %c4 = arith.constant 4 : index
    %c0_47 = arith.constant 0 : index
    %c0_48 = arith.constant 0 : index
    %140 = vector.load %arg12[%c4, %c0_47, %c0_48] : memref<8x8x384xf32, #tpu.memory_space<vmem>>, vector<1x8x384xf32>
    %141 = vector.shape_cast %140 : vector<1x8x384xf32> to vector<8x384xf32>
    %cst_49 = arith.constant dense<0.000000e+00> : vector<8x384xf32>
    %142 = tpu.matmul %136, %1, %cst_49 {dimension_numbers = #tpu.dot_dimension_numbers<[1], [0], [0], [1], [0, 0, 1, 1], [], []>} : vector<8x128xf32>, vector<128x384xf32>, vector<8x384xf32> -> vector<8x384xf32>
    %143 = vector.broadcast %3 : vector<1x384xf32> to vector<8x384xf32>
    %144 = arith.addf %142, %143 : vector<8x384xf32>
    %145 = vector.extract_strided_slice %141 {offsets = [0, 0], sizes = [8, 128], strides = [1, 1]} : vector<8x384xf32> to vector<8x128xf32>
    %146 = vector.extract_strided_slice %144 {offsets = [0, 0], sizes = [8, 128], strides = [1, 1]} : vector<8x384xf32> to vector<8x128xf32>
    %147 = arith.addf %145, %146 : vector<8x128xf32>
    %148 = arith.negf %147 : vector<8x128xf32>
    %149 = math.exp %148 : vector<8x128xf32>
    %cst_50 = arith.constant 1.000000e+00 : f32
    %150 = vector.broadcast %cst_50 : f32 to vector<8x128xf32>
    %151 = arith.addf %150, %149 : vector<8x128xf32>
    %152 = arith.divf %150, %151 : vector<8x128xf32>
    %153 = vector.extract_strided_slice %141 {offsets = [0, 128], sizes = [8, 128], strides = [1, 1]} : vector<8x384xf32> to vector<8x128xf32>
    %154 = vector.extract_strided_slice %144 {offsets = [0, 128], sizes = [8, 128], strides = [1, 1]} : vector<8x384xf32> to vector<8x128xf32>
    %155 = arith.addf %153, %154 : vector<8x128xf32>
    %156 = arith.negf %155 : vector<8x128xf32>
    %157 = math.exp %156 : vector<8x128xf32>
    %cst_51 = arith.constant 1.000000e+00 : f32
    %158 = vector.broadcast %cst_51 : f32 to vector<8x128xf32>
    %159 = arith.addf %158, %157 : vector<8x128xf32>
    %160 = arith.divf %158, %159 : vector<8x128xf32>
    %161 = vector.extract_strided_slice %141 {offsets = [0, 256], sizes = [8, 128], strides = [1, 1]} : vector<8x384xf32> to vector<8x128xf32>
    %162 = vector.extract_strided_slice %144 {offsets = [0, 256], sizes = [8, 128], strides = [1, 1]} : vector<8x384xf32> to vector<8x128xf32>
    %163 = arith.mulf %152, %162 : vector<8x128xf32>
    %164 = arith.addf %161, %163 : vector<8x128xf32>
    %165 = math.tanh %164 : vector<8x128xf32>
    %166 = arith.subf %136, %165 : vector<8x128xf32>
    %167 = arith.mulf %160, %166 : vector<8x128xf32>
    %168 = arith.addf %165, %167 : vector<8x128xf32>
    %c4_52 = arith.constant 4 : index
    %c0_53 = arith.constant 0 : index
    %c0_54 = arith.constant 0 : index
    %169 = vector.load %arg13[%c4_52, %c0_53, %c0_54] : memref<8x8x128xf32, #tpu.memory_space<vmem>>, vector<1x8x128xf32>
    %170 = vector.shape_cast %169 : vector<1x8x128xf32> to vector<8x128xf32>
    %171 = vector.shape_cast %168 : vector<8x128xf32> to vector<1x8x128xf32>
    tpu.vector_store %arg13[%c4_52, %c0_53, %c0_54], %171 {strides = array<i32>} : memref<8x8x128xf32, #tpu.memory_space<vmem>>, vector<1x8x128xf32>,
    %c5 = arith.constant 5 : index
    %c0_55 = arith.constant 0 : index
    %c0_56 = arith.constant 0 : index
    %172 = vector.load %arg12[%c5, %c0_55, %c0_56] : memref<8x8x384xf32, #tpu.memory_space<vmem>>, vector<1x8x384xf32>
    %173 = vector.shape_cast %172 : vector<1x8x384xf32> to vector<8x384xf32>
    %cst_57 = arith.constant dense<0.000000e+00> : vector<8x384xf32>
    %174 = tpu.matmul %168, %1, %cst_57 {dimension_numbers = #tpu.dot_dimension_numbers<[1], [0], [0], [1], [0, 0, 1, 1], [], []>} : vector<8x128xf32>, vector<128x384xf32>, vector<8x384xf32> -> vector<8x384xf32>
    %175 = vector.broadcast %3 : vector<1x384xf32> to vector<8x384xf32>
    %176 = arith.addf %174, %175 : vector<8x384xf32>
    %177 = vector.extract_strided_slice %173 {offsets = [0, 0], sizes = [8, 128], strides = [1, 1]} : vector<8x384xf32> to vector<8x128xf32>
    %178 = vector.extract_strided_slice %176 {offsets = [0, 0], sizes = [8, 128], strides = [1, 1]} : vector<8x384xf32> to vector<8x128xf32>
    %179 = arith.addf %177, %178 : vector<8x128xf32>
    %180 = arith.negf %179 : vector<8x128xf32>
    %181 = math.exp %180 : vector<8x128xf32>
    %cst_58 = arith.constant 1.000000e+00 : f32
    %182 = vector.broadcast %cst_58 : f32 to vector<8x128xf32>
    %183 = arith.addf %182, %181 : vector<8x128xf32>
    %184 = arith.divf %182, %183 : vector<8x128xf32>
    %185 = vector.extract_strided_slice %173 {offsets = [0, 128], sizes = [8, 128], strides = [1, 1]} : vector<8x384xf32> to vector<8x128xf32>
    %186 = vector.extract_strided_slice %176 {offsets = [0, 128], sizes = [8, 128], strides = [1, 1]} : vector<8x384xf32> to vector<8x128xf32>
    %187 = arith.addf %185, %186 : vector<8x128xf32>
    %188 = arith.negf %187 : vector<8x128xf32>
    %189 = math.exp %188 : vector<8x128xf32>
    %cst_59 = arith.constant 1.000000e+00 : f32
    %190 = vector.broadcast %cst_59 : f32 to vector<8x128xf32>
    %191 = arith.addf %190, %189 : vector<8x128xf32>
    %192 = arith.divf %190, %191 : vector<8x128xf32>
    %193 = vector.extract_strided_slice %173 {offsets = [0, 256], sizes = [8, 128], strides = [1, 1]} : vector<8x384xf32> to vector<8x128xf32>
    %194 = vector.extract_strided_slice %176 {offsets = [0, 256], sizes = [8, 128], strides = [1, 1]} : vector<8x384xf32> to vector<8x128xf32>
    %195 = arith.mulf %184, %194 : vector<8x128xf32>
    %196 = arith.addf %193, %195 : vector<8x128xf32>
    %197 = math.tanh %196 : vector<8x128xf32>
    %198 = arith.subf %168, %197 : vector<8x128xf32>
    %199 = arith.mulf %192, %198 : vector<8x128xf32>
    %200 = arith.addf %197, %199 : vector<8x128xf32>
    %c5_60 = arith.constant 5 : index
    %c0_61 = arith.constant 0 : index
    %c0_62 = arith.constant 0 : index
    %201 = vector.load %arg13[%c5_60, %c0_61, %c0_62] : memref<8x8x128xf32, #tpu.memory_space<vmem>>, vector<1x8x128xf32>
    %202 = vector.shape_cast %201 : vector<1x8x128xf32> to vector<8x128xf32>
    %203 = vector.shape_cast %200 : vector<8x128xf32> to vector<1x8x128xf32>
    tpu.vector_store %arg13[%c5_60, %c0_61, %c0_62], %203 {strides = array<i32>} : memref<8x8x128xf32, #tpu.memory_space<vmem>>, vector<1x8x128xf32>,
    %c6 = arith.constant 6 : index
    %c0_63 = arith.constant 0 : index
    %c0_64 = arith.constant 0 : index
    %204 = vector.load %arg12[%c6, %c0_63, %c0_64] : memref<8x8x384xf32, #tpu.memory_space<vmem>>, vector<1x8x384xf32>
    %205 = vector.shape_cast %204 : vector<1x8x384xf32> to vector<8x384xf32>
    %cst_65 = arith.constant dense<0.000000e+00> : vector<8x384xf32>
    %206 = tpu.matmul %200, %1, %cst_65 {dimension_numbers = #tpu.dot_dimension_numbers<[1], [0], [0], [1], [0, 0, 1, 1], [], []>} : vector<8x128xf32>, vector<128x384xf32>, vector<8x384xf32> -> vector<8x384xf32>
    %207 = vector.broadcast %3 : vector<1x384xf32> to vector<8x384xf32>
    %208 = arith.addf %206, %207 : vector<8x384xf32>
    %209 = vector.extract_strided_slice %205 {offsets = [0, 0], sizes = [8, 128], strides = [1, 1]} : vector<8x384xf32> to vector<8x128xf32>
    %210 = vector.extract_strided_slice %208 {offsets = [0, 0], sizes = [8, 128], strides = [1, 1]} : vector<8x384xf32> to vector<8x128xf32>
    %211 = arith.addf %209, %210 : vector<8x128xf32>
    %212 = arith.negf %211 : vector<8x128xf32>
    %213 = math.exp %212 : vector<8x128xf32>
    %cst_66 = arith.constant 1.000000e+00 : f32
    %214 = vector.broadcast %cst_66 : f32 to vector<8x128xf32>
    %215 = arith.addf %214, %213 : vector<8x128xf32>
    %216 = arith.divf %214, %215 : vector<8x128xf32>
    %217 = vector.extract_strided_slice %205 {offsets = [0, 128], sizes = [8, 128], strides = [1, 1]} : vector<8x384xf32> to vector<8x128xf32>
    %218 = vector.extract_strided_slice %208 {offsets = [0, 128], sizes = [8, 128], strides = [1, 1]} : vector<8x384xf32> to vector<8x128xf32>
    %219 = arith.addf %217, %218 : vector<8x128xf32>
    %220 = arith.negf %219 : vector<8x128xf32>
    %221 = math.exp %220 : vector<8x128xf32>
    %cst_67 = arith.constant 1.000000e+00 : f32
    %222 = vector.broadcast %cst_67 : f32 to vector<8x128xf32>
    %223 = arith.addf %222, %221 : vector<8x128xf32>
    %224 = arith.divf %222, %223 : vector<8x128xf32>
    %225 = vector.extract_strided_slice %205 {offsets = [0, 256], sizes = [8, 128], strides = [1, 1]} : vector<8x384xf32> to vector<8x128xf32>
    %226 = vector.extract_strided_slice %208 {offsets = [0, 256], sizes = [8, 128], strides = [1, 1]} : vector<8x384xf32> to vector<8x128xf32>
    %227 = arith.mulf %216, %226 : vector<8x128xf32>
    %228 = arith.addf %225, %227 : vector<8x128xf32>
    %229 = math.tanh %228 : vector<8x128xf32>
    %230 = arith.subf %200, %229 : vector<8x128xf32>
    %231 = arith.mulf %224, %230 : vector<8x128xf32>
    %232 = arith.addf %229, %231 : vector<8x128xf32>
    %c6_68 = arith.constant 6 : index
    %c0_69 = arith.constant 0 : index
    %c0_70 = arith.constant 0 : index
    %233 = vector.load %arg13[%c6_68, %c0_69, %c0_70] : memref<8x8x128xf32, #tpu.memory_space<vmem>>, vector<1x8x128xf32>
    %234 = vector.shape_cast %233 : vector<1x8x128xf32> to vector<8x128xf32>
    %235 = vector.shape_cast %232 : vector<8x128xf32> to vector<1x8x128xf32>
    tpu.vector_store %arg13[%c6_68, %c0_69, %c0_70], %235 {strides = array<i32>} : memref<8x8x128xf32, #tpu.memory_space<vmem>>, vector<1x8x128xf32>,
    %c7 = arith.constant 7 : index
    %c0_71 = arith.constant 0 : index
    %c0_72 = arith.constant 0 : index
    %236 = vector.load %arg12[%c7, %c0_71, %c0_72] : memref<8x8x384xf32, #tpu.memory_space<vmem>>, vector<1x8x384xf32>
    %237 = vector.shape_cast %236 : vector<1x8x384xf32> to vector<8x384xf32>
    %cst_73 = arith.constant dense<0.000000e+00> : vector<8x384xf32>
    %238 = tpu.matmul %232, %1, %cst_73 {dimension_numbers = #tpu.dot_dimension_numbers<[1], [0], [0], [1], [0, 0, 1, 1], [], []>} : vector<8x128xf32>, vector<128x384xf32>, vector<8x384xf32> -> vector<8x384xf32>
    %239 = vector.broadcast %3 : vector<1x384xf32> to vector<8x384xf32>
    %240 = arith.addf %238, %239 : vector<8x384xf32>
    %241 = vector.extract_strided_slice %237 {offsets = [0, 0], sizes = [8, 128], strides = [1, 1]} : vector<8x384xf32> to vector<8x128xf32>
    %242 = vector.extract_strided_slice %240 {offsets = [0, 0], sizes = [8, 128], strides = [1, 1]} : vector<8x384xf32> to vector<8x128xf32>
    %243 = arith.addf %241, %242 : vector<8x128xf32>
    %244 = arith.negf %243 : vector<8x128xf32>
    %245 = math.exp %244 : vector<8x128xf32>
    %cst_74 = arith.constant 1.000000e+00 : f32
    %246 = vector.broadcast %cst_74 : f32 to vector<8x128xf32>
    %247 = arith.addf %246, %245 : vector<8x128xf32>
    %248 = arith.divf %246, %247 : vector<8x128xf32>
    %249 = vector.extract_strided_slice %237 {offsets = [0, 128], sizes = [8, 128], strides = [1, 1]} : vector<8x384xf32> to vector<8x128xf32>
    %250 = vector.extract_strided_slice %240 {offsets = [0, 128], sizes = [8, 128], strides = [1, 1]} : vector<8x384xf32> to vector<8x128xf32>
    %251 = arith.addf %249, %250 : vector<8x128xf32>
    %252 = arith.negf %251 : vector<8x128xf32>
    %253 = math.exp %252 : vector<8x128xf32>
    %cst_75 = arith.constant 1.000000e+00 : f32
    %254 = vector.broadcast %cst_75 : f32 to vector<8x128xf32>
    %255 = arith.addf %254, %253 : vector<8x128xf32>
    %256 = arith.divf %254, %255 : vector<8x128xf32>
    %257 = vector.extract_strided_slice %237 {offsets = [0, 256], sizes = [8, 128], strides = [1, 1]} : vector<8x384xf32> to vector<8x128xf32>
    %258 = vector.extract_strided_slice %240 {offsets = [0, 256], sizes = [8, 128], strides = [1, 1]} : vector<8x384xf32> to vector<8x128xf32>
    %259 = arith.mulf %248, %258 : vector<8x128xf32>
    %260 = arith.addf %257, %259 : vector<8x128xf32>
    %261 = math.tanh %260 : vector<8x128xf32>
    %262 = arith.subf %232, %261 : vector<8x128xf32>
    %263 = arith.mulf %256, %262 : vector<8x128xf32>
    %264 = arith.addf %261, %263 : vector<8x128xf32>
    %c7_76 = arith.constant 7 : index
    %c0_77 = arith.constant 0 : index
    %c0_78 = arith.constant 0 : index
    %265 = vector.load %arg13[%c7_76, %c0_77, %c0_78] : memref<8x8x128xf32, #tpu.memory_space<vmem>>, vector<1x8x128xf32>
    %266 = vector.shape_cast %265 : vector<1x8x128xf32> to vector<8x128xf32>
    %267 = vector.shape_cast %264 : vector<8x128xf32> to vector<1x8x128xf32>
    tpu.vector_store %arg13[%c7_76, %c0_77, %c0_78], %267 {strides = array<i32>} : memref<8x8x128xf32, #tpu.memory_space<vmem>>, vector<1x8x128xf32>,
    %c0_79 = arith.constant 0 : index
    %c0_80 = arith.constant 0 : index
    %268 = vector.load %arg5[%c0_79, %c0_80] : memref<128x384xf32, #tpu.memory_space<vmem>>, vector<128x384xf32>
    %c0_81 = arith.constant 0 : index
    %c0_82 = arith.constant 0 : index
    %269 = vector.load %arg6[%c0_81, %c0_82] : memref<128x384xf32, #tpu.memory_space<vmem>>, vector<128x384xf32>
    %c0_83 = arith.constant 0 : index
    %c0_84 = arith.constant 0 : index
    %270 = vector.load %arg7[%c0_83, %c0_84] : memref<1x384xf32, #tpu.memory_space<vmem>>, vector<1x384xf32>
    %c0_85 = arith.constant 0 : index
    %c0_86 = arith.constant 0 : index
    %271 = vector.load %arg8[%c0_85, %c0_86] : memref<1x384xf32, #tpu.memory_space<vmem>>, vector<1x384xf32>
    %c0_87 = arith.constant 0 : index
    %c0_88 = arith.constant 0 : index
    %c0_89 = arith.constant 0 : index
    %272 = vector.load %arg13[%c0_87, %c0_88, %c0_89] : memref<8x8x128xf32, #tpu.memory_space<vmem>>, vector<8x8x128xf32>
    %273 = vector.shape_cast %272 : vector<8x8x128xf32> to vector<64x128xf32>
    %cst_90 = arith.constant dense<0.000000e+00> : vector<64x384xf32>
    %274 = tpu.matmul %273, %268, %cst_90 {dimension_numbers = #tpu.dot_dimension_numbers<[1], [0], [0], [1], [0, 0, 1, 1], [], []>} : vector<64x128xf32>, vector<128x384xf32>, vector<64x384xf32> -> vector<64x384xf32>
    %275 = vector.broadcast %270 : vector<1x384xf32> to vector<64x384xf32>
    %276 = arith.addf %274, %275 : vector<64x384xf32>
    %277 = vector.shape_cast %276 : vector<64x384xf32> to vector<8x8x384xf32>
    %c0_91 = arith.constant 0 : index
    %c0_92 = arith.constant 0 : index
    %c0_93 = arith.constant 0 : index
    %278 = vector.load %arg12[%c0_91, %c0_92, %c0_93] : memref<8x8x384xf32, #tpu.memory_space<vmem>>, vector<8x8x384xf32>
    tpu.vector_store %arg12[%c0_91, %c0_92, %c0_93], %277 {strides = array<i32>} : memref<8x8x384xf32, #tpu.memory_space<vmem>>, vector<8x8x384xf32>,
    %cst_94 = arith.constant 0.000000e+00 : f32
    %279 = vector.broadcast %cst_94 : f32 to vector<8x128xf32>
    %c0_95 = arith.constant 0 : index
    %c0_96 = arith.constant 0 : index
    %c0_97 = arith.constant 0 : index
    %280 = vector.load %arg12[%c0_95, %c0_96, %c0_97] : memref<8x8x384xf32, #tpu.memory_space<vmem>>, vector<1x8x384xf32>
    %281 = vector.shape_cast %280 : vector<1x8x384xf32> to vector<8x384xf32>
    %cst_98 = arith.constant dense<0.000000e+00> : vector<8x384xf32>
    %282 = tpu.matmul %279, %269, %cst_98 {dimension_numbers = #tpu.dot_dimension_numbers<[1], [0], [0], [1], [0, 0, 1, 1], [], []>} : vector<8x128xf32>, vector<128x384xf32>, vector<8x384xf32> -> vector<8x384xf32>
    %283 = vector.broadcast %271 : vector<1x384xf32> to vector<8x384xf32>
    %284 = arith.addf %282, %283 : vector<8x384xf32>
    %285 = vector.extract_strided_slice %281 {offsets = [0, 0], sizes = [8, 128], strides = [1, 1]} : vector<8x384xf32> to vector<8x128xf32>
    %286 = vector.extract_strided_slice %284 {offsets = [0, 0], sizes = [8, 128], strides = [1, 1]} : vector<8x384xf32> to vector<8x128xf32>
    %287 = arith.addf %285, %286 : vector<8x128xf32>
    %288 = arith.negf %287 : vector<8x128xf32>
    %289 = math.exp %288 : vector<8x128xf32>
    %cst_99 = arith.constant 1.000000e+00 : f32
    %290 = vector.broadcast %cst_99 : f32 to vector<8x128xf32>
    %291 = arith.addf %290, %289 : vector<8x128xf32>
    %292 = arith.divf %290, %291 : vector<8x128xf32>
    %293 = vector.extract_strided_slice %281 {offsets = [0, 128], sizes = [8, 128], strides = [1, 1]} : vector<8x384xf32> to vector<8x128xf32>
    %294 = vector.extract_strided_slice %284 {offsets = [0, 128], sizes = [8, 128], strides = [1, 1]} : vector<8x384xf32> to vector<8x128xf32>
    %295 = arith.addf %293, %294 : vector<8x128xf32>
    %296 = arith.negf %295 : vector<8x128xf32>
    %297 = math.exp %296 : vector<8x128xf32>
    %cst_100 = arith.constant 1.000000e+00 : f32
    %298 = vector.broadcast %cst_100 : f32 to vector<8x128xf32>
    %299 = arith.addf %298, %297 : vector<8x128xf32>
    %300 = arith.divf %298, %299 : vector<8x128xf32>
    %301 = vector.extract_strided_slice %281 {offsets = [0, 256], sizes = [8, 128], strides = [1, 1]} : vector<8x384xf32> to vector<8x128xf32>
    %302 = vector.extract_strided_slice %284 {offsets = [0, 256], sizes = [8, 128], strides = [1, 1]} : vector<8x384xf32> to vector<8x128xf32>
    %303 = arith.mulf %292, %302 : vector<8x128xf32>
    %304 = arith.addf %301, %303 : vector<8x128xf32>
    %305 = math.tanh %304 : vector<8x128xf32>
    %306 = arith.subf %279, %305 : vector<8x128xf32>
    %307 = arith.mulf %300, %306 : vector<8x128xf32>
    %308 = arith.addf %305, %307 : vector<8x128xf32>
    %c1_101 = arith.constant 1 : index
    %c0_102 = arith.constant 0 : index
    %c0_103 = arith.constant 0 : index
    %309 = vector.load %arg12[%c1_101, %c0_102, %c0_103] : memref<8x8x384xf32, #tpu.memory_space<vmem>>, vector<1x8x384xf32>
    %310 = vector.shape_cast %309 : vector<1x8x384xf32> to vector<8x384xf32>
    %cst_104 = arith.constant dense<0.000000e+00> : vector<8x384xf32>
    %311 = tpu.matmul %308, %269, %cst_104 {dimension_numbers = #tpu.dot_dimension_numbers<[1], [0], [0], [1], [0, 0, 1, 1], [], []>} : vector<8x128xf32>, vector<128x384xf32>, vector<8x384xf32> -> vector<8x384xf32>
    %312 = vector.broadcast %271 : vector<1x384xf32> to vector<8x384xf32>
    %313 = arith.addf %311, %312 : vector<8x384xf32>
    %314 = vector.extract_strided_slice %310 {offsets = [0, 0], sizes = [8, 128], strides = [1, 1]} : vector<8x384xf32> to vector<8x128xf32>
    %315 = vector.extract_strided_slice %313 {offsets = [0, 0], sizes = [8, 128], strides = [1, 1]} : vector<8x384xf32> to vector<8x128xf32>
    %316 = arith.addf %314, %315 : vector<8x128xf32>
    %317 = arith.negf %316 : vector<8x128xf32>
    %318 = math.exp %317 : vector<8x128xf32>
    %cst_105 = arith.constant 1.000000e+00 : f32
    %319 = vector.broadcast %cst_105 : f32 to vector<8x128xf32>
    %320 = arith.addf %319, %318 : vector<8x128xf32>
    %321 = arith.divf %319, %320 : vector<8x128xf32>
    %322 = vector.extract_strided_slice %310 {offsets = [0, 128], sizes = [8, 128], strides = [1, 1]} : vector<8x384xf32> to vector<8x128xf32>
    %323 = vector.extract_strided_slice %313 {offsets = [0, 128], sizes = [8, 128], strides = [1, 1]} : vector<8x384xf32> to vector<8x128xf32>
    %324 = arith.addf %322, %323 : vector<8x128xf32>
    %325 = arith.negf %324 : vector<8x128xf32>
    %326 = math.exp %325 : vector<8x128xf32>
    %cst_106 = arith.constant 1.000000e+00 : f32
    %327 = vector.broadcast %cst_106 : f32 to vector<8x128xf32>
    %328 = arith.addf %327, %326 : vector<8x128xf32>
    %329 = arith.divf %327, %328 : vector<8x128xf32>
    %330 = vector.extract_strided_slice %310 {offsets = [0, 256], sizes = [8, 128], strides = [1, 1]} : vector<8x384xf32> to vector<8x128xf32>
    %331 = vector.extract_strided_slice %313 {offsets = [0, 256], sizes = [8, 128], strides = [1, 1]} : vector<8x384xf32> to vector<8x128xf32>
    %332 = arith.mulf %321, %331 : vector<8x128xf32>
    %333 = arith.addf %330, %332 : vector<8x128xf32>
    %334 = math.tanh %333 : vector<8x128xf32>
    %335 = arith.subf %308, %334 : vector<8x128xf32>
    %336 = arith.mulf %329, %335 : vector<8x128xf32>
    %337 = arith.addf %334, %336 : vector<8x128xf32>
    %c2_107 = arith.constant 2 : index
    %c0_108 = arith.constant 0 : index
    %c0_109 = arith.constant 0 : index
    %338 = vector.load %arg12[%c2_107, %c0_108, %c0_109] : memref<8x8x384xf32, #tpu.memory_space<vmem>>, vector<1x8x384xf32>
    %339 = vector.shape_cast %338 : vector<1x8x384xf32> to vector<8x384xf32>
    %cst_110 = arith.constant dense<0.000000e+00> : vector<8x384xf32>
    %340 = tpu.matmul %337, %269, %cst_110 {dimension_numbers = #tpu.dot_dimension_numbers<[1], [0], [0], [1], [0, 0, 1, 1], [], []>} : vector<8x128xf32>, vector<128x384xf32>, vector<8x384xf32> -> vector<8x384xf32>
    %341 = vector.broadcast %271 : vector<1x384xf32> to vector<8x384xf32>
    %342 = arith.addf %340, %341 : vector<8x384xf32>
    %343 = vector.extract_strided_slice %339 {offsets = [0, 0], sizes = [8, 128], strides = [1, 1]} : vector<8x384xf32> to vector<8x128xf32>
    %344 = vector.extract_strided_slice %342 {offsets = [0, 0], sizes = [8, 128], strides = [1, 1]} : vector<8x384xf32> to vector<8x128xf32>
    %345 = arith.addf %343, %344 : vector<8x128xf32>
    %346 = arith.negf %345 : vector<8x128xf32>
    %347 = math.exp %346 : vector<8x128xf32>
    %cst_111 = arith.constant 1.000000e+00 : f32
    %348 = vector.broadcast %cst_111 : f32 to vector<8x128xf32>
    %349 = arith.addf %348, %347 : vector<8x128xf32>
    %350 = arith.divf %348, %349 : vector<8x128xf32>
    %351 = vector.extract_strided_slice %339 {offsets = [0, 128], sizes = [8, 128], strides = [1, 1]} : vector<8x384xf32> to vector<8x128xf32>
    %352 = vector.extract_strided_slice %342 {offsets = [0, 128], sizes = [8, 128], strides = [1, 1]} : vector<8x384xf32> to vector<8x128xf32>
    %353 = arith.addf %351, %352 : vector<8x128xf32>
    %354 = arith.negf %353 : vector<8x128xf32>
    %355 = math.exp %354 : vector<8x128xf32>
    %cst_112 = arith.constant 1.000000e+00 : f32
    %356 = vector.broadcast %cst_112 : f32 to vector<8x128xf32>
    %357 = arith.addf %356, %355 : vector<8x128xf32>
    %358 = arith.divf %356, %357 : vector<8x128xf32>
    %359 = vector.extract_strided_slice %339 {offsets = [0, 256], sizes = [8, 128], strides = [1, 1]} : vector<8x384xf32> to vector<8x128xf32>
    %360 = vector.extract_strided_slice %342 {offsets = [0, 256], sizes = [8, 128], strides = [1, 1]} : vector<8x384xf32> to vector<8x128xf32>
    %361 = arith.mulf %350, %360 : vector<8x128xf32>
    %362 = arith.addf %359, %361 : vector<8x128xf32>
    %363 = math.tanh %362 : vector<8x128xf32>
    %364 = arith.subf %337, %363 : vector<8x128xf32>
    %365 = arith.mulf %358, %364 : vector<8x128xf32>
    %366 = arith.addf %363, %365 : vector<8x128xf32>
    %c3_113 = arith.constant 3 : index
    %c0_114 = arith.constant 0 : index
    %c0_115 = arith.constant 0 : index
    %367 = vector.load %arg12[%c3_113, %c0_114, %c0_115] : memref<8x8x384xf32, #tpu.memory_space<vmem>>, vector<1x8x384xf32>
    %368 = vector.shape_cast %367 : vector<1x8x384xf32> to vector<8x384xf32>
    %cst_116 = arith.constant dense<0.000000e+00> : vector<8x384xf32>
    %369 = tpu.matmul %366, %269, %cst_116 {dimension_numbers = #tpu.dot_dimension_numbers<[1], [0], [0], [1], [0, 0, 1, 1], [], []>} : vector<8x128xf32>, vector<128x384xf32>, vector<8x384xf32> -> vector<8x384xf32>
    %370 = vector.broadcast %271 : vector<1x384xf32> to vector<8x384xf32>
    %371 = arith.addf %369, %370 : vector<8x384xf32>
    %372 = vector.extract_strided_slice %368 {offsets = [0, 0], sizes = [8, 128], strides = [1, 1]} : vector<8x384xf32> to vector<8x128xf32>
    %373 = vector.extract_strided_slice %371 {offsets = [0, 0], sizes = [8, 128], strides = [1, 1]} : vector<8x384xf32> to vector<8x128xf32>
    %374 = arith.addf %372, %373 : vector<8x128xf32>
    %375 = arith.negf %374 : vector<8x128xf32>
    %376 = math.exp %375 : vector<8x128xf32>
    %cst_117 = arith.constant 1.000000e+00 : f32
    %377 = vector.broadcast %cst_117 : f32 to vector<8x128xf32>
    %378 = arith.addf %377, %376 : vector<8x128xf32>
    %379 = arith.divf %377, %378 : vector<8x128xf32>
    %380 = vector.extract_strided_slice %368 {offsets = [0, 128], sizes = [8, 128], strides = [1, 1]} : vector<8x384xf32> to vector<8x128xf32>
    %381 = vector.extract_strided_slice %371 {offsets = [0, 128], sizes = [8, 128], strides = [1, 1]} : vector<8x384xf32> to vector<8x128xf32>
    %382 = arith.addf %380, %381 : vector<8x128xf32>
    %383 = arith.negf %382 : vector<8x128xf32>
    %384 = math.exp %383 : vector<8x128xf32>
    %cst_118 = arith.constant 1.000000e+00 : f32
    %385 = vector.broadcast %cst_118 : f32 to vector<8x128xf32>
    %386 = arith.addf %385, %384 : vector<8x128xf32>
    %387 = arith.divf %385, %386 : vector<8x128xf32>
    %388 = vector.extract_strided_slice %368 {offsets = [0, 256], sizes = [8, 128], strides = [1, 1]} : vector<8x384xf32> to vector<8x128xf32>
    %389 = vector.extract_strided_slice %371 {offsets = [0, 256], sizes = [8, 128], strides = [1, 1]} : vector<8x384xf32> to vector<8x128xf32>
    %390 = arith.mulf %379, %389 : vector<8x128xf32>
    %391 = arith.addf %388, %390 : vector<8x128xf32>
    %392 = math.tanh %391 : vector<8x128xf32>
    %393 = arith.subf %366, %392 : vector<8x128xf32>
    %394 = arith.mulf %387, %393 : vector<8x128xf32>
    %395 = arith.addf %392, %394 : vector<8x128xf32>
    %c4_119 = arith.constant 4 : index
    %c0_120 = arith.constant 0 : index
    %c0_121 = arith.constant 0 : index
    %396 = vector.load %arg12[%c4_119, %c0_120, %c0_121] : memref<8x8x384xf32, #tpu.memory_space<vmem>>, vector<1x8x384xf32>
    %397 = vector.shape_cast %396 : vector<1x8x384xf32> to vector<8x384xf32>
    %cst_122 = arith.constant dense<0.000000e+00> : vector<8x384xf32>
    %398 = tpu.matmul %395, %269, %cst_122 {dimension_numbers = #tpu.dot_dimension_numbers<[1], [0], [0], [1], [0, 0, 1, 1], [], []>} : vector<8x128xf32>, vector<128x384xf32>, vector<8x384xf32> -> vector<8x384xf32>
    %399 = vector.broadcast %271 : vector<1x384xf32> to vector<8x384xf32>
    %400 = arith.addf %398, %399 : vector<8x384xf32>
    %401 = vector.extract_strided_slice %397 {offsets = [0, 0], sizes = [8, 128], strides = [1, 1]} : vector<8x384xf32> to vector<8x128xf32>
    %402 = vector.extract_strided_slice %400 {offsets = [0, 0], sizes = [8, 128], strides = [1, 1]} : vector<8x384xf32> to vector<8x128xf32>
    %403 = arith.addf %401, %402 : vector<8x128xf32>
    %404 = arith.negf %403 : vector<8x128xf32>
    %405 = math.exp %404 : vector<8x128xf32>
    %cst_123 = arith.constant 1.000000e+00 : f32
    %406 = vector.broadcast %cst_123 : f32 to vector<8x128xf32>
    %407 = arith.addf %406, %405 : vector<8x128xf32>
    %408 = arith.divf %406, %407 : vector<8x128xf32>
    %409 = vector.extract_strided_slice %397 {offsets = [0, 128], sizes = [8, 128], strides = [1, 1]} : vector<8x384xf32> to vector<8x128xf32>
    %410 = vector.extract_strided_slice %400 {offsets = [0, 128], sizes = [8, 128], strides = [1, 1]} : vector<8x384xf32> to vector<8x128xf32>
    %411 = arith.addf %409, %410 : vector<8x128xf32>
    %412 = arith.negf %411 : vector<8x128xf32>
    %413 = math.exp %412 : vector<8x128xf32>
    %cst_124 = arith.constant 1.000000e+00 : f32
    %414 = vector.broadcast %cst_124 : f32 to vector<8x128xf32>
    %415 = arith.addf %414, %413 : vector<8x128xf32>
    %416 = arith.divf %414, %415 : vector<8x128xf32>
    %417 = vector.extract_strided_slice %397 {offsets = [0, 256], sizes = [8, 128], strides = [1, 1]} : vector<8x384xf32> to vector<8x128xf32>
    %418 = vector.extract_strided_slice %400 {offsets = [0, 256], sizes = [8, 128], strides = [1, 1]} : vector<8x384xf32> to vector<8x128xf32>
    %419 = arith.mulf %408, %418 : vector<8x128xf32>
    %420 = arith.addf %417, %419 : vector<8x128xf32>
    %421 = math.tanh %420 : vector<8x128xf32>
    %422 = arith.subf %395, %421 : vector<8x128xf32>
    %423 = arith.mulf %416, %422 : vector<8x128xf32>
    %424 = arith.addf %421, %423 : vector<8x128xf32>
    %c5_125 = arith.constant 5 : index
    %c0_126 = arith.constant 0 : index
    %c0_127 = arith.constant 0 : index
    %425 = vector.load %arg12[%c5_125, %c0_126, %c0_127] : memref<8x8x384xf32, #tpu.memory_space<vmem>>, vector<1x8x384xf32>
    %426 = vector.shape_cast %425 : vector<1x8x384xf32> to vector<8x384xf32>
    %cst_128 = arith.constant dense<0.000000e+00> : vector<8x384xf32>
    %427 = tpu.matmul %424, %269, %cst_128 {dimension_numbers = #tpu.dot_dimension_numbers<[1], [0], [0], [1], [0, 0, 1, 1], [], []>} : vector<8x128xf32>, vector<128x384xf32>, vector<8x384xf32> -> vector<8x384xf32>
    %428 = vector.broadcast %271 : vector<1x384xf32> to vector<8x384xf32>
    %429 = arith.addf %427, %428 : vector<8x384xf32>
    %430 = vector.extract_strided_slice %426 {offsets = [0, 0], sizes = [8, 128], strides = [1, 1]} : vector<8x384xf32> to vector<8x128xf32>
    %431 = vector.extract_strided_slice %429 {offsets = [0, 0], sizes = [8, 128], strides = [1, 1]} : vector<8x384xf32> to vector<8x128xf32>
    %432 = arith.addf %430, %431 : vector<8x128xf32>
    %433 = arith.negf %432 : vector<8x128xf32>
    %434 = math.exp %433 : vector<8x128xf32>
    %cst_129 = arith.constant 1.000000e+00 : f32
    %435 = vector.broadcast %cst_129 : f32 to vector<8x128xf32>
    %436 = arith.addf %435, %434 : vector<8x128xf32>
    %437 = arith.divf %435, %436 : vector<8x128xf32>
    %438 = vector.extract_strided_slice %426 {offsets = [0, 128], sizes = [8, 128], strides = [1, 1]} : vector<8x384xf32> to vector<8x128xf32>
    %439 = vector.extract_strided_slice %429 {offsets = [0, 128], sizes = [8, 128], strides = [1, 1]} : vector<8x384xf32> to vector<8x128xf32>
    %440 = arith.addf %438, %439 : vector<8x128xf32>
    %441 = arith.negf %440 : vector<8x128xf32>
    %442 = math.exp %441 : vector<8x128xf32>
    %cst_130 = arith.constant 1.000000e+00 : f32
    %443 = vector.broadcast %cst_130 : f32 to vector<8x128xf32>
    %444 = arith.addf %443, %442 : vector<8x128xf32>
    %445 = arith.divf %443, %444 : vector<8x128xf32>
    %446 = vector.extract_strided_slice %426 {offsets = [0, 256], sizes = [8, 128], strides = [1, 1]} : vector<8x384xf32> to vector<8x128xf32>
    %447 = vector.extract_strided_slice %429 {offsets = [0, 256], sizes = [8, 128], strides = [1, 1]} : vector<8x384xf32> to vector<8x128xf32>
    %448 = arith.mulf %437, %447 : vector<8x128xf32>
    %449 = arith.addf %446, %448 : vector<8x128xf32>
    %450 = math.tanh %449 : vector<8x128xf32>
    %451 = arith.subf %424, %450 : vector<8x128xf32>
    %452 = arith.mulf %445, %451 : vector<8x128xf32>
    %453 = arith.addf %450, %452 : vector<8x128xf32>
    %c6_131 = arith.constant 6 : index
    %c0_132 = arith.constant 0 : index
    %c0_133 = arith.constant 0 : index
    %454 = vector.load %arg12[%c6_131, %c0_132, %c0_133] : memref<8x8x384xf32, #tpu.memory_space<vmem>>, vector<1x8x384xf32>
    %455 = vector.shape_cast %454 : vector<1x8x384xf32> to vector<8x384xf32>
    %cst_134 = arith.constant dense<0.000000e+00> : vector<8x384xf32>
    %456 = tpu.matmul %453, %269, %cst_134 {dimension_numbers = #tpu.dot_dimension_numbers<[1], [0], [0], [1], [0, 0, 1, 1], [], []>} : vector<8x128xf32>, vector<128x384xf32>, vector<8x384xf32> -> vector<8x384xf32>
    %457 = vector.broadcast %271 : vector<1x384xf32> to vector<8x384xf32>
    %458 = arith.addf %456, %457 : vector<8x384xf32>
    %459 = vector.extract_strided_slice %455 {offsets = [0, 0], sizes = [8, 128], strides = [1, 1]} : vector<8x384xf32> to vector<8x128xf32>
    %460 = vector.extract_strided_slice %458 {offsets = [0, 0], sizes = [8, 128], strides = [1, 1]} : vector<8x384xf32> to vector<8x128xf32>
    %461 = arith.addf %459, %460 : vector<8x128xf32>
    %462 = arith.negf %461 : vector<8x128xf32>
    %463 = math.exp %462 : vector<8x128xf32>
    %cst_135 = arith.constant 1.000000e+00 : f32
    %464 = vector.broadcast %cst_135 : f32 to vector<8x128xf32>
    %465 = arith.addf %464, %463 : vector<8x128xf32>
    %466 = arith.divf %464, %465 : vector<8x128xf32>
    %467 = vector.extract_strided_slice %455 {offsets = [0, 128], sizes = [8, 128], strides = [1, 1]} : vector<8x384xf32> to vector<8x128xf32>
    %468 = vector.extract_strided_slice %458 {offsets = [0, 128], sizes = [8, 128], strides = [1, 1]} : vector<8x384xf32> to vector<8x128xf32>
    %469 = arith.addf %467, %468 : vector<8x128xf32>
    %470 = arith.negf %469 : vector<8x128xf32>
    %471 = math.exp %470 : vector<8x128xf32>
    %cst_136 = arith.constant 1.000000e+00 : f32
    %472 = vector.broadcast %cst_136 : f32 to vector<8x128xf32>
    %473 = arith.addf %472, %471 : vector<8x128xf32>
    %474 = arith.divf %472, %473 : vector<8x128xf32>
    %475 = vector.extract_strided_slice %455 {offsets = [0, 256], sizes = [8, 128], strides = [1, 1]} : vector<8x384xf32> to vector<8x128xf32>
    %476 = vector.extract_strided_slice %458 {offsets = [0, 256], sizes = [8, 128], strides = [1, 1]} : vector<8x384xf32> to vector<8x128xf32>
    %477 = arith.mulf %466, %476 : vector<8x128xf32>
    %478 = arith.addf %475, %477 : vector<8x128xf32>
    %479 = math.tanh %478 : vector<8x128xf32>
    %480 = arith.subf %453, %479 : vector<8x128xf32>
    %481 = arith.mulf %474, %480 : vector<8x128xf32>
    %482 = arith.addf %479, %481 : vector<8x128xf32>
    %c7_137 = arith.constant 7 : index
    %c0_138 = arith.constant 0 : index
    %c0_139 = arith.constant 0 : index
    %483 = vector.load %arg12[%c7_137, %c0_138, %c0_139] : memref<8x8x384xf32, #tpu.memory_space<vmem>>, vector<1x8x384xf32>
    %484 = vector.shape_cast %483 : vector<1x8x384xf32> to vector<8x384xf32>
    %cst_140 = arith.constant dense<0.000000e+00> : vector<8x384xf32>
    %485 = tpu.matmul %482, %269, %cst_140 {dimension_numbers = #tpu.dot_dimension_numbers<[1], [0], [0], [1], [0, 0, 1, 1], [], []>} : vector<8x128xf32>, vector<128x384xf32>, vector<8x384xf32> -> vector<8x384xf32>
    %486 = vector.broadcast %271 : vector<1x384xf32> to vector<8x384xf32>
    %487 = arith.addf %485, %486 : vector<8x384xf32>
    %488 = vector.extract_strided_slice %484 {offsets = [0, 0], sizes = [8, 128], strides = [1, 1]} : vector<8x384xf32> to vector<8x128xf32>
    %489 = vector.extract_strided_slice %487 {offsets = [0, 0], sizes = [8, 128], strides = [1, 1]} : vector<8x384xf32> to vector<8x128xf32>
    %490 = arith.addf %488, %489 : vector<8x128xf32>
    %491 = arith.negf %490 : vector<8x128xf32>
    %492 = math.exp %491 : vector<8x128xf32>
    %cst_141 = arith.constant 1.000000e+00 : f32
    %493 = vector.broadcast %cst_141 : f32 to vector<8x128xf32>
    %494 = arith.addf %493, %492 : vector<8x128xf32>
    %495 = arith.divf %493, %494 : vector<8x128xf32>
    %496 = vector.extract_strided_slice %484 {offsets = [0, 128], sizes = [8, 128], strides = [1, 1]} : vector<8x384xf32> to vector<8x128xf32>
    %497 = vector.extract_strided_slice %487 {offsets = [0, 128], sizes = [8, 128], strides = [1, 1]} : vector<8x384xf32> to vector<8x128xf32>
    %498 = arith.addf %496, %497 : vector<8x128xf32>
    %499 = arith.negf %498 : vector<8x128xf32>
    %500 = math.exp %499 : vector<8x128xf32>
    %cst_142 = arith.constant 1.000000e+00 : f32
    %501 = vector.broadcast %cst_142 : f32 to vector<8x128xf32>
    %502 = arith.addf %501, %500 : vector<8x128xf32>
    %503 = arith.divf %501, %502 : vector<8x128xf32>
    %504 = vector.extract_strided_slice %484 {offsets = [0, 256], sizes = [8, 128], strides = [1, 1]} : vector<8x384xf32> to vector<8x128xf32>
    %505 = vector.extract_strided_slice %487 {offsets = [0, 256], sizes = [8, 128], strides = [1, 1]} : vector<8x384xf32> to vector<8x128xf32>
    %506 = arith.mulf %495, %505 : vector<8x128xf32>
    %507 = arith.addf %504, %506 : vector<8x128xf32>
    %508 = math.tanh %507 : vector<8x128xf32>
    %509 = arith.subf %482, %508 : vector<8x128xf32>
    %510 = arith.mulf %503, %509 : vector<8x128xf32>
    %511 = arith.addf %508, %510 : vector<8x128xf32>
    %c0_143 = arith.constant 0 : index
    %c0_144 = arith.constant 0 : index
    %512 = vector.load %arg9[%c0_143, %c0_144] : memref<128x128xf32, #tpu.memory_space<vmem>>, vector<128x128xf32>
    %cst_145 = arith.constant dense<0.000000e+00> : vector<8x128xf32>
    %513 = tpu.matmul %511, %512, %cst_145 {dimension_numbers = #tpu.dot_dimension_numbers<[1], [0], [0], [1], [0, 0, 1, 1], [], []>} : vector<8x128xf32>, vector<128x128xf32>, vector<8x128xf32> -> vector<8x128xf32>
    %c0_146 = arith.constant 0 : index
    %c0_147 = arith.constant 0 : index
    %514 = vector.load %arg10[%c0_146, %c0_147] : memref<1x128xf32, #tpu.memory_space<vmem>>, vector<1x128xf32>
    %515 = vector.broadcast %514 : vector<1x128xf32> to vector<8x128xf32>
    %516 = arith.addf %513, %515 : vector<8x128xf32>
    %517 = arith.mulf %516, %516 : vector<8x128xf32>
    %cst_148 = arith.constant dense<0.000000e+00> : vector<8xf32>
    %518 = vector.multi_reduction <add>, %517, %cst_148 [1] : vector<8x128xf32> to vector<8xf32>
    %519 = vector.shape_cast %518 : vector<8xf32> to vector<8x1xf32>
    %cst_149 = arith.constant 1.000000e-24 : f32
    %520 = vector.broadcast %cst_149 : f32 to vector<8x1xf32>
    %521 = arith.maximumf %519, %520 : vector<8x1xf32>
    %522 = math.rsqrt %521 : vector<8x1xf32>
    %523 = vector.broadcast %522 : vector<8x1xf32> to vector<8x128xf32>
    %524 = arith.mulf %516, %523 : vector<8x128xf32>
    %c0_150 = arith.constant 0 : index
    %c0_151 = arith.constant 0 : index
    %525 = vector.load %arg11[%c0_150, %c0_151] : memref<8x128xf32, #tpu.memory_space<vmem>>, vector<8x128xf32>
    tpu.vector_store %arg11[%c0_150, %c0_151], %524 {strides = array<i32>} : memref<8x128xf32, #tpu.memory_space<vmem>>, vector<8x128xf32>,
    return
  }
}

</mosaic_0001>

<llo_original>
// kernel: speaker_embedder_forward.1
$region0: #{speaker_embedder_forward.1}
  #allocation0 [shape = 'u32[]', space=smem, size = 0x4, offset = 0x4, fixed_abs, tag = 'smem constant byte address 0x4 - core index']
  #allocation1 [shape = 'u32[144,128]{1,0:T(1,128)}', space=vmem, size = 0x12000, scoped, tag = 'internal scratch']
  #allocation2 [shape = 'f32[8,8,384]{2,1,0:T(8,128)}', space=vmem, size = 0x18000, scoped, tag = 'scratch operand']
  #allocation3 [shape = 'f32[8,8,128]{2,1,0:T(8,128)}', space=vmem, size = 0x8000, scoped, tag = 'scratch operand']
  %s0 = inlined_call_operand.vmem [shape: f32[8,8,128], index: 0, kind: input, shape index: {}]
  %s1 = inlined_call_operand.hbm [shape: f32[128,384], index: 1, kind: input, shape index: {}]
  %s2 = inlined_call_operand.hbm [shape: f32[128,384], index: 2, kind: input, shape index: {}]
  %s3 = inlined_call_operand.vmem [shape: f32[1,384], index: 3, kind: input, shape index: {}]
  %s4 = inlined_call_operand.hbm [shape: f32[1,384], index: 4, kind: input, shape index: {}]
  %s5 = inlined_call_operand.hbm [shape: f32[128,384], index: 5, kind: input, shape index: {}]
  %s6 = inlined_call_operand.hbm [shape: f32[128,384], index: 6, kind: input, shape index: {}]
  %s7 = inlined_call_operand.hbm [shape: f32[1,384], index: 7, kind: input, shape index: {}]
  %s8 = inlined_call_operand.hbm [shape: f32[1,384], index: 8, kind: input, shape index: {}]
  %s9 = inlined_call_operand.vmem [shape: f32[128,128], index: 9, kind: input, shape index: {}]
  %s10 = inlined_call_operand.hbm [shape: f32[1,128], index: 10, kind: input, shape index: {}]
  %s11 = inlined_call_operand.vmem [shape: f32[8,128], index: 11, kind: output, shape index: {}]
  %s12 = sld [smem:[#allocation0]]
  $region86: #{speaker_embedder_forward.1} parent=0
    _
  %s14 = ssub.s32 1, %s12
  %s15 = scalar_select 0, %s14, %s12
  $region1: #{speaker_embedder_forward.1} parent=0
    #allocation4 [shape = 'u8[196608]{0}', space=vmem, size = 0x30000, scoped, tag = 'input window, operand 1, single buffered']
    #allocation5 [shape = 's32[1]{0}', space=sflag, size = 0x4, scoped, tag = 'scoped memory for speaker_embedder_forward.1']
    #allocation6 [shape = 'u8[196608]{0}', space=vmem, size = 0x30000, scoped, tag = 'input window, operand 2, single buffered']
    #allocation7 [shape = 's32[1]{0}', space=sflag, size = 0x4, scoped, tag = 'scoped memory for speaker_embedder_forward.1']
    #allocation8 [shape = 'u8[1536]{0}', space=vmem, size = 0x800, scoped, tag = 'input window, operand 4, single buffered']
    #allocation9 [shape = 'u8[196608]{0}', space=vmem, size = 0x30000, scoped, tag = 'input window, operand 5, single buffered']
    #allocation10 [shape = 's32[1]{0}', space=sflag, size = 0x4, scoped, tag = 'scoped memory for speaker_embedder_forward.1']
    #allocation11 [shape = 'u8[196608]{0}', space=vmem, size = 0x30000, scoped, tag = 'input window, operand 6, single buffered']
    #allocation12 [shape = 'u8[1536]{0}', space=vmem, size = 0x800, scoped, tag = 'input window, operand 7, single buffered']
    #allocation13 [shape = 's32[1]{0}', space=sflag, size = 0x4, scoped, tag = 'scoped memory for speaker_embedder_forward.1']
    #allocation14 [shape = 'u8[1536]{0}', space=vmem, size = 0x800, scoped, tag = 'input window, operand 8, single buffered']
    #allocation15 [shape = 'u8[512]{0}', space=vmem, size = 0x400, scoped, tag = 'input window, operand 10, single buffered']
    #allocation16 [shape = 's32[1]{0}', space=sflag, size = 0x4, scoped, tag = 'scoped memory for speaker_embedder_forward.1']
    %16 = vsyncpa [#allocation5], 0
    %17 = vsyncpa [#allocation7], 0
    %18 = vsyncpa [#allocation10], 0
    %19 = vsyncpa [#allocation13], 0
    %20 = vsyncpa [#allocation16], 0
    // Predicated region
    $region2: #{speaker_embedder_forward.1} parent=1 // pred_check
      _
    $region3: #{speaker_embedder_forward.1} parent=1 // pred_check_branch
      %22 = sbr.rel (0) target = $region5
    $region4: #{speaker_embedder_forward.1} parent=1 // pred_region
      _
    $region5: #{speaker_embedder_forward.1} parent=1 // pred_fallthru
      _
    // Predicated region
    $region6: #{speaker_embedder_forward.1} parent=1 // pred_check
      _
    $region7: #{speaker_embedder_forward.1} parent=1 // pred_check_branch
      %24 = sbr.rel (0) target = $region9
    $region8: #{speaker_embedder_forward.1} parent=1 // pred_region
      %s26 = ssub.s32 6144, 6144
      %27 = vsyncadd [#allocation5], %s26
      %s28 = sshll.u32 [#allocation4], 4
      %s29 = int_to_ptr.vmem [resolvable:$true] %s28
      %34 = dma.hbm_to_vmem [thread:$0]  %s1, 6144, %s29, [#allocation5], 384, 384, 24
    $region9: #{speaker_embedder_forward.1} parent=1 // pred_fallthru
      _
    // Predicated region
    $region10: #{speaker_embedder_forward.1} parent=1 // pred_check
      _
    $region11: #{speaker_embedder_forward.1} parent=1 // pred_check_branch
      %36 = sbr.rel (0) target = $region13
    $region12: #{speaker_embedder_forward.1} parent=1 // pred_region
      %s38 = ssub.s32 6144, 6144
      %39 = vsyncadd [#allocation7], %s38
      %s40 = sshll.u32 [#allocation6], 4
      %s41 = int_to_ptr.vmem [resolvable:$true] %s40
      %46 = dma.hbm_to_vmem [thread:$0]  %s2, 6144, %s41, [#allocation7], 384, 384, 24
    $region13: #{speaker_embedder_forward.1} parent=1 // pred_fallthru
      _
    // Predicated region
    $region14: #{speaker_embedder_forward.1} parent=1 // pred_check
      _
    $region15: #{speaker_embedder_forward.1} parent=1 // pred_check_branch
      %48 = sbr.rel (0) target = $region17
    $region16: #{speaker_embedder_forward.1} parent=1 // pred_region
      _
    $region17: #{speaker_embedder_forward.1} parent=1 // pred_fallthru
      _
    // Predicated region
    $region18: #{speaker_embedder_forward.1} parent=1 // pred_check
      _
    $region19: #{speaker_embedder_forward.1} parent=1 // pred_check_branch
      %50 = sbr.rel (0) target = $region21
    $region20: #{speaker_embedder_forward.1} parent=1 // pred_region
      %s52 = ssub.s32 48, 48
      %53 = vsyncadd [#allocation7], %s52
      %s55 = sshll.u32 [#allocation8], 4
      %s56 = int_to_ptr.vmem [resolvable:$true] %s55
      %58 = dma.hbm_to_vmem [thread:$0]  %s4, 48, %s56, [#allocation7]
    $region21: #{speaker_embedder_forward.1} parent=1 // pred_fallthru
      _
    // Predicated region
    $region22: #{speaker_embedder_forward.1} parent=1 // pred_check
      _
    $region23: #{speaker_embedder_forward.1} parent=1 // pred_check_branch
      %60 = sbr.rel (0) target = $region25
    $region24: #{speaker_embedder_forward.1} parent=1 // pred_region
      %s62 = ssub.s32 6144, 6144
      %63 = vsyncadd [#allocation10], %s62
      %s64 = sshll.u32 [#allocation9], 4
      %s65 = int_to_ptr.vmem [resolvable:$true] %s64
      %70 = dma.hbm_to_vmem [thread:$0]  %s5, 6144, %s65, [#allocation10], 384, 384, 24
    $region25: #{speaker_embedder_forward.1} parent=1 // pred_fallthru
      _
    // Predicated region
    $region26: #{speaker_embedder_forward.1} parent=1 // pred_check
      _
    $region27: #{speaker_embedder_forward.1} parent=1 // pred_check_branch
      %72 = sbr.rel (0) target = $region29
    $region28: #{speaker_embedder_forward.1} parent=1 // pred_region
      %s74 = ssub.s32 6144, 6144
      %75 = vsyncadd [#allocation10], %s74
      %s76 = sshll.u32 [#allocation11], 4
      %s77 = int_to_ptr.vmem [resolvable:$true] %s76
      %82 = dma.hbm_to_vmem [thread:$0]  %s6, 6144, %s77, [#allocation10], 384, 384, 24
    $region29: #{speaker_embedder_forward.1} parent=1 // pred_fallthru
      _
    // Predicated region
    $region30: #{speaker_embedder_forward.1} parent=1 // pred_check
      _
    $region31: #{speaker_embedder_forward.1} parent=1 // pred_check_branch
      %84 = sbr.rel (0) target = $region33
    $region32: #{speaker_embedder_forward.1} parent=1 // pred_region
      %s86 = ssub.s32 48, 48
      %87 = vsyncadd [#allocation13], %s86
      %s89 = sshll.u32 [#allocation12], 4
      %s90 = int_to_ptr.vmem [resolvable:$true] %s89
      %92 = dma.hbm_to_vmem [thread:$0]  %s7, 48, %s90, [#allocation13]
    $region33: #{speaker_embedder_forward.1} parent=1 // pred_fallthru
      _
    // Predicated region
    $region34: #{speaker_embedder_forward.1} parent=1 // pred_check
      _
    $region35: #{speaker_embedder_forward.1} parent=1 // pred_check_branch
      %94 = sbr.rel (0) target = $region37
    $region36: #{speaker_embedder_forward.1} parent=1 // pred_region
      %s96 = ssub.s32 48, 48
      %97 = vsyncadd [#allocation13], %s96
      %s99 = sshll.u32 [#allocation14], 4
      %s100 = int_to_ptr.vmem [resolvable:$true] %s99
      %102 = dma.hbm_to_vmem [thread:$0]  %s8, 48, %s100, [#allocation13]
    $region37: #{speaker_embedder_forward.1} parent=1 // pred_fallthru
      _
    // Predicated region
    $region38: #{speaker_embedder_forward.1} parent=1 // pred_check
      _
    $region39: #{speaker_embedder_forward.1} parent=1 // pred_check_branch
      %104 = sbr.rel (0) target = $region41
    $region40: #{speaker_embedder_forward.1} parent=1 // pred_region
      _
    $region41: #{speaker_embedder_forward.1} parent=1 // pred_fallthru
      _
    // Predicated region
    $region42: #{speaker_embedder_forward.1} parent=1 // pred_check
      _
    $region43: #{speaker_embedder_forward.1} parent=1 // pred_check_branch
      %106 = sbr.rel (0) target = $region45
    $region44: #{speaker_embedder_forward.1} parent=1 // pred_region
      %s108 = ssub.s32 16, 16
      %109 = vsyncadd [#allocation16], %s108
      %s111 = sshll.u32 [#allocation15], 4
      %s112 = int_to_ptr.vmem [resolvable:$true] %s111
      %114 = dma.hbm_to_vmem [thread:$0]  %s10, 16, %s112, [#allocation16]
    $region45: #{speaker_embedder_forward.1} parent=1 // pred_fallthru
      _
    // Predicated region
    $region46: #{speaker_embedder_forward.1} parent=1 // pred_check
      _
    $region47: #{speaker_embedder_forward.1} parent=1 // pred_check_branch
      %116 = sbr.rel (0) target = $region49
    $region48: #{speaker_embedder_forward.1} parent=1 // pred_region
      %117 = dma.done [#allocation5], 6144
    $region49: #{speaker_embedder_forward.1} parent=1 // pred_fallthru
      _
    // Predicated region
    $region50: #{speaker_embedder_forward.1} parent=1 // pred_check
      _
    $region51: #{speaker_embedder_forward.1} parent=1 // pred_check_branch
      %119 = sbr.rel (0) target = $region53
    $region52: #{speaker_embedder_forward.1} parent=1 // pred_region
      %120 = dma.done [#allocation7], 6144
    $region53: #{speaker_embedder_forward.1} parent=1 // pred_fallthru
      _
    // Predicated region
    $region54: #{speaker_embedder_forward.1} parent=1 // pred_check
      _
    $region55: #{speaker_embedder_forward.1} parent=1 // pred_check_branch
      %122 = sbr.rel (0) target = $region57
    $region56: #{speaker_embedder_forward.1} parent=1 // pred_region
      %123 = dma.done [#allocation7], 48
    $region57: #{speaker_embedder_forward.1} parent=1 // pred_fallthru
      _
    // Predicated region
    $region58: #{speaker_embedder_forward.1} parent=1 // pred_check
      _
    $region59: #{speaker_embedder_forward.1} parent=1 // pred_check_branch
      %125 = sbr.rel (0) target = $region61
    $region60: #{speaker_embedder_forward.1} parent=1 // pred_region
      %126 = dma.done [#allocation10], 6144
    $region61: #{speaker_embedder_forward.1} parent=1 // pred_fallthru
      _
    // Predicated region
    $region62: #{speaker_embedder_forward.1} parent=1 // pred_check
      _
    $region63: #{speaker_embedder_forward.1} parent=1 // pred_check_branch
      %128 = sbr.rel (0) target = $region65
    $region64: #{speaker_embedder_forward.1} parent=1 // pred_region
      %129 = dma.done [#allocation10], 6144
    $region65: #{speaker_embedder_forward.1} parent=1 // pred_fallthru
      _
    // Predicated region
    $region66: #{speaker_embedder_forward.1} parent=1 // pred_check
      _
    $region67: #{speaker_embedder_forward.1} parent=1 // pred_check_branch
      %131 = sbr.rel (0) target = $region69
    $region68: #{speaker_embedder_forward.1} parent=1 // pred_region
      %132 = dma.done [#allocation13], 48
    $region69: #{speaker_embedder_forward.1} parent=1 // pred_fallthru
      _
    // Predicated region
    $region70: #{speaker_embedder_forward.1} parent=1 // pred_check
      _
    $region71: #{speaker_embedder_forward.1} parent=1 // pred_check_branch
      %134 = sbr.rel (0) target = $region73
    $region72: #{speaker_embedder_forward.1} parent=1 // pred_region
      %135 = dma.done [#allocation13], 48
    $region73: #{speaker_embedder_forward.1} parent=1 // pred_fallthru
      _
    // Predicated region
    $region74: #{speaker_embedder_forward.1} parent=1 // pred_check
      _
    $region75: #{speaker_embedder_forward.1} parent=1 // pred_check_branch
      %137 = sbr.rel (0) target = $region77
    $region76: #{speaker_embedder_forward.1} parent=1 // pred_region
      %138 = dma.done [#allocation16], 16
    $region77: #{speaker_embedder_forward.1} parent=1 // pred_fallthru
      _
    %v139 = vld [vmem:[#allocation4] sm:$0xff]
    %v140 = vld [vmem:[#allocation4 + $0x8] sm:$0xff]
    %v141 = vld [vmem:[#allocation4 + $0x10] sm:$0xff]
    %v142 = vld [vmem:[#allocation4 + $0x18] sm:$0xff]
    %v143 = vld [vmem:[#allocation4 + $0x20] sm:$0xff]
    %v144 = vld [vmem:[#allocation4 + $0x28] sm:$0xff]
    %v145 = vld [vmem:[#allocation4 + $0x30] sm:$0xff]
    %v146 = vld [vmem:[#allocation4 + $0x38] sm:$0xff]
    %v147 = vld [vmem:[#allocation4 + $0x40] sm:$0xff]
    %v148 = vld [vmem:[#allocation4 + $0x48] sm:$0xff]
    %v149 = vld [vmem:[#allocation4 + $0x50] sm:$0xff]
    %v150 = vld [vmem:[#allocation4 + $0x58] sm:$0xff]
    %v151 = vld [vmem:[#allocation4 + $0x60] sm:$0xff]
    %v152 = vld [vmem:[#allocation4 + $0x68] sm:$0xff]
    %v153 = vld [vmem:[#allocation4 + $0x70] sm:$0xff]
    %v154 = vld [vmem:[#allocation4 + $0x78] sm:$0xff]
    %v155 = vld [vmem:[#allocation4 + $0x80] sm:$0xff]
    %v156 = vld [vmem:[#allocation4 + $0x88] sm:$0xff]
    %v157 = vld [vmem:[#allocation4 + $0x90] sm:$0xff]
    %v158 = vld [vmem:[#allocation4 + $0x98] sm:$0xff]
    %v159 = vld [vmem:[#allocation4 + $0xa0] sm:$0xff]
    %v160 = vld [vmem:[#allocation4 + $0xa8] sm:$0xff]
    %v161 = vld [vmem:[#allocation4 + $0xb0] sm:$0xff]
    %v162 = vld [vmem:[#allocation4 + $0xb8] sm:$0xff]
    %v163 = vld [vmem:[#allocation4 + $0xc0] sm:$0xff]
    %v164 = vld [vmem:[#allocation4 + $0xc8] sm:$0xff]
    %v165 = vld [vmem:[#allocation4 + $0xd0] sm:$0xff]
    %v166 = vld [vmem:[#allocation4 + $0xd8] sm:$0xff]
    %v167 = vld [vmem:[#allocation4 + $0xe0] sm:$0xff]
    %v168 = vld [vmem:[#allocation4 + $0xe8] sm:$0xff]
    %v169 = vld [vmem:[#allocation4 + $0xf0] sm:$0xff]
    %v170 = vld [vmem:[#allocation4 + $0xf8] sm:$0xff]
    %v171 = vld [vmem:[#allocation4 + $0x100] sm:$0xff]
    %v172 = vld [vmem:[#allocation4 + $0x108] sm:$0xff]
    %v173 = vld [vmem:[#allocation4 + $0x110] sm:$0xff]
    %v174 = vld [vmem:[#allocation4 + $0x118] sm:$0xff]
    %v175 = vld [vmem:[#allocation4 + $0x120] sm:$0xff]
    %v176 = vld [vmem:[#allocation4 + $0x128] sm:$0xff]
    %v177 = vld [vmem:[#allocation4 + $0x130] sm:$0xff]
    %v178 = vld [vmem:[#allocation4 + $0x138] sm:$0xff]
    %v179 = vld [vmem:[#allocation4 + $0x140] sm:$0xff]
    %v180 = vld [vmem:[#allocation4 + $0x148] sm:$0xff]
    %v181 = vld [vmem:[#allocation4 + $0x150] sm:$0xff]
    %v182 = vld [vmem:[#allocation4 + $0x158] sm:$0xff]
    %v183 = vld [vmem:[#allocation4 + $0x160] sm:$0xff]
    %v184 = vld [vmem:[#allocation4 + $0x168] sm:$0xff]
    %v185 = vld [vmem:[#allocation4 + $0x170] sm:$0xff]
    %v186 = vld [vmem:[#allocation4 + $0x178] sm:$0xff]
    %v187 = vld [vmem:[#allocation6] sm:$0xff]
    %v188 = vld [vmem:[#allocation6 + $0x8] sm:$0xff]
    %v189 = vld [vmem:[#allocation6 + $0x10] sm:$0xff]
    %v190 = vld [vmem:[#allocation6 + $0x18] sm:$0xff]
    %v191 = vld [vmem:[#allocation6 + $0x20] sm:$0xff]
    %v192 = vld [vmem:[#allocation6 + $0x28] sm:$0xff]
    %v193 = vld [vmem:[#allocation6 + $0x30] sm:$0xff]
    %v194 = vld [vmem:[#allocation6 + $0x38] sm:$0xff]
    %v195 = vld [vmem:[#allocation6 + $0x40] sm:$0xff]
    %v196 = vld [vmem:[#allocation6 + $0x48] sm:$0xff]
    %v197 = vld [vmem:[#allocation6 + $0x50] sm:$0xff]
    %v198 = vld [vmem:[#allocation6 + $0x58] sm:$0xff]
    %v199 = vld [vmem:[#allocation6 + $0x60] sm:$0xff]
    %v200 = vld [vmem:[#allocation6 + $0x68] sm:$0xff]
    %v201 = vld [vmem:[#allocation6 + $0x70] sm:$0xff]
    %v202 = vld [vmem:[#allocation6 + $0x78] sm:$0xff]
    %v203 = vld [vmem:[#allocation6 + $0x80] sm:$0xff]
    %v204 = vld [vmem:[#allocation6 + $0x88] sm:$0xff]
    %v205 = vld [vmem:[#allocation6 + $0x90] sm:$0xff]
    %v206 = vld [vmem:[#allocation6 + $0x98] sm:$0xff]
    %v207 = vld [vmem:[#allocation6 + $0xa0] sm:$0xff]
    %v208 = vld [vmem:[#allocation6 + $0xa8] sm:$0xff]
    %v209 = vld [vmem:[#allocation6 + $0xb0] sm:$0xff]
    %v210 = vld [vmem:[#allocation6 + $0xb8] sm:$0xff]
    %v211 = vld [vmem:[#allocation6 + $0xc0] sm:$0xff]
    %v212 = vld [vmem:[#allocation6 + $0xc8] sm:$0xff]
    %v213 = vld [vmem:[#allocation6 + $0xd0] sm:$0xff]
    %v214 = vld [vmem:[#allocation6 + $0xd8] sm:$0xff]
    %v215 = vld [vmem:[#allocation6 + $0xe0] sm:$0xff]
    %v216 = vld [vmem:[#allocation6 + $0xe8] sm:$0xff]
    %v217 = vld [vmem:[#allocation6 + $0xf0] sm:$0xff]
    %v218 = vld [vmem:[#allocation6 + $0xf8] sm:$0xff]
    %v219 = vld [vmem:[#allocation6 + $0x100] sm:$0xff]
    %v220 = vld [vmem:[#allocation6 + $0x108] sm:$0xff]
    %v221 = vld [vmem:[#allocation6 + $0x110] sm:$0xff]
    %v222 = vld [vmem:[#allocation6 + $0x118] sm:$0xff]
    %v223 = vld [vmem:[#allocation6 + $0x120] sm:$0xff]
    %v224 = vld [vmem:[#allocation6 + $0x128] sm:$0xff]
    %v225 = vld [vmem:[#allocation6 + $0x130] sm:$0xff]
    %v226 = vld [vmem:[#allocation6 + $0x138] sm:$0xff]
    %v227 = vld [vmem:[#allocation6 + $0x140] sm:$0xff]
    %v228 = vld [vmem:[#allocation6 + $0x148] sm:$0xff]
    %v229 = vld [vmem:[#allocation6 + $0x150] sm:$0xff]
    %v230 = vld [vmem:[#allocation6 + $0x158] sm:$0xff]
    %v231 = vld [vmem:[#allocation6 + $0x160] sm:$0xff]
    %v232 = vld [vmem:[#allocation6 + $0x168] sm:$0xff]
    %v233 = vld [vmem:[#allocation6 + $0x170] sm:$0xff]
    %v234 = vld [vmem:[#allocation6 + $0x178] sm:$0xff]
    %v235 = vld [vmem:[%s3] sm:$0x7]
    %v236 = vld [vmem:[#allocation8] sm:$0x7]
    %v237 = vld [vmem:[%s0] sm:$0xff]
    %v238 = vld [vmem:[%s0 + $0x8] sm:$0xff]
    %v239 = vld [vmem:[%s0 + $0x10] sm:$0xff]
    %v240 = vld [vmem:[%s0 + $0x18] sm:$0xff]
    %v241 = vld [vmem:[%s0 + $0x20] sm:$0xff]
    %v242 = vld [vmem:[%s0 + $0x28] sm:$0xff]
    %v243 = vld [vmem:[%s0 + $0x30] sm:$0xff]
    %v244 = vld [vmem:[%s0 + $0x38] sm:$0xff]
    %v246 = vlaneseq
    %v247 = vshrl.u32 %v246, 7
    %v248 = vsub.s32 0, %v247
    %v249 = vrot.slane %v235, %v248
    %v250 = vlaneseq
    %v251 = vshrl.u32 %v250, 7
    %v252 = vsub.s32 1, %v251
    %v253 = vrot.slane %v235, %v252
    %v254 = vlaneseq
    %v255 = vshrl.u32 %v254, 7
    %v256 = vsub.s32 2, %v255
    %v257 = vrot.slane %v235, %v256
    %261 = vmatprep.subr.mxu0 %v185
    %262 = vmatpush1.msra.mxu0 %v184
    %263 = vmatprep.subr.mxu0 %v182
    %264 = vmatpush1.msra.mxu0 %v181
    %265 = vmatprep.subr.mxu0 %v179
    %266 = vmatpush1.msra.mxu0 %v178
    %267 = vmatprep.subr.mxu0 %v176
    %268 = vmatpush1.msra.mxu0 %v175
    %269 = vmatprep.subr.mxu0 %v173
    %270 = vmatpush1.msra.mxu0 %v172
    %271 = vmatprep.subr.mxu0 %v170
    %272 = vmatpush1.msra.mxu0 %v169
    %273 = vmatprep.subr.mxu0 %v167
    %274 = vmatpush1.msra.mxu0 %v166
    %275 = vmatprep.subr.mxu0 %v164
    %276 = vmatpush1.msra.mxu0 %v163
    %277 = vmatprep.subr.mxu0 %v161
    %278 = vmatpush1.msra.mxu0 %v160
    %279 = vmatprep.subr.mxu0 %v158
    %280 = vmatpush1.msra.mxu0 %v157
    %281 = vmatprep.subr.mxu0 %v155
    %282 = vmatpush1.msra.mxu0 %v154
    %283 = vmatprep.subr.mxu0 %v152
    %284 = vmatpush1.msra.mxu0 %v151
    %285 = vmatprep.subr.mxu0 %v149
    %286 = vmatpush1.msra.mxu0 %v148
    %287 = vmatprep.subr.mxu0 %v146
    %288 = vmatpush1.msra.mxu0 %v145
    %289 = vmatprep.subr.mxu0 %v143
    %290 = vmatpush1.msra.mxu0 %v142
    %291 = vmatprep.subr.mxu0 %v140
    %292 = vmatpush1.msra.mxu0 %v139
    %293 = vmatprep.subr.mxu0 0.0
    %294 = vmatpush2.msra.mxu0 0.0
    %295 = vmatprep.subr.mxu0 0.0
    %296 = vmatpush2.msra.mxu0 0.0
    %297 = vmatprep.subr.mxu0 0.0
    %298 = vmatpush2.msra.mxu0 0.0
    %299 = vmatprep.subr.mxu0 0.0
    %300 = vmatpush2.msra.mxu0 0.0
    %301 = vmatprep.subr.mxu0 0.0
    %302 = vmatpush2.msra.mxu0 0.0
    %303 = vmatprep.subr.mxu0 0.0
    %304 = vmatpush2.msra.mxu0 0.0
    %305 = vmatprep.subr.mxu0 0.0
    %306 = vmatpush2.msra.mxu0 0.0
    %307 = vmatprep.subr.mxu0 0.0
    %308 = vmatpush2.msra.mxu0 0.0
    %309 = vmatprep.subr.mxu0 0.0
    %310 = vmatpush2.msra.mxu0 0.0
    %311 = vmatprep.subr.mxu0 0.0
    %312 = vmatpush2.msra.mxu0 0.0
    %313 = vmatprep.subr.mxu0 0.0
    %314 = vmatpush2.msra.mxu0 0.0
    %315 = vmatprep.subr.mxu0 0.0
    %316 = vmatpush2.msra.mxu0 0.0
    %317 = vmatprep.subr.mxu0 0.0
    %318 = vmatpush2.msra.mxu0 0.0
    %319 = vmatprep.subr.mxu0 0.0
    %320 = vmatpush2.msra.mxu0 0.0
    %321 = vmatprep.subr.mxu0 0.0
    %322 = vmatpush2.msra.mxu0 0.0
    %323 = vmatprep.subr.mxu0 0.0
    %324 = vmatpush2.msra.mxu0 0.0
    %325 = vmatprep.mubr.f32.mxu0 0.0
    %326 = vmatmul.mubr.f32.gmra.mxu0 %v237
    %v327 = vpop.f32.mrf.mxu0
    %v328 = vadd.f32 %v249, %v327
    %v329 = vpop.f32.mrf.mxu0
    %v330 = vadd.f32 %v253, %v329
    %331 = vmatprep.mubr.f32.mxu0 0.0
    %332 = vmatmul.mubr.f32.gmra.mxu0 %v238
    %v333 = vpop.f32.mrf.mxu0
    %v334 = vadd.f32 %v249, %v333
    %v335 = vpop.f32.mrf.mxu0
    %v336 = vadd.f32 %v253, %v335
    %337 = vmatprep.mubr.f32.mxu0 0.0
    %338 = vmatmul.mubr.f32.gmra.mxu0 %v239
    %v339 = vpop.f32.mrf.mxu0
    %v340 = vadd.f32 %v249, %v339
    %v341 = vpop.f32.mrf.mxu0
    %v342 = vadd.f32 %v253, %v341
    %343 = vmatprep.mubr.f32.mxu0 0.0
    %344 = vmatmul.mubr.f32.gmra.mxu0 %v240
    %v345 = vpop.f32.mrf.mxu0
    %v346 = vadd.f32 %v249, %v345
    %v347 = vpop.f32.mrf.mxu0
    %v348 = vadd.f32 %v253, %v347
    %349 = vmatprep.mubr.f32.mxu0 0.0
    %350 = vmatmul.mubr.f32.gmra.mxu0 %v241
    %v351 = vpop.f32.mrf.mxu0
    %v352 = vadd.f32 %v249, %v351
    %v353 = vpop.f32.mrf.mxu0
    %v354 = vadd.f32 %v253, %v353
    %355 = vmatprep.mubr.f32.mxu0 0.0
    %356 = vmatmul.mubr.f32.gmra.mxu0 %v242
    %v357 = vpop.f32.mrf.mxu0
    %v358 = vadd.f32 %v249, %v357
    %v359 = vpop.f32.mrf.mxu0
    %v360 = vadd.f32 %v253, %v359
    %361 = vmatprep.mubr.f32.mxu0 0.0
    %362 = vmatmul.mubr.f32.gmra.mxu0 %v243
    %v363 = vpop.f32.mrf.mxu0
    %v364 = vadd.f32 %v249, %v363
    %v365 = vpop.f32.mrf.mxu0
    %v366 = vadd.f32 %v253, %v365
    %367 = vmatprep.mubr.f32.mxu0 0.0
    %368 = vmatmul.mubr.f32.gmra.mxu0 %v244
    %v369 = vpop.f32.mrf.mxu0
    %v370 = vadd.f32 %v249, %v369
    %v371 = vpop.f32.mrf.mxu0
    %v372 = vadd.f32 %v253, %v371
    %373 = vdwg.mxu0
    %374 = vmatprep.subr.mxu0 0.0
    %375 = vmatpush1.msra.mxu0 %v186
    %376 = vmatprep.subr.mxu0 0.0
    %377 = vmatpush1.msra.mxu0 %v183
    %378 = vmatprep.subr.mxu0 0.0
    %379 = vmatpush1.msra.mxu0 %v180
    %380 = vmatprep.subr.mxu0 0.0
    %381 = vmatpush1.msra.mxu0 %v177
    %382 = vmatprep.subr.mxu0 0.0
    %383 = vmatpush1.msra.mxu0 %v174
    %384 = vmatprep.subr.mxu0 0.0
    %385 = vmatpush1.msra.mxu0 %v171
    %386 = vmatprep.subr.mxu0 0.0
    %387 = vmatpush1.msra.mxu0 %v168
    %388 = vmatprep.subr.mxu0 0.0
    %389 = vmatpush1.msra.mxu0 %v165
    %390 = vmatprep.subr.mxu0 0.0
    %391 = vmatpush1.msra.mxu0 %v162
    %392 = vmatprep.subr.mxu0 0.0
    %393 = vmatpush1.msra.mxu0 %v159
    %394 = vmatprep.subr.mxu0 0.0
    %395 = vmatpush1.msra.mxu0 %v156
    %396 = vmatprep.subr.mxu0 0.0
    %397 = vmatpush1.msra.mxu0 %v153
    %398 = vmatprep.subr.mxu0 0.0
    %399 = vmatpush1.msra.mxu0 %v150
    %400 = vmatprep.subr.mxu0 0.0
    %401 = vmatpush1.msra.mxu0 %v147
    %402 = vmatprep.subr.mxu0 0.0
    %403 = vmatpush1.msra.mxu0 %v144
    %404 = vmatprep.subr.mxu0 0.0
    %405 = vmatpush1.msra.mxu0 %v141
    %406 = vmatprep.subr.mxu0 0.0
    %407 = vmatpush2.msra.mxu0 0.0
    %408 = vmatprep.subr.mxu0 0.0
    %409 = vmatpush2.msra.mxu0 0.0
    %410 = vmatprep.subr.mxu0 0.0
    %411 = vmatpush2.msra.mxu0 0.0
    %412 = vmatprep.subr.mxu0 0.0
    %413 = vmatpush2.msra.mxu0 0.0
    %414 = vmatprep.subr.mxu0 0.0
    %415 = vmatpush2.msra.mxu0 0.0
    %416 = vmatprep.subr.mxu0 0.0
    %417 = vmatpush2.msra.mxu0 0.0
    %418 = vmatprep.subr.mxu0 0.0
    %419 = vmatpush2.msra.mxu0 0.0
    %420 = vmatprep.subr.mxu0 0.0
    %421 = vmatpush2.msra.mxu0 0.0
    %422 = vmatprep.subr.mxu0 0.0
    %423 = vmatpush2.msra.mxu0 0.0
    %424 = vmatprep.subr.mxu0 0.0
    %425 = vmatpush2.msra.mxu0 0.0
    %426 = vmatprep.subr.mxu0 0.0
    %427 = vmatpush2.msra.mxu0 0.0
    %428 = vmatprep.subr.mxu0 0.0
    %429 = vmatpush2.msra.mxu0 0.0
    %430 = vmatprep.subr.mxu0 0.0
    %431 = vmatpush2.msra.mxu0 0.0
    %432 = vmatprep.subr.mxu0 0.0
    %433 = vmatpush2.msra.mxu0 0.0
    %434 = vmatprep.subr.mxu0 0.0
    %435 = vmatpush2.msra.mxu0 0.0
    %436 = vmatprep.subr.mxu0 0.0
    %437 = vmatpush2.msra.mxu0 0.0
    %438 = vmatprep.mubr.f32.mxu0 0.0
    %439 = vmatmul.mubr.f32.gmra.mxu0 %v237
    %v440 = vpop.f32.mrf.mxu0
    %v441 = vadd.f32 %v257, %v440
    %v442 = vpop.f32.mrf.mxu0
    %443 = vmatprep.mubr.f32.mxu0 0.0
    %444 = vmatmul.mubr.f32.gmra.mxu0 %v238
    %v445 = vpop.f32.mrf.mxu0
    %v446 = vadd.f32 %v257, %v445
    %v447 = vpop.f32.mrf.mxu0
    %448 = vmatprep.mubr.f32.mxu0 0.0
    %449 = vmatmul.mubr.f32.gmra.mxu0 %v239
    %v450 = vpop.f32.mrf.mxu0
    %v451 = vadd.f32 %v257, %v450
    %v452 = vpop.f32.mrf.mxu0
    %453 = vmatprep.mubr.f32.mxu0 0.0
    %454 = vmatmul.mubr.f32.gmra.mxu0 %v240
    %v455 = vpop.f32.mrf.mxu0
    %v456 = vadd.f32 %v257, %v455
    %v457 = vpop.f32.mrf.mxu0
    %458 = vmatprep.mubr.f32.mxu0 0.0
    %459 = vmatmul.mubr.f32.gmra.mxu0 %v241
    %v460 = vpop.f32.mrf.mxu0
    %v461 = vadd.f32 %v257, %v460
    %v462 = vpop.f32.mrf.mxu0
    %463 = vmatprep.mubr.f32.mxu0 0.0
    %464 = vmatmul.mubr.f32.gmra.mxu0 %v242
    %v465 = vpop.f32.mrf.mxu0
    %v466 = vadd.f32 %v257, %v465
    %v467 = vpop.f32.mrf.mxu0
    %468 = vmatprep.mubr.f32.mxu0 0.0
    %469 = vmatmul.mubr.f32.gmra.mxu0 %v243
    %v470 = vpop.f32.mrf.mxu0
    %v471 = vadd.f32 %v257, %v470
    %v472 = vpop.f32.mrf.mxu0
    %473 = vmatprep.mubr.f32.mxu0 0.0
    %474 = vmatmul.mubr.f32.gmra.mxu0 %v244
    %v475 = vpop.f32.mrf.mxu0
    %v476 = vadd.f32 %v257, %v475
    %v477 = vpop.f32.mrf.mxu0
    %478 = vdwg.mxu0
    %479 = vst [vmem:[#allocation2] sm:$0xff] %v328
    %480 = vst [vmem:[#allocation2 + $0x8] sm:$0xff] %v330
    %481 = vst [vmem:[#allocation2 + $0x10] sm:$0xff] %v441
    %482 = vst [vmem:[#allocation2 + $0x18] sm:$0xff] %v334
    %483 = vst [vmem:[#allocation2 + $0x20] sm:$0xff] %v336
    %484 = vst [vmem:[#allocation2 + $0x28] sm:$0xff] %v446
    %485 = vst [vmem:[#allocation2 + $0x30] sm:$0xff] %v340
    %486 = vst [vmem:[#allocation2 + $0x38] sm:$0xff] %v342
    %487 = vst [vmem:[#allocation2 + $0x40] sm:$0xff] %v451
    %488 = vst [vmem:[#allocation2 + $0x48] sm:$0xff] %v346
    %489 = vst [vmem:[#allocation2 + $0x50] sm:$0xff] %v348
    %490 = vst [vmem:[#allocation2 + $0x58] sm:$0xff] %v456
    %491 = vst [vmem:[#allocation2 + $0x60] sm:$0xff] %v352
    %492 = vst [vmem:[#allocation2 + $0x68] sm:$0xff] %v354
    %493 = vst [vmem:[#allocation2 + $0x70] sm:$0xff] %v461
    %494 = vst [vmem:[#allocation2 + $0x78] sm:$0xff] %v358
    %495 = vst [vmem:[#allocation2 + $0x80] sm:$0xff] %v360
    %496 = vst [vmem:[#allocation2 + $0x88] sm:$0xff] %v466
    %497 = vst [vmem:[#allocation2 + $0x90] sm:$0xff] %v364
    %498 = vst [vmem:[#allocation2 + $0x98] sm:$0xff] %v366
    %499 = vst [vmem:[#allocation2 + $0xa0] sm:$0xff] %v471
    %500 = vst [vmem:[#allocation2 + $0xa8] sm:$0xff] %v370
    %501 = vst [vmem:[#allocation2 + $0xb0] sm:$0xff] %v372
    %502 = vst [vmem:[#allocation2 + $0xb8] sm:$0xff] %v476
    %v503 = vld [vmem:[#allocation2] sm:$0xff]
    %v504 = vld [vmem:[#allocation2 + $0x8] sm:$0xff]
    %v505 = vld [vmem:[#allocation2 + $0x10] sm:$0xff]
    %v507 = vlaneseq
    %v508 = vshrl.u32 %v507, 7
    %v509 = vsub.s32 0, %v508
    %v510 = vrot.slane %v236, %v509
    %v511 = vlaneseq
    %v512 = vshrl.u32 %v511, 7
    %v513 = vsub.s32 1, %v512
    %v514 = vrot.slane %v236, %v513
    %v515 = vlaneseq
    %v516 = vshrl.u32 %v515, 7
    %v517 = vsub.s32 2, %v516
    %v518 = vrot.slane %v236, %v517
    %522 = vmatprep.subr.mxu0 %v233
    %523 = vmatpush1.msra.mxu0 %v232
    %524 = vmatprep.subr.mxu0 %v230
    %525 = vmatpush1.msra.mxu0 %v229
    %526 = vmatprep.subr.mxu0 %v227
    %527 = vmatpush1.msra.mxu0 %v226
    %528 = vmatprep.subr.mxu0 %v224
    %529 = vmatpush1.msra.mxu0 %v223
    %530 = vmatprep.subr.mxu0 %v221
    %531 = vmatpush1.msra.mxu0 %v220
    %532 = vmatprep.subr.mxu0 %v218
    %533 = vmatpush1.msra.mxu0 %v217
    %534 = vmatprep.subr.mxu0 %v215
    %535 = vmatpush1.msra.mxu0 %v214
    %536 = vmatprep.subr.mxu0 %v212
    %537 = vmatpush1.msra.mxu0 %v211
    %538 = vmatprep.subr.mxu0 %v209
    %539 = vmatpush1.msra.mxu0 %v208
    %540 = vmatprep.subr.mxu0 %v206
    %541 = vmatpush1.msra.mxu0 %v205
    %542 = vmatprep.subr.mxu0 %v203
    %543 = vmatpush1.msra.mxu0 %v202
    %544 = vmatprep.subr.mxu0 %v200
    %545 = vmatpush1.msra.mxu0 %v199
    %546 = vmatprep.subr.mxu0 %v197
    %547 = vmatpush1.msra.mxu0 %v196
    %548 = vmatprep.subr.mxu0 %v194
    %549 = vmatpush1.msra.mxu0 %v193
    %550 = vmatprep.subr.mxu0 %v191
    %551 = vmatpush1.msra.mxu0 %v190
    %552 = vmatprep.subr.mxu0 %v188
    %553 = vmatpush1.msra.mxu0 %v187
    %554 = vmatprep.subr.mxu0 0.0
    %555 = vmatpush2.msra.mxu0 0.0
    %556 = vmatprep.subr.mxu0 0.0
    %557 = vmatpush2.msra.mxu0 0.0
    %558 = vmatprep.subr.mxu0 0.0
    %559 = vmatpush2.msra.mxu0 0.0
    %560 = vmatprep.subr.mxu0 0.0
    %561 = vmatpush2.msra.mxu0 0.0
    %562 = vmatprep.subr.mxu0 0.0
    %563 = vmatpush2.msra.mxu0 0.0
    %564 = vmatprep.subr.mxu0 0.0
    %565 = vmatpush2.msra.mxu0 0.0
    %566 = vmatprep.subr.mxu0 0.0
    %567 = vmatpush2.msra.mxu0 0.0
    %568 = vmatprep.subr.mxu0 0.0
    %569 = vmatpush2.msra.mxu0 0.0
    %570 = vmatprep.subr.mxu0 0.0
    %571 = vmatpush2.msra.mxu0 0.0
    %572 = vmatprep.subr.mxu0 0.0
    %573 = vmatpush2.msra.mxu0 0.0
    %574 = vmatprep.subr.mxu0 0.0
    %575 = vmatpush2.msra.mxu0 0.0
    %576 = vmatprep.subr.mxu0 0.0
    %577 = vmatpush2.msra.mxu0 0.0
    %578 = vmatprep.subr.mxu0 0.0
    %579 = vmatpush2.msra.mxu0 0.0
    %580 = vmatprep.subr.mxu0 0.0
    %581 = vmatpush2.msra.mxu0 0.0
    %582 = vmatprep.subr.mxu0 0.0
    %583 = vmatpush2.msra.mxu0 0.0
    %584 = vmatprep.subr.mxu0 0.0
    %585 = vmatpush2.msra.mxu0 0.0
    %586 = vmatprep.mubr.f32.mxu0 0.0
    %587 = vmatmul.mubr.f32.gmra.mxu0 0.0
    %v588 = vpop.f32.mrf.mxu0
    %v589 = vadd.f32 %v510, %v588
    %v590 = vpop.f32.mrf.mxu0
    %v591 = vadd.f32 %v514, %v590
    %592 = vdwg.mxu0
    %593 = vmatprep.subr.mxu0 0.0
    %594 = vmatpush1.msra.mxu0 %v234
    %595 = vmatprep.subr.mxu0 0.0
    %596 = vmatpush1.msra.mxu0 %v231
    %597 = vmatprep.subr.mxu0 0.0
    %598 = vmatpush1.msra.mxu0 %v228
    %599 = vmatprep.subr.mxu0 0.0
    %600 = vmatpush1.msra.mxu0 %v225
    %601 = vmatprep.subr.mxu0 0.0
    %602 = vmatpush1.msra.mxu0 %v222
    %603 = vmatprep.subr.mxu0 0.0
    %604 = vmatpush1.msra.mxu0 %v219
    %605 = vmatprep.subr.mxu0 0.0
    %606 = vmatpush1.msra.mxu0 %v216
    %607 = vmatprep.subr.mxu0 0.0
    %608 = vmatpush1.msra.mxu0 %v213
    %609 = vmatprep.subr.mxu0 0.0
    %610 = vmatpush1.msra.mxu0 %v210
    %611 = vmatprep.subr.mxu0 0.0
    %612 = vmatpush1.msra.mxu0 %v207
    %613 = vmatprep.subr.mxu0 0.0
    %614 = vmatpush1.msra.mxu0 %v204
    %615 = vmatprep.subr.mxu0 0.0
    %616 = vmatpush1.msra.mxu0 %v201
    %617 = vmatprep.subr.mxu0 0.0
    %618 = vmatpush1.msra.mxu0 %v198
    %619 = vmatprep.subr.mxu0 0.0
    %620 = vmatpush1.msra.mxu0 %v195
    %621 = vmatprep.subr.mxu0 0.0
    %622 = vmatpush1.msra.mxu0 %v192
    %623 = vmatprep.subr.mxu0 0.0
    %624 = vmatpush1.msra.mxu0 %v189
    %625 = vmatprep.subr.mxu0 0.0
    %626 = vmatpush2.msra.mxu0 0.0
    %627 = vmatprep.subr.mxu0 0.0
    %628 = vmatpush2.msra.mxu0 0.0
    %629 = vmatprep.subr.mxu0 0.0
    %630 = vmatpush2.msra.mxu0 0.0
    %631 = vmatprep.subr.mxu0 0.0
    %632 = vmatpush2.msra.mxu0 0.0
    %633 = vmatprep.subr.mxu0 0.0
    %634 = vmatpush2.msra.mxu0 0.0
    %635 = vmatprep.subr.mxu0 0.0
    %636 = vmatpush2.msra.mxu0 0.0
    %637 = vmatprep.subr.mxu0 0.0
    %638 = vmatpush2.msra.mxu0 0.0
    %639 = vmatprep.subr.mxu0 0.0
    %640 = vmatpush2.msra.mxu0 0.0
    %641 = vmatprep.subr.mxu0 0.0
    %642 = vmatpush2.msra.mxu0 0.0
    %643 = vmatprep.subr.mxu0 0.0
    %644 = vmatpush2.msra.mxu0 0.0
    %645 = vmatprep.subr.mxu0 0.0
    %646 = vmatpush2.msra.mxu0 0.0
    %647 = vmatprep.subr.mxu0 0.0
    %648 = vmatpush2.msra.mxu0 0.0
    %649 = vmatprep.subr.mxu0 0.0
    %650 = vmatpush2.msra.mxu0 0.0
    %651 = vmatprep.subr.mxu0 0.0
    %652 = vmatpush2.msra.mxu0 0.0
    %653 = vmatprep.subr.mxu0 0.0
    %654 = vmatpush2.msra.mxu0 0.0
    %655 = vmatprep.subr.mxu0 0.0
    %656 = vmatpush2.msra.mxu0 0.0
    %657 = vmatprep.mubr.f32.mxu0 0.0
    %658 = vmatmul.mubr.f32.gmra.mxu0 0.0
    %v659 = vpop.f32.mrf.mxu0
    %v660 = vadd.f32 %v518, %v659
    %v661 = vpop.f32.mrf.mxu0
    %662 = vdwg.mxu0
    %v663 = vadd.f32 %v503, %v589
    %v664 = vxor.u32 %v663, 2147483648
    %v665 = vmul.f32 %v664, 1.442695
    %v666 = vpow.pop %v665
    %v667 = vadd.f32 %v666, 1.0
    %v668 = vrcp.pop %v667
    %v669 = vmul.f32 1.0, %v668
    %v670 = vadd.f32 %v504, %v591
    %v671 = vxor.u32 %v670, 2147483648
    %v672 = vmul.f32 %v671, 1.442695
    %v673 = vpow.pop %v672
    %v674 = vadd.f32 %v673, 1.0
    %v675 = vrcp.pop %v674
    %v676 = vmul.f32 1.0, %v675
    %v677 = vmul.f32 %v669, %v660
    %v678 = vadd.f32 %v505, %v677
    %v679 = vtanh.pop %v678
    %v680 = vsub.f32 0.0, %v679
    %v681 = vmul.f32 %v676, %v680
    %v682 = vadd.f32 %v679, %v681
    %683 = vst [vmem:[#allocation3] sm:$0xff] %v682
    %s684 = scalar_lea.vmem [#allocation2], 24
    %v685 = vld [vmem:[%s684] sm:$0xff]
    %v686 = vld [vmem:[%s684 + $0x8] sm:$0xff]
    %v687 = vld [vmem:[%s684 + $0x10] sm:$0xff]
    %688 = vmatprep.subr.mxu0 %v233
    %689 = vmatpush1.msra.mxu0 %v232
    %690 = vmatprep.subr.mxu0 %v230
    %691 = vmatpush1.msra.mxu0 %v229
    %692 = vmatprep.subr.mxu0 %v227
    %693 = vmatpush1.msra.mxu0 %v226
    %694 = vmatprep.subr.mxu0 %v224
    %695 = vmatpush1.msra.mxu0 %v223
    %696 = vmatprep.subr.mxu0 %v221
    %697 = vmatpush1.msra.mxu0 %v220
    %698 = vmatprep.subr.mxu0 %v218
    %699 = vmatpush1.msra.mxu0 %v217
    %700 = vmatprep.subr.mxu0 %v215
    %701 = vmatpush1.msra.mxu0 %v214
    %702 = vmatprep.subr.mxu0 %v212
    %703 = vmatpush1.msra.mxu0 %v211
    %704 = vmatprep.subr.mxu0 %v209
    %705 = vmatpush1.msra.mxu0 %v208
    %706 = vmatprep.subr.mxu0 %v206
    %707 = vmatpush1.msra.mxu0 %v205
    %708 = vmatprep.subr.mxu0 %v203
    %709 = vmatpush1.msra.mxu0 %v202
    %710 = vmatprep.subr.mxu0 %v200
    %711 = vmatpush1.msra.mxu0 %v199
    %712 = vmatprep.subr.mxu0 %v197
    %713 = vmatpush1.msra.mxu0 %v196
    %714 = vmatprep.subr.mxu0 %v194
    %715 = vmatpush1.msra.mxu0 %v193
    %716 = vmatprep.subr.mxu0 %v191
    %717 = vmatpush1.msra.mxu0 %v190
    %718 = vmatprep.subr.mxu0 %v188
    %719 = vmatpush1.msra.mxu0 %v187
    %720 = vmatprep.subr.mxu0 0.0
    %721 = vmatpush2.msra.mxu0 0.0
    %722 = vmatprep.subr.mxu0 0.0
    %723 = vmatpush2.msra.mxu0 0.0
    %724 = vmatprep.subr.mxu0 0.0
    %725 = vmatpush2.msra.mxu0 0.0
    %726 = vmatprep.subr.mxu0 0.0
    %727 = vmatpush2.msra.mxu0 0.0
    %728 = vmatprep.subr.mxu0 0.0
    %729 = vmatpush2.msra.mxu0 0.0
    %730 = vmatprep.subr.mxu0 0.0
    %731 = vmatpush2.msra.mxu0 0.0
    %732 = vmatprep.subr.mxu0 0.0
    %733 = vmatpush2.msra.mxu0 0.0
    %734 = vmatprep.subr.mxu0 0.0
    %735 = vmatpush2.msra.mxu0 0.0
    %736 = vmatprep.subr.mxu0 0.0
    %737 = vmatpush2.msra.mxu0 0.0
    %738 = vmatprep.subr.mxu0 0.0
    %739 = vmatpush2.msra.mxu0 0.0
    %740 = vmatprep.subr.mxu0 0.0
    %741 = vmatpush2.msra.mxu0 0.0
    %742 = vmatprep.subr.mxu0 0.0
    %743 = vmatpush2.msra.mxu0 0.0
    %744 = vmatprep.subr.mxu0 0.0
    %745 = vmatpush2.msra.mxu0 0.0
    %746 = vmatprep.subr.mxu0 0.0
    %747 = vmatpush2.msra.mxu0 0.0
    %748 = vmatprep.subr.mxu0 0.0
    %749 = vmatpush2.msra.mxu0 0.0
    %750 = vmatprep.subr.mxu0 0.0
    %751 = vmatpush2.msra.mxu0 0.0
    %752 = vmatprep.mubr.f32.mxu0 0.0
    %753 = vmatmul.mubr.f32.gmra.mxu0 %v682
    %v754 = vpop.f32.mrf.mxu0
    %v755 = vadd.f32 %v510, %v754
    %v756 = vpop.f32.mrf.mxu0
    %v757 = vadd.f32 %v514, %v756
    %758 = vdwg.mxu0
    %759 = vmatprep.subr.mxu0 0.0
    %760 = vmatpush1.msra.mxu0 %v234
    %761 = vmatprep.subr.mxu0 0.0
    %762 = vmatpush1.msra.mxu0 %v231
    %763 = vmatprep.subr.mxu0 0.0
    %764 = vmatpush1.msra.mxu0 %v228
    %765 = vmatprep.subr.mxu0 0.0
    %766 = vmatpush1.msra.mxu0 %v225
    %767 = vmatprep.subr.mxu0 0.0
    %768 = vmatpush1.msra.mxu0 %v222
    %769 = vmatprep.subr.mxu0 0.0
    %770 = vmatpush1.msra.mxu0 %v219
    %771 = vmatprep.subr.mxu0 0.0
    %772 = vmatpush1.msra.mxu0 %v216
    %773 = vmatprep.subr.mxu0 0.0
    %774 = vmatpush1.msra.mxu0 %v213
    %775 = vmatprep.subr.mxu0 0.0
    %776 = vmatpush1.msra.mxu0 %v210
    %777 = vmatprep.subr.mxu0 0.0
    %778 = vmatpush1.msra.mxu0 %v207
    %779 = vmatprep.subr.mxu0 0.0
    %780 = vmatpush1.msra.mxu0 %v204
    %781 = vmatprep.subr.mxu0 0.0
    %782 = vmatpush1.msra.mxu0 %v201
    %783 = vmatprep.subr.mxu0 0.0
    %784 = vmatpush1.msra.mxu0 %v198
    %785 = vmatprep.subr.mxu0 0.0
    %786 = vmatpush1.msra.mxu0 %v195
    %787 = vmatprep.subr.mxu0 0.0
    %788 = vmatpush1.msra.mxu0 %v192
    %789 = vmatprep.subr.mxu0 0.0
    %790 = vmatpush1.msra.mxu0 %v189
    %791 = vmatprep.subr.mxu0 0.0
    %792 = vmatpush2.msra.mxu0 0.0
    %793 = vmatprep.subr.mxu0 0.0
    %794 = vmatpush2.msra.mxu0 0.0
    %795 = vmatprep.subr.mxu0 0.0
    %796 = vmatpush2.msra.mxu0 0.0
    %797 = vmatprep.subr.mxu0 0.0
    %798 = vmatpush2.msra.mxu0 0.0
    %799 = vmatprep.subr.mxu0 0.0
    %800 = vmatpush2.msra.mxu0 0.0
    %801 = vmatprep.subr.mxu0 0.0
    %802 = vmatpush2.msra.mxu0 0.0
    %803 = vmatprep.subr.mxu0 0.0
    %804 = vmatpush2.msra.mxu0 0.0
    %805 = vmatprep.subr.mxu0 0.0
    %806 = vmatpush2.msra.mxu0 0.0
    %807 = vmatprep.subr.mxu0 0.0
    %808 = vmatpush2.msra.mxu0 0.0
    %809 = vmatprep.subr.mxu0 0.0
    %810 = vmatpush2.msra.mxu0 0.0
    %811 = vmatprep.subr.mxu0 0.0
    %812 = vmatpush2.msra.mxu0 0.0
    %813 = vmatprep.subr.mxu0 0.0
    %814 = vmatpush2.msra.mxu0 0.0
    %815 = vmatprep.subr.mxu0 0.0
    %816 = vmatpush2.msra.mxu0 0.0
    %817 = vmatprep.subr.mxu0 0.0
    %818 = vmatpush2.msra.mxu0 0.0
    %819 = vmatprep.subr.mxu0 0.0
    %820 = vmatpush2.msra.mxu0 0.0
    %821 = vmatprep.subr.mxu0 0.0
    %822 = vmatpush2.msra.mxu0 0.0
    %823 = vmatprep.mubr.f32.mxu0 0.0
    %824 = vmatmul.mubr.f32.gmra.mxu0 %v682
    %v825 = vpop.f32.mrf.mxu0
    %v826 = vadd.f32 %v518, %v825
    %v827 = vpop.f32.mrf.mxu0
    %828 = vdwg.mxu0
    %v829 = vadd.f32 %v685, %v755
    %v830 = vxor.u32 %v829, 2147483648
    %v831 = vmul.f32 %v830, 1.442695
    %v832 = vpow.pop %v831
    %v833 = vadd.f32 %v832, 1.0
    %v834 = vrcp.pop %v833
    %v835 = vmul.f32 1.0, %v834
    %v836 = vadd.f32 %v686, %v757
    %v837 = vxor.u32 %v836, 2147483648
    %v838 = vmul.f32 %v837, 1.442695
    %v839 = vpow.pop %v838
    %v840 = vadd.f32 %v839, 1.0
    %v841 = vrcp.pop %v840
    %v842 = vmul.f32 1.0, %v841
    %v843 = vmul.f32 %v835, %v826
    %v844 = vadd.f32 %v687, %v843
    %v845 = vtanh.pop %v844
    %v846 = vsub.f32 %v682, %v845
    %v847 = vmul.f32 %v842, %v846
    %v848 = vadd.f32 %v845, %v847
    %s849 = scalar_lea.vmem [#allocation3], 8
    %850 = vst [vmem:[%s849] sm:$0xff] %v848
    %s851 = scalar_lea.vmem [#allocation2], 48
    %v852 = vld [vmem:[%s851] sm:$0xff]
    %v853 = vld [vmem:[%s851 + $0x8] sm:$0xff]
    %v854 = vld [vmem:[%s851 + $0x10] sm:$0xff]
    %855 = vmatprep.subr.mxu0 %v233
    %856 = vmatpush1.msra.mxu0 %v232
    %857 = vmatprep.subr.mxu0 %v230
    %858 = vmatpush1.msra.mxu0 %v229
    %859 = vmatprep.subr.mxu0 %v227
    %860 = vmatpush1.msra.mxu0 %v226
    %861 = vmatprep.subr.mxu0 %v224
    %862 = vmatpush1.msra.mxu0 %v223
    %863 = vmatprep.subr.mxu0 %v221
    %864 = vmatpush1.msra.mxu0 %v220
    %865 = vmatprep.subr.mxu0 %v218
    %866 = vmatpush1.msra.mxu0 %v217
    %867 = vmatprep.subr.mxu0 %v215
    %868 = vmatpush1.msra.mxu0 %v214
    %869 = vmatprep.subr.mxu0 %v212
    %870 = vmatpush1.msra.mxu0 %v211
    %871 = vmatprep.subr.mxu0 %v209
    %872 = vmatpush1.msra.mxu0 %v208
    %873 = vmatprep.subr.mxu0 %v206
    %874 = vmatpush1.msra.mxu0 %v205
    %875 = vmatprep.subr.mxu0 %v203
    %876 = vmatpush1.msra.mxu0 %v202
    %877 = vmatprep.subr.mxu0 %v200
    %878 = vmatpush1.msra.mxu0 %v199
    %879 = vmatprep.subr.mxu0 %v197
    %880 = vmatpush1.msra.mxu0 %v196
    %881 = vmatprep.subr.mxu0 %v194
    %882 = vmatpush1.msra.mxu0 %v193
    %883 = vmatprep.subr.mxu0 %v191
    %884 = vmatpush1.msra.mxu0 %v190
    %885 = vmatprep.subr.mxu0 %v188
    %886 = vmatpush1.msra.mxu0 %v187
    %887 = vmatprep.subr.mxu0 0.0
    %888 = vmatpush2.msra.mxu0 0.0
    %889 = vmatprep.subr.mxu0 0.0
    %890 = vmatpush2.msra.mxu0 0.0
    %891 = vmatprep.subr.mxu0 0.0
    %892 = vmatpush2.msra.mxu0 0.0
    %893 = vmatprep.subr.mxu0 0.0
    %894 = vmatpush2.msra.mxu0 0.0
    %895 = vmatprep.subr.mxu0 0.0
    %896 = vmatpush2.msra.mxu0 0.0
    %897 = vmatprep.subr.mxu0 0.0
    %898 = vmatpush2.msra.mxu0 0.0
    %899 = vmatprep.subr.mxu0 0.0
    %900 = vmatpush2.msra.mxu0 0.0
    %901 = vmatprep.subr.mxu0 0.0
    %902 = vmatpush2.msra.mxu0 0.0
    %903 = vmatprep.subr.mxu0 0.0
    %904 = vmatpush2.msra.mxu0 0.0
    %905 = vmatprep.subr.mxu0 0.0
    %906 = vmatpush2.msra.mxu0 0.0
    %907 = vmatprep.subr.mxu0 0.0
    %908 = vmatpush2.msra.mxu0 0.0
    %909 = vmatprep.subr.mxu0 0.0
    %910 = vmatpush2.msra.mxu0 0.0
    %911 = vmatprep.subr.mxu0 0.0
    %912 = vmatpush2.msra.mxu0 0.0
    %913 = vmatprep.subr.mxu0 0.0
    %914 = vmatpush2.msra.mxu0 0.0
    %915 = vmatprep.subr.mxu0 0.0
    %916 = vmatpush2.msra.mxu0 0.0
    %917 = vmatprep.subr.mxu0 0.0
    %918 = vmatpush2.msra.mxu0 0.0
    %919 = vmatprep.mubr.f32.mxu0 0.0
    %920 = vmatmul.mubr.f32.gmra.mxu0 %v848
    %v921 = vpop.f32.mrf.mxu0
    %v922 = vadd.f32 %v510, %v921
    %v923 = vpop.f32.mrf.mxu0
    %v924 = vadd.f32 %v514, %v923
    %925 = vdwg.mxu0
    %926 = vmatprep.subr.mxu0 0.0
    %927 = vmatpush1.msra.mxu0 %v234
    %928 = vmatprep.subr.mxu0 0.0
    %929 = vmatpush1.msra.mxu0 %v231
    %930 = vmatprep.subr.mxu0 0.0
    %931 = vmatpush1.msra.mxu0 %v228
    %932 = vmatprep.subr.mxu0 0.0
    %933 = vmatpush1.msra.mxu0 %v225
    %934 = vmatprep.subr.mxu0 0.0
    %935 = vmatpush1.msra.mxu0 %v222
    %936 = vmatprep.subr.mxu0 0.0
    %937 = vmatpush1.msra.mxu0 %v219
    %938 = vmatprep.subr.mxu0 0.0
    %939 = vmatpush1.msra.mxu0 %v216
    %940 = vmatprep.subr.mxu0 0.0
    %941 = vmatpush1.msra.mxu0 %v213
    %942 = vmatprep.subr.mxu0 0.0
    %943 = vmatpush1.msra.mxu0 %v210
    %944 = vmatprep.subr.mxu0 0.0
    %945 = vmatpush1.msra.mxu0 %v207
    %946 = vmatprep.subr.mxu0 0.0
    %947 = vmatpush1.msra.mxu0 %v204
    %948 = vmatprep.subr.mxu0 0.0
    %949 = vmatpush1.msra.mxu0 %v201
    %950 = vmatprep.subr.mxu0 0.0
    %951 = vmatpush1.msra.mxu0 %v198
    %952 = vmatprep.subr.mxu0 0.0
    %953 = vmatpush1.msra.mxu0 %v195
    %954 = vmatprep.subr.mxu0 0.0
    %955 = vmatpush1.msra.mxu0 %v192
    %956 = vmatprep.subr.mxu0 0.0
    %957 = vmatpush1.msra.mxu0 %v189
    %958 = vmatprep.subr.mxu0 0.0
    %959 = vmatpush2.msra.mxu0 0.0
    %960 = vmatprep.subr.mxu0 0.0
    %961 = vmatpush2.msra.mxu0 0.0
    %962 = vmatprep.subr.mxu0 0.0
    %963 = vmatpush2.msra.mxu0 0.0
    %964 = vmatprep.subr.mxu0 0.0
    %965 = vmatpush2.msra.mxu0 0.0
    %966 = vmatprep.subr.mxu0 0.0
    %967 = vmatpush2.msra.mxu0 0.0
    %968 = vmatprep.subr.mxu0 0.0
    %969 = vmatpush2.msra.mxu0 0.0
    %970 = vmatprep.subr.mxu0 0.0
    %971 = vmatpush2.msra.mxu0 0.0
    %972 = vmatprep.subr.mxu0 0.0
    %973 = vmatpush2.msra.mxu0 0.0
    %974 = vmatprep.subr.mxu0 0.0
    %975 = vmatpush2.msra.mxu0 0.0
    %976 = vmatprep.subr.mxu0 0.0
    %977 = vmatpush2.msra.mxu0 0.0
    %978 = vmatprep.subr.mxu0 0.0
    %979 = vmatpush2.msra.mxu0 0.0
    %980 = vmatprep.subr.mxu0 0.0
    %981 = vmatpush2.msra.mxu0 0.0
    %982 = vmatprep.subr.mxu0 0.0
    %983 = vmatpush2.msra.mxu0 0.0
    %984 = vmatprep.subr.mxu0 0.0
    %985 = vmatpush2.msra.mxu0 0.0
    %986 = vmatprep.subr.mxu0 0.0
    %987 = vmatpush2.msra.mxu0 0.0
    %988 = vmatprep.subr.mxu0 0.0
    %989 = vmatpush2.msra.mxu0 0.0
    %990 = vmatprep.mubr.f32.mxu0 0.0
    %991 = vmatmul.mubr.f32.gmra.mxu0 %v848
    %v992 = vpop.f32.mrf.mxu0
    %v993 = vadd.f32 %v518, %v992
    %v994 = vpop.f32.mrf.mxu0
    %995 = vdwg.mxu0
    %v996 = vadd.f32 %v852, %v922
    %v997 = vxor.u32 %v996, 2147483648
    %v998 = vmul.f32 %v997, 1.442695
    %v999 = vpow.pop %v998
    %v1000 = vadd.f32 %v999, 1.0
    %v1001 = vrcp.pop %v1000
    %v1002 = vmul.f32 1.0, %v1001
    %v1003 = vadd.f32 %v853, %v924
    %v1004 = vxor.u32 %v1003, 2147483648
    %v1005 = vmul.f32 %v1004, 1.442695
    %v1006 = vpow.pop %v1005
    %v1007 = vadd.f32 %v1006, 1.0
    %v1008 = vrcp.pop %v1007
    %v1009 = vmul.f32 1.0, %v1008
    %v1010 = vmul.f32 %v1002, %v993
    %v1011 = vadd.f32 %v854, %v1010
    %v1012 = vtanh.pop %v1011
    %v1013 = vsub.f32 %v848, %v1012
    %v1014 = vmul.f32 %v1009, %v1013
    %v1015 = vadd.f32 %v1012, %v1014
    %s1016 = scalar_lea.vmem [#allocation3], 16
    %1017 = vst [vmem:[%s1016] sm:$0xff] %v1015
    %s1018 = scalar_lea.vmem [#allocation2], 72
    %v1019 = vld [vmem:[%s1018] sm:$0xff]
    %v1020 = vld [vmem:[%s1018 + $0x8] sm:$0xff]
    %v1021 = vld [vmem:[%s1018 + $0x10] sm:$0xff]
    %1022 = vmatprep.subr.mxu0 %v233
    %1023 = vmatpush1.msra.mxu0 %v232
    %1024 = vmatprep.subr.mxu0 %v230
    %1025 = vmatpush1.msra.mxu0 %v229
    %1026 = vmatprep.subr.mxu0 %v227
    %1027 = vmatpush1.msra.mxu0 %v226
    %1028 = vmatprep.subr.mxu0 %v224
    %1029 = vmatpush1.msra.mxu0 %v223
    %1030 = vmatprep.subr.mxu0 %v221
    %1031 = vmatpush1.msra.mxu0 %v220
    %1032 = vmatprep.subr.mxu0 %v218
    %1033 = vmatpush1.msra.mxu0 %v217
    %1034 = vmatprep.subr.mxu0 %v215
    %1035 = vmatpush1.msra.mxu0 %v214
    %1036 = vmatprep.subr.mxu0 %v212
    %1037 = vmatpush1.msra.mxu0 %v211
    %1038 = vmatprep.subr.mxu0 %v209
    %1039 = vmatpush1.msra.mxu0 %v208
    %1040 = vmatprep.subr.mxu0 %v206
    %1041 = vmatpush1.msra.mxu0 %v205
    %1042 = vmatprep.subr.mxu0 %v203
    %1043 = vmatpush1.msra.mxu0 %v202
    %1044 = vmatprep.subr.mxu0 %v200
    %1045 = vmatpush1.msra.mxu0 %v199
    %1046 = vmatprep.subr.mxu0 %v197
    %1047 = vmatpush1.msra.mxu0 %v196
    %1048 = vmatprep.subr.mxu0 %v194
    %1049 = vmatpush1.msra.mxu0 %v193
    %1050 = vmatprep.subr.mxu0 %v191
    %1051 = vmatpush1.msra.mxu0 %v190
    %1052 = vmatprep.subr.mxu0 %v188
    %1053 = vmatpush1.msra.mxu0 %v187
    %1054 = vmatprep.subr.mxu0 0.0
    %1055 = vmatpush2.msra.mxu0 0.0
    %1056 = vmatprep.subr.mxu0 0.0
    %1057 = vmatpush2.msra.mxu0 0.0
    %1058 = vmatprep.subr.mxu0 0.0
    %1059 = vmatpush2.msra.mxu0 0.0
    %1060 = vmatprep.subr.mxu0 0.0
    %1061 = vmatpush2.msra.mxu0 0.0
    %1062 = vmatprep.subr.mxu0 0.0
    %1063 = vmatpush2.msra.mxu0 0.0
    %1064 = vmatprep.subr.mxu0 0.0
    %1065 = vmatpush2.msra.mxu0 0.0
    %1066 = vmatprep.subr.mxu0 0.0
    %1067 = vmatpush2.msra.mxu0 0.0
    %1068 = vmatprep.subr.mxu0 0.0
    %1069 = vmatpush2.msra.mxu0 0.0
    %1070 = vmatprep.subr.mxu0 0.0
    %1071 = vmatpush2.msra.mxu0 0.0
    %1072 = vmatprep.subr.mxu0 0.0
    %1073 = vmatpush2.msra.mxu0 0.0
    %1074 = vmatprep.subr.mxu0 0.0
    %1075 = vmatpush2.msra.mxu0 0.0
    %1076 = vmatprep.subr.mxu0 0.0
    %1077 = vmatpush2.msra.mxu0 0.0
    %1078 = vmatprep.subr.mxu0 0.0
    %1079 = vmatpush2.msra.mxu0 0.0
    %1080 = vmatprep.subr.mxu0 0.0
    %1081 = vmatpush2.msra.mxu0 0.0
    %1082 = vmatprep.subr.mxu0 0.0
    %1083 = vmatpush2.msra.mxu0 0.0
    %1084 = vmatprep.subr.mxu0 0.0
    %1085 = vmatpush2.msra.mxu0 0.0
    %1086 = vmatprep.mubr.f32.mxu0 0.0
    %1087 = vmatmul.mubr.f32.gmra.mxu0 %v1015
    %v1088 = vpop.f32.mrf.mxu0
    %v1089 = vadd.f32 %v510, %v1088
    %v1090 = vpop.f32.mrf.mxu0
    %v1091 = vadd.f32 %v514, %v1090
    %1092 = vdwg.mxu0
    %1093 = vmatprep.subr.mxu0 0.0
    %1094 = vmatpush1.msra.mxu0 %v234
    %1095 = vmatprep.subr.mxu0 0.0
    %1096 = vmatpush1.msra.mxu0 %v231
    %1097 = vmatprep.subr.mxu0 0.0
    %1098 = vmatpush1.msra.mxu0 %v228
    %1099 = vmatprep.subr.mxu0 0.0
    %1100 = vmatpush1.msra.mxu0 %v225
    %1101 = vmatprep.subr.mxu0 0.0
    %1102 = vmatpush1.msra.mxu0 %v222
    %1103 = vmatprep.subr.mxu0 0.0
    %1104 = vmatpush1.msra.mxu0 %v219
    %1105 = vmatprep.subr.mxu0 0.0
    %1106 = vmatpush1.msra.mxu0 %v216
    %1107 = vmatprep.subr.mxu0 0.0
    %1108 = vmatpush1.msra.mxu0 %v213
    %1109 = vmatprep.subr.mxu0 0.0
    %1110 = vmatpush1.msra.mxu0 %v210
    %1111 = vmatprep.subr.mxu0 0.0
    %1112 = vmatpush1.msra.mxu0 %v207
    %1113 = vmatprep.subr.mxu0 0.0
    %1114 = vmatpush1.msra.mxu0 %v204
    %1115 = vmatprep.subr.mxu0 0.0
    %1116 = vmatpush1.msra.mxu0 %v201
    %1117 = vmatprep.subr.mxu0 0.0
    %1118 = vmatpush1.msra.mxu0 %v198
    %1119 = vmatprep.subr.mxu0 0.0
    %1120 = vmatpush1.msra.mxu0 %v195
    %1121 = vmatprep.subr.mxu0 0.0
    %1122 = vmatpush1.msra.mxu0 %v192
    %1123 = vmatprep.subr.mxu0 0.0
    %1124 = vmatpush1.msra.mxu0 %v189
    %1125 = vmatprep.subr.mxu0 0.0
    %1126 = vmatpush2.msra.mxu0 0.0
    %1127 = vmatprep.subr.mxu0 0.0
    %1128 = vmatpush2.msra.mxu0 0.0
    %1129 = vmatprep.subr.mxu0 0.0
    %1130 = vmatpush2.msra.mxu0 0.0
    %1131 = vmatprep.subr.mxu0 0.0
    %1132 = vmatpush2.msra.mxu0 0.0
    %1133 = vmatprep.subr.mxu0 0.0
    %1134 = vmatpush2.msra.mxu0 0.0
    %1135 = vmatprep.subr.mxu0 0.0
    %1136 = vmatpush2.msra.mxu0 0.0
    %1137 = vmatprep.subr.mxu0 0.0
    %1138 = vmatpush2.msra.mxu0 0.0
    %1139 = vmatprep.subr.mxu0 0.0
    %1140 = vmatpush2.msra.mxu0 0.0
    %1141 = vmatprep.subr.mxu0 0.0
    %1142 = vmatpush2.msra.mxu0 0.0
    %1143 = vmatprep.subr.mxu0 0.0
    %1144 = vmatpush2.msra.mxu0 0.0
    %1145 = vmatprep.subr.mxu0 0.0
    %1146 = vmatpush2.msra.mxu0 0.0
    %1147 = vmatprep.subr.mxu0 0.0
    %1148 = vmatpush2.msra.mxu0 0.0
    %1149 = vmatprep.subr.mxu0 0.0
    %1150 = vmatpush2.msra.mxu0 0.0
    %1151 = vmatprep.subr.mxu0 0.0
    %1152 = vmatpush2.msra.mxu0 0.0
    %1153 = vmatprep.subr.mxu0 0.0
    %1154 = vmatpush2.msra.mxu0 0.0
    %1155 = vmatprep.subr.mxu0 0.0
    %1156 = vmatpush2.msra.mxu0 0.0
    %1157 = vmatprep.mubr.f32.mxu0 0.0
    %1158 = vmatmul.mubr.f32.gmra.mxu0 %v1015
    %v1159 = vpop.f32.mrf.mxu0
    %v1160 = vadd.f32 %v518, %v1159
    %v1161 = vpop.f32.mrf.mxu0
    %1162 = vdwg.mxu0
    %v1163 = vadd.f32 %v1019, %v1089
    %v1164 = vxor.u32 %v1163, 2147483648
    %v1165 = vmul.f32 %v1164, 1.442695
    %v1166 = vpow.pop %v1165
    %v1167 = vadd.f32 %v1166, 1.0
    %v1168 = vrcp.pop %v1167
    %v1169 = vmul.f32 1.0, %v1168
    %v1170 = vadd.f32 %v1020, %v1091
    %v1171 = vxor.u32 %v1170, 2147483648
    %v1172 = vmul.f32 %v1171, 1.442695
    %v1173 = vpow.pop %v1172
    %v1174 = vadd.f32 %v1173, 1.0
    %v1175 = vrcp.pop %v1174
    %v1176 = vmul.f32 1.0, %v1175
    %v1177 = vmul.f32 %v1169, %v1160
    %v1178 = vadd.f32 %v1021, %v1177
    %v1179 = vtanh.pop %v1178
    %v1180 = vsub.f32 %v1015, %v1179
    %v1181 = vmul.f32 %v1176, %v1180
    %v1182 = vadd.f32 %v1179, %v1181
    %s1183 = scalar_lea.vmem [#allocation3], 24
    %1184 = vst [vmem:[%s1183] sm:$0xff] %v1182
    %s1185 = scalar_lea.vmem [#allocation2], 96
    %v1186 = vld [vmem:[%s1185] sm:$0xff]
    %v1187 = vld [vmem:[%s1185 + $0x8] sm:$0xff]
    %v1188 = vld [vmem:[%s1185 + $0x10] sm:$0xff]
    %1189 = vmatprep.subr.mxu0 %v233
    %1190 = vmatpush1.msra.mxu0 %v232
    %1191 = vmatprep.subr.mxu0 %v230
    %1192 = vmatpush1.msra.mxu0 %v229
    %1193 = vmatprep.subr.mxu0 %v227
    %1194 = vmatpush1.msra.mxu0 %v226
    %1195 = vmatprep.subr.mxu0 %v224
    %1196 = vmatpush1.msra.mxu0 %v223
    %1197 = vmatprep.subr.mxu0 %v221
    %1198 = vmatpush1.msra.mxu0 %v220
    %1199 = vmatprep.subr.mxu0 %v218
    %1200 = vmatpush1.msra.mxu0 %v217
    %1201 = vmatprep.subr.mxu0 %v215
    %1202 = vmatpush1.msra.mxu0 %v214
    %1203 = vmatprep.subr.mxu0 %v212
    %1204 = vmatpush1.msra.mxu0 %v211
    %1205 = vmatprep.subr.mxu0 %v209
    %1206 = vmatpush1.msra.mxu0 %v208
    %1207 = vmatprep.subr.mxu0 %v206
    %1208 = vmatpush1.msra.mxu0 %v205
    %1209 = vmatprep.subr.mxu0 %v203
    %1210 = vmatpush1.msra.mxu0 %v202
    %1211 = vmatprep.subr.mxu0 %v200
    %1212 = vmatpush1.msra.mxu0 %v199
    %1213 = vmatprep.subr.mxu0 %v197
    %1214 = vmatpush1.msra.mxu0 %v196
    %1215 = vmatprep.subr.mxu0 %v194
    %1216 = vmatpush1.msra.mxu0 %v193
    %1217 = vmatprep.subr.mxu0 %v191
    %1218 = vmatpush1.msra.mxu0 %v190
    %1219 = vmatprep.subr.mxu0 %v188
    %1220 = vmatpush1.msra.mxu0 %v187
    %1221 = vmatprep.subr.mxu0 0.0
    %1222 = vmatpush2.msra.mxu0 0.0
    %1223 = vmatprep.subr.mxu0 0.0
    %1224 = vmatpush2.msra.mxu0 0.0
    %1225 = vmatprep.subr.mxu0 0.0
    %1226 = vmatpush2.msra.mxu0 0.0
    %1227 = vmatprep.subr.mxu0 0.0
    %1228 = vmatpush2.msra.mxu0 0.0
    %1229 = vmatprep.subr.mxu0 0.0
    %1230 = vmatpush2.msra.mxu0 0.0
    %1231 = vmatprep.subr.mxu0 0.0
    %1232 = vmatpush2.msra.mxu0 0.0
    %1233 = vmatprep.subr.mxu0 0.0
    %1234 = vmatpush2.msra.mxu0 0.0
    %1235 = vmatprep.subr.mxu0 0.0
    %1236 = vmatpush2.msra.mxu0 0.0
    %1237 = vmatprep.subr.mxu0 0.0
    %1238 = vmatpush2.msra.mxu0 0.0
    %1239 = vmatprep.subr.mxu0 0.0
    %1240 = vmatpush2.msra.mxu0 0.0
    %1241 = vmatprep.subr.mxu0 0.0
    %1242 = vmatpush2.msra.mxu0 0.0
    %1243 = vmatprep.subr.mxu0 0.0
    %1244 = vmatpush2.msra.mxu0 0.0
    %1245 = vmatprep.subr.mxu0 0.0
    %1246 = vmatpush2.msra.mxu0 0.0
    %1247 = vmatprep.subr.mxu0 0.0
    %1248 = vmatpush2.msra.mxu0 0.0
    %1249 = vmatprep.subr.mxu0 0.0
    %1250 = vmatpush2.msra.mxu0 0.0
    %1251 = vmatprep.subr.mxu0 0.0
    %1252 = vmatpush2.msra.mxu0 0.0
    %1253 = vmatprep.mubr.f32.mxu0 0.0
    %1254 = vmatmul.mubr.f32.gmra.mxu0 %v1182
    %v1255 = vpop.f32.mrf.mxu0
    %v1256 = vadd.f32 %v510, %v1255
    %v1257 = vpop.f32.mrf.mxu0
    %v1258 = vadd.f32 %v514, %v1257
    %1259 = vdwg.mxu0
    %1260 = vmatprep.subr.mxu0 0.0
    %1261 = vmatpush1.msra.mxu0 %v234
    %1262 = vmatprep.subr.mxu0 0.0
    %1263 = vmatpush1.msra.mxu0 %v231
    %1264 = vmatprep.subr.mxu0 0.0
    %1265 = vmatpush1.msra.mxu0 %v228
    %1266 = vmatprep.subr.mxu0 0.0
    %1267 = vmatpush1.msra.mxu0 %v225
    %1268 = vmatprep.subr.mxu0 0.0
    %1269 = vmatpush1.msra.mxu0 %v222
    %1270 = vmatprep.subr.mxu0 0.0
    %1271 = vmatpush1.msra.mxu0 %v219
    %1272 = vmatprep.subr.mxu0 0.0
    %1273 = vmatpush1.msra.mxu0 %v216
    %1274 = vmatprep.subr.mxu0 0.0
    %1275 = vmatpush1.msra.mxu0 %v213
    %1276 = vmatprep.subr.mxu0 0.0
    %1277 = vmatpush1.msra.mxu0 %v210
    %1278 = vmatprep.subr.mxu0 0.0
    %1279 = vmatpush1.msra.mxu0 %v207
    %1280 = vmatprep.subr.mxu0 0.0
    %1281 = vmatpush1.msra.mxu0 %v204
    %1282 = vmatprep.subr.mxu0 0.0
    %1283 = vmatpush1.msra.mxu0 %v201
    %1284 = vmatprep.subr.mxu0 0.0
    %1285 = vmatpush1.msra.mxu0 %v198
    %1286 = vmatprep.subr.mxu0 0.0
    %1287 = vmatpush1.msra.mxu0 %v195
    %1288 = vmatprep.subr.mxu0 0.0
    %1289 = vmatpush1.msra.mxu0 %v192
    %1290 = vmatprep.subr.mxu0 0.0
    %1291 = vmatpush1.msra.mxu0 %v189
    %1292 = vmatprep.subr.mxu0 0.0
    %1293 = vmatpush2.msra.mxu0 0.0
    %1294 = vmatprep.subr.mxu0 0.0
    %1295 = vmatpush2.msra.mxu0 0.0
    %1296 = vmatprep.subr.mxu0 0.0
    %1297 = vmatpush2.msra.mxu0 0.0
    %1298 = vmatprep.subr.mxu0 0.0
    %1299 = vmatpush2.msra.mxu0 0.0
    %1300 = vmatprep.subr.mxu0 0.0
    %1301 = vmatpush2.msra.mxu0 0.0
    %1302 = vmatprep.subr.mxu0 0.0
    %1303 = vmatpush2.msra.mxu0 0.0
    %1304 = vmatprep.subr.mxu0 0.0
    %1305 = vmatpush2.msra.mxu0 0.0
    %1306 = vmatprep.subr.mxu0 0.0
    %1307 = vmatpush2.msra.mxu0 0.0
    %1308 = vmatprep.subr.mxu0 0.0
    %1309 = vmatpush2.msra.mxu0 0.0
    %1310 = vmatprep.subr.mxu0 0.0
    %1311 = vmatpush2.msra.mxu0 0.0
    %1312 = vmatprep.subr.mxu0 0.0
    %1313 = vmatpush2.msra.mxu0 0.0
    %1314 = vmatprep.subr.mxu0 0.0
    %1315 = vmatpush2.msra.mxu0 0.0
    %1316 = vmatprep.subr.mxu0 0.0
    %1317 = vmatpush2.msra.mxu0 0.0
    %1318 = vmatprep.subr.mxu0 0.0
    %1319 = vmatpush2.msra.mxu0 0.0
    %1320 = vmatprep.subr.mxu0 0.0
    %1321 = vmatpush2.msra.mxu0 0.0
    %1322 = vmatprep.subr.mxu0 0.0
    %1323 = vmatpush2.msra.mxu0 0.0
    %1324 = vmatprep.mubr.f32.mxu0 0.0
    %1325 = vmatmul.mubr.f32.gmra.mxu0 %v1182
    %v1326 = vpop.f32.mrf.mxu0
    %v1327 = vadd.f32 %v518, %v1326
    %v1328 = vpop.f32.mrf.mxu0
    %1329 = vdwg.mxu0
    %v1330 = vadd.f32 %v1186, %v1256
    %v1331 = vxor.u32 %v1330, 2147483648
    %v1332 = vmul.f32 %v1331, 1.442695
    %v1333 = vpow.pop %v1332
    %v1334 = vadd.f32 %v1333, 1.0
    %v1335 = vrcp.pop %v1334
    %v1336 = vmul.f32 1.0, %v1335
    %v1337 = vadd.f32 %v1187, %v1258
    %v1338 = vxor.u32 %v1337, 2147483648
    %v1339 = vmul.f32 %v1338, 1.442695
    %v1340 = vpow.pop %v1339
    %v1341 = vadd.f32 %v1340, 1.0
    %v1342 = vrcp.pop %v1341
    %v1343 = vmul.f32 1.0, %v1342
    %v1344 = vmul.f32 %v1336, %v1327
    %v1345 = vadd.f32 %v1188, %v1344
    %v1346 = vtanh.pop %v1345
    %v1347 = vsub.f32 %v1182, %v1346
    %v1348 = vmul.f32 %v1343, %v1347
    %v1349 = vadd.f32 %v1346, %v1348
    %s1350 = scalar_lea.vmem [#allocation3], 32
    %1351 = vst [vmem:[%s1350] sm:$0xff] %v1349
    %s1352 = scalar_lea.vmem [#allocation2], 120
    %v1353 = vld [vmem:[%s1352] sm:$0xff]
    %v1354 = vld [vmem:[%s1352 + $0x8] sm:$0xff]
    %v1355 = vld [vmem:[%s1352 + $0x10] sm:$0xff]
    %1356 = vmatprep.subr.mxu0 %v233
    %1357 = vmatpush1.msra.mxu0 %v232
    %1358 = vmatprep.subr.mxu0 %v230
    %1359 = vmatpush1.msra.mxu0 %v229
    %1360 = vmatprep.subr.mxu0 %v227
    %1361 = vmatpush1.msra.mxu0 %v226
    %1362 = vmatprep.subr.mxu0 %v224
    %1363 = vmatpush1.msra.mxu0 %v223
    %1364 = vmatprep.subr.mxu0 %v221
    %1365 = vmatpush1.msra.mxu0 %v220
    %1366 = vmatprep.subr.mxu0 %v218
    %1367 = vmatpush1.msra.mxu0 %v217
    %1368 = vmatprep.subr.mxu0 %v215
    %1369 = vmatpush1.msra.mxu0 %v214
    %1370 = vmatprep.subr.mxu0 %v212
    %1371 = vmatpush1.msra.mxu0 %v211
    %1372 = vmatprep.subr.mxu0 %v209
    %1373 = vmatpush1.msra.mxu0 %v208
    %1374 = vmatprep.subr.mxu0 %v206
    %1375 = vmatpush1.msra.mxu0 %v205
    %1376 = vmatprep.subr.mxu0 %v203
    %1377 = vmatpush1.msra.mxu0 %v202
    %1378 = vmatprep.subr.mxu0 %v200
    %1379 = vmatpush1.msra.mxu0 %v199
    %1380 = vmatprep.subr.mxu0 %v197
    %1381 = vmatpush1.msra.mxu0 %v196
    %1382 = vmatprep.subr.mxu0 %v194
    %1383 = vmatpush1.msra.mxu0 %v193
    %1384 = vmatprep.subr.mxu0 %v191
    %1385 = vmatpush1.msra.mxu0 %v190
    %1386 = vmatprep.subr.mxu0 %v188
    %1387 = vmatpush1.msra.mxu0 %v187
    %1388 = vmatprep.subr.mxu0 0.0
    %1389 = vmatpush2.msra.mxu0 0.0
    %1390 = vmatprep.subr.mxu0 0.0
    %1391 = vmatpush2.msra.mxu0 0.0
    %1392 = vmatprep.subr.mxu0 0.0
    %1393 = vmatpush2.msra.mxu0 0.0
    %1394 = vmatprep.subr.mxu0 0.0
    %1395 = vmatpush2.msra.mxu0 0.0
    %1396 = vmatprep.subr.mxu0 0.0
    %1397 = vmatpush2.msra.mxu0 0.0
    %1398 = vmatprep.subr.mxu0 0.0
    %1399 = vmatpush2.msra.mxu0 0.0
    %1400 = vmatprep.subr.mxu0 0.0
    %1401 = vmatpush2.msra.mxu0 0.0
    %1402 = vmatprep.subr.mxu0 0.0
    %1403 = vmatpush2.msra.mxu0 0.0
    %1404 = vmatprep.subr.mxu0 0.0
    %1405 = vmatpush2.msra.mxu0 0.0
    %1406 = vmatprep.subr.mxu0 0.0
    %1407 = vmatpush2.msra.mxu0 0.0
    %1408 = vmatprep.subr.mxu0 0.0
    %1409 = vmatpush2.msra.mxu0 0.0
    %1410 = vmatprep.subr.mxu0 0.0
    %1411 = vmatpush2.msra.mxu0 0.0
    %1412 = vmatprep.subr.mxu0 0.0
    %1413 = vmatpush2.msra.mxu0 0.0
    %1414 = vmatprep.subr.mxu0 0.0
    %1415 = vmatpush2.msra.mxu0 0.0
    %1416 = vmatprep.subr.mxu0 0.0
    %1417 = vmatpush2.msra.mxu0 0.0
    %1418 = vmatprep.subr.mxu0 0.0
    %1419 = vmatpush2.msra.mxu0 0.0
    %1420 = vmatprep.mubr.f32.mxu0 0.0
    %1421 = vmatmul.mubr.f32.gmra.mxu0 %v1349
    %v1422 = vpop.f32.mrf.mxu0
    %v1423 = vadd.f32 %v510, %v1422
    %v1424 = vpop.f32.mrf.mxu0
    %v1425 = vadd.f32 %v514, %v1424
    %1426 = vdwg.mxu0
    %1427 = vmatprep.subr.mxu0 0.0
    %1428 = vmatpush1.msra.mxu0 %v234
    %1429 = vmatprep.subr.mxu0 0.0
    %1430 = vmatpush1.msra.mxu0 %v231
    %1431 = vmatprep.subr.mxu0 0.0
    %1432 = vmatpush1.msra.mxu0 %v228
    %1433 = vmatprep.subr.mxu0 0.0
    %1434 = vmatpush1.msra.mxu0 %v225
    %1435 = vmatprep.subr.mxu0 0.0
    %1436 = vmatpush1.msra.mxu0 %v222
    %1437 = vmatprep.subr.mxu0 0.0
    %1438 = vmatpush1.msra.mxu0 %v219
    %1439 = vmatprep.subr.mxu0 0.0
    %1440 = vmatpush1.msra.mxu0 %v216
    %1441 = vmatprep.subr.mxu0 0.0
    %1442 = vmatpush1.msra.mxu0 %v213
    %1443 = vmatprep.subr.mxu0 0.0
    %1444 = vmatpush1.msra.mxu0 %v210
    %1445 = vmatprep.subr.mxu0 0.0
    %1446 = vmatpush1.msra.mxu0 %v207
    %1447 = vmatprep.subr.mxu0 0.0
    %1448 = vmatpush1.msra.mxu0 %v204
    %1449 = vmatprep.subr.mxu0 0.0
    %1450 = vmatpush1.msra.mxu0 %v201
    %1451 = vmatprep.subr.mxu0 0.0
    %1452 = vmatpush1.msra.mxu0 %v198
    %1453 = vmatprep.subr.mxu0 0.0
    %1454 = vmatpush1.msra.mxu0 %v195
    %1455 = vmatprep.subr.mxu0 0.0
    %1456 = vmatpush1.msra.mxu0 %v192
    %1457 = vmatprep.subr.mxu0 0.0
    %1458 = vmatpush1.msra.mxu0 %v189
    %1459 = vmatprep.subr.mxu0 0.0
    %1460 = vmatpush2.msra.mxu0 0.0
    %1461 = vmatprep.subr.mxu0 0.0
    %1462 = vmatpush2.msra.mxu0 0.0
    %1463 = vmatprep.subr.mxu0 0.0
    %1464 = vmatpush2.msra.mxu0 0.0
    %1465 = vmatprep.subr.mxu0 0.0
    %1466 = vmatpush2.msra.mxu0 0.0
    %1467 = vmatprep.subr.mxu0 0.0
    %1468 = vmatpush2.msra.mxu0 0.0
    %1469 = vmatprep.subr.mxu0 0.0
    %1470 = vmatpush2.msra.mxu0 0.0
    %1471 = vmatprep.subr.mxu0 0.0
    %1472 = vmatpush2.msra.mxu0 0.0
    %1473 = vmatprep.subr.mxu0 0.0
    %1474 = vmatpush2.msra.mxu0 0.0
    %1475 = vmatprep.subr.mxu0 0.0
    %1476 = vmatpush2.msra.mxu0 0.0
    %1477 = vmatprep.subr.mxu0 0.0
    %1478 = vmatpush2.msra.mxu0 0.0
    %1479 = vmatprep.subr.mxu0 0.0
    %1480 = vmatpush2.msra.mxu0 0.0
    %1481 = vmatprep.subr.mxu0 0.0
    %1482 = vmatpush2.msra.mxu0 0.0
    %1483 = vmatprep.subr.mxu0 0.0
    %1484 = vmatpush2.msra.mxu0 0.0
    %1485 = vmatprep.subr.mxu0 0.0
    %1486 = vmatpush2.msra.mxu0 0.0
    %1487 = vmatprep.subr.mxu0 0.0
    %1488 = vmatpush2.msra.mxu0 0.0
    %1489 = vmatprep.subr.mxu0 0.0
    %1490 = vmatpush2.msra.mxu0 0.0
    %1491 = vmatprep.mubr.f32.mxu0 0.0
    %1492 = vmatmul.mubr.f32.gmra.mxu0 %v1349
    %v1493 = vpop.f32.mrf.mxu0
    %v1494 = vadd.f32 %v518, %v1493
    %v1495 = vpop.f32.mrf.mxu0
    %1496 = vdwg.mxu0
    %v1497 = vadd.f32 %v1353, %v1423
    %v1498 = vxor.u32 %v1497, 2147483648
    %v1499 = vmul.f32 %v1498, 1.442695
    %v1500 = vpow.pop %v1499
    %v1501 = vadd.f32 %v1500, 1.0
    %v1502 = vrcp.pop %v1501
    %v1503 = vmul.f32 1.0, %v1502
    %v1504 = vadd.f32 %v1354, %v1425
    %v1505 = vxor.u32 %v1504, 2147483648
    %v1506 = vmul.f32 %v1505, 1.442695
    %v1507 = vpow.pop %v1506
    %v1508 = vadd.f32 %v1507, 1.0
    %v1509 = vrcp.pop %v1508
    %v1510 = vmul.f32 1.0, %v1509
    %v1511 = vmul.f32 %v1503, %v1494
    %v1512 = vadd.f32 %v1355, %v1511
    %v1513 = vtanh.pop %v1512
    %v1514 = vsub.f32 %v1349, %v1513
    %v1515 = vmul.f32 %v1510, %v1514
    %v1516 = vadd.f32 %v1513, %v1515
    %s1517 = scalar_lea.vmem [#allocation3], 40
    %1518 = vst [vmem:[%s1517] sm:$0xff] %v1516
    %s1519 = scalar_lea.vmem [#allocation2], 144
    %v1520 = vld [vmem:[%s1519] sm:$0xff]
    %v1521 = vld [vmem:[%s1519 + $0x8] sm:$0xff]
    %v1522 = vld [vmem:[%s1519 + $0x10] sm:$0xff]
    %1523 = vmatprep.subr.mxu0 %v233
    %1524 = vmatpush1.msra.mxu0 %v232
    %1525 = vmatprep.subr.mxu0 %v230
    %1526 = vmatpush1.msra.mxu0 %v229
    %1527 = vmatprep.subr.mxu0 %v227
    %1528 = vmatpush1.msra.mxu0 %v226
    %1529 = vmatprep.subr.mxu0 %v224
    %1530 = vmatpush1.msra.mxu0 %v223
    %1531 = vmatprep.subr.mxu0 %v221
    %1532 = vmatpush1.msra.mxu0 %v220
    %1533 = vmatprep.subr.mxu0 %v218
    %1534 = vmatpush1.msra.mxu0 %v217
    %1535 = vmatprep.subr.mxu0 %v215
    %1536 = vmatpush1.msra.mxu0 %v214
    %1537 = vmatprep.subr.mxu0 %v212
    %1538 = vmatpush1.msra.mxu0 %v211
    %1539 = vmatprep.subr.mxu0 %v209
    %1540 = vmatpush1.msra.mxu0 %v208
    %1541 = vmatprep.subr.mxu0 %v206
    %1542 = vmatpush1.msra.mxu0 %v205
    %1543 = vmatprep.subr.mxu0 %v203
    %1544 = vmatpush1.msra.mxu0 %v202
    %1545 = vmatprep.subr.mxu0 %v200
    %1546 = vmatpush1.msra.mxu0 %v199
    %1547 = vmatprep.subr.mxu0 %v197
    %1548 = vmatpush1.msra.mxu0 %v196
    %1549 = vmatprep.subr.mxu0 %v194
    %1550 = vmatpush1.msra.mxu0 %v193
    %1551 = vmatprep.subr.mxu0 %v191
    %1552 = vmatpush1.msra.mxu0 %v190
    %1553 = vmatprep.subr.mxu0 %v188
    %1554 = vmatpush1.msra.mxu0 %v187
    %1555 = vmatprep.subr.mxu0 0.0
    %1556 = vmatpush2.msra.mxu0 0.0
    %1557 = vmatprep.subr.mxu0 0.0
    %1558 = vmatpush2.msra.mxu0 0.0
    %1559 = vmatprep.subr.mxu0 0.0
    %1560 = vmatpush2.msra.mxu0 0.0
    %1561 = vmatprep.subr.mxu0 0.0
    %1562 = vmatpush2.msra.mxu0 0.0
    %1563 = vmatprep.subr.mxu0 0.0
    %1564 = vmatpush2.msra.mxu0 0.0
    %1565 = vmatprep.subr.mxu0 0.0
    %1566 = vmatpush2.msra.mxu0 0.0
    %1567 = vmatprep.subr.mxu0 0.0
    %1568 = vmatpush2.msra.mxu0 0.0
    %1569 = vmatprep.subr.mxu0 0.0
    %1570 = vmatpush2.msra.mxu0 0.0
    %1571 = vmatprep.subr.mxu0 0.0
    %1572 = vmatpush2.msra.mxu0 0.0
    %1573 = vmatprep.subr.mxu0 0.0
    %1574 = vmatpush2.msra.mxu0 0.0
    %1575 = vmatprep.subr.mxu0 0.0
    %1576 = vmatpush2.msra.mxu0 0.0
    %1577 = vmatprep.subr.mxu0 0.0
    %1578 = vmatpush2.msra.mxu0 0.0
    %1579 = vmatprep.subr.mxu0 0.0
    %1580 = vmatpush2.msra.mxu0 0.0
    %1581 = vmatprep.subr.mxu0 0.0
    %1582 = vmatpush2.msra.mxu0 0.0
    %1583 = vmatprep.subr.mxu0 0.0
    %1584 = vmatpush2.msra.mxu0 0.0
    %1585 = vmatprep.subr.mxu0 0.0
    %1586 = vmatpush2.msra.mxu0 0.0
    %1587 = vmatprep.mubr.f32.mxu0 0.0
    %1588 = vmatmul.mubr.f32.gmra.mxu0 %v1516
    %v1589 = vpop.f32.mrf.mxu0
    %v1590 = vadd.f32 %v510, %v1589
    %v1591 = vpop.f32.mrf.mxu0
    %v1592 = vadd.f32 %v514, %v1591
    %1593 = vdwg.mxu0
    %1594 = vmatprep.subr.mxu0 0.0
    %1595 = vmatpush1.msra.mxu0 %v234
    %1596 = vmatprep.subr.mxu0 0.0
    %1597 = vmatpush1.msra.mxu0 %v231
    %1598 = vmatprep.subr.mxu0 0.0
    %1599 = vmatpush1.msra.mxu0 %v228
    %1600 = vmatprep.subr.mxu0 0.0
    %1601 = vmatpush1.msra.mxu0 %v225
    %1602 = vmatprep.subr.mxu0 0.0
    %1603 = vmatpush1.msra.mxu0 %v222
    %1604 = vmatprep.subr.mxu0 0.0
    %1605 = vmatpush1.msra.mxu0 %v219
    %1606 = vmatprep.subr.mxu0 0.0
    %1607 = vmatpush1.msra.mxu0 %v216
    %1608 = vmatprep.subr.mxu0 0.0
    %1609 = vmatpush1.msra.mxu0 %v213
    %1610 = vmatprep.subr.mxu0 0.0
    %1611 = vmatpush1.msra.mxu0 %v210
    %1612 = vmatprep.subr.mxu0 0.0
    %1613 = vmatpush1.msra.mxu0 %v207
    %1614 = vmatprep.subr.mxu0 0.0
    %1615 = vmatpush1.msra.mxu0 %v204
    %1616 = vmatprep.subr.mxu0 0.0
    %1617 = vmatpush1.msra.mxu0 %v201
    %1618 = vmatprep.subr.mxu0 0.0
    %1619 = vmatpush1.msra.mxu0 %v198
    %1620 = vmatprep.subr.mxu0 0.0
    %1621 = vmatpush1.msra.mxu0 %v195
    %1622 = vmatprep.subr.mxu0 0.0
    %1623 = vmatpush1.msra.mxu0 %v192
    %1624 = vmatprep.subr.mxu0 0.0
    %1625 = vmatpush1.msra.mxu0 %v189
    %1626 = vmatprep.subr.mxu0 0.0
    %1627 = vmatpush2.msra.mxu0 0.0
    %1628 = vmatprep.subr.mxu0 0.0
    %1629 = vmatpush2.msra.mxu0 0.0
    %1630 = vmatprep.subr.mxu0 0.0
    %1631 = vmatpush2.msra.mxu0 0.0
    %1632 = vmatprep.subr.mxu0 0.0
    %1633 = vmatpush2.msra.mxu0 0.0
    %1634 = vmatprep.subr.mxu0 0.0
    %1635 = vmatpush2.msra.mxu0 0.0
    %1636 = vmatprep.subr.mxu0 0.0
    %1637 = vmatpush2.msra.mxu0 0.0
    %1638 = vmatprep.subr.mxu0 0.0
    %1639 = vmatpush2.msra.mxu0 0.0
    %1640 = vmatprep.subr.mxu0 0.0
    %1641 = vmatpush2.msra.mxu0 0.0
    %1642 = vmatprep.subr.mxu0 0.0
    %1643 = vmatpush2.msra.mxu0 0.0
    %1644 = vmatprep.subr.mxu0 0.0
    %1645 = vmatpush2.msra.mxu0 0.0
    %1646 = vmatprep.subr.mxu0 0.0
    %1647 = vmatpush2.msra.mxu0 0.0
    %1648 = vmatprep.subr.mxu0 0.0
    %1649 = vmatpush2.msra.mxu0 0.0
    %1650 = vmatprep.subr.mxu0 0.0
    %1651 = vmatpush2.msra.mxu0 0.0
    %1652 = vmatprep.subr.mxu0 0.0
    %1653 = vmatpush2.msra.mxu0 0.0
    %1654 = vmatprep.subr.mxu0 0.0
    %1655 = vmatpush2.msra.mxu0 0.0
    %1656 = vmatprep.subr.mxu0 0.0
    %1657 = vmatpush2.msra.mxu0 0.0
    %1658 = vmatprep.mubr.f32.mxu0 0.0
    %1659 = vmatmul.mubr.f32.gmra.mxu0 %v1516
    %v1660 = vpop.f32.mrf.mxu0
    %v1661 = vadd.f32 %v518, %v1660
    %v1662 = vpop.f32.mrf.mxu0
    %1663 = vdwg.mxu0
    %v1664 = vadd.f32 %v1520, %v1590
    %v1665 = vxor.u32 %v1664, 2147483648
    %v1666 = vmul.f32 %v1665, 1.442695
    %v1667 = vpow.pop %v1666
    %v1668 = vadd.f32 %v1667, 1.0
    %v1669 = vrcp.pop %v1668
    %v1670 = vmul.f32 1.0, %v1669
    %v1671 = vadd.f32 %v1521, %v1592
    %v1672 = vxor.u32 %v1671, 2147483648
    %v1673 = vmul.f32 %v1672, 1.442695
    %v1674 = vpow.pop %v1673
    %v1675 = vadd.f32 %v1674, 1.0
    %v1676 = vrcp.pop %v1675
    %v1677 = vmul.f32 1.0, %v1676
    %v1678 = vmul.f32 %v1670, %v1661
    %v1679 = vadd.f32 %v1522, %v1678
    %v1680 = vtanh.pop %v1679
    %v1681 = vsub.f32 %v1516, %v1680
    %v1682 = vmul.f32 %v1677, %v1681
    %v1683 = vadd.f32 %v1680, %v1682
    %s1684 = scalar_lea.vmem [#allocation3], 48
    %1685 = vst [vmem:[%s1684] sm:$0xff] %v1683
    %s1686 = scalar_lea.vmem [#allocation2], 168
    %v1687 = vld [vmem:[%s1686] sm:$0xff]
    %v1688 = vld [vmem:[%s1686 + $0x8] sm:$0xff]
    %v1689 = vld [vmem:[%s1686 + $0x10] sm:$0xff]
    %1690 = vmatprep.subr.mxu0 %v233
    %1691 = vmatpush1.msra.mxu0 %v232
    %1692 = vmatprep.subr.mxu0 %v230
    %1693 = vmatpush1.msra.mxu0 %v229
    %1694 = vmatprep.subr.mxu0 %v227
    %1695 = vmatpush1.msra.mxu0 %v226
    %1696 = vmatprep.subr.mxu0 %v224
    %1697 = vmatpush1.msra.mxu0 %v223
    %1698 = vmatprep.subr.mxu0 %v221
    %1699 = vmatpush1.msra.mxu0 %v220
    %1700 = vmatprep.subr.mxu0 %v218
    %1701 = vmatpush1.msra.mxu0 %v217
    %1702 = vmatprep.subr.mxu0 %v215
    %1703 = vmatpush1.msra.mxu0 %v214
    %1704 = vmatprep.subr.mxu0 %v212
    %1705 = vmatpush1.msra.mxu0 %v211
    %1706 = vmatprep.subr.mxu0 %v209
    %1707 = vmatpush1.msra.mxu0 %v208
    %1708 = vmatprep.subr.mxu0 %v206
    %1709 = vmatpush1.msra.mxu0 %v205
    %1710 = vmatprep.subr.mxu0 %v203
    %1711 = vmatpush1.msra.mxu0 %v202
    %1712 = vmatprep.subr.mxu0 %v200
    %1713 = vmatpush1.msra.mxu0 %v199
    %1714 = vmatprep.subr.mxu0 %v197
    %1715 = vmatpush1.msra.mxu0 %v196
    %1716 = vmatprep.subr.mxu0 %v194
    %1717 = vmatpush1.msra.mxu0 %v193
    %1718 = vmatprep.subr.mxu0 %v191
    %1719 = vmatpush1.msra.mxu0 %v190
    %1720 = vmatprep.subr.mxu0 %v188
    %1721 = vmatpush1.msra.mxu0 %v187
    %1722 = vmatprep.subr.mxu0 0.0
    %1723 = vmatpush2.msra.mxu0 0.0
    %1724 = vmatprep.subr.mxu0 0.0
    %1725 = vmatpush2.msra.mxu0 0.0
    %1726 = vmatprep.subr.mxu0 0.0
    %1727 = vmatpush2.msra.mxu0 0.0
    %1728 = vmatprep.subr.mxu0 0.0
    %1729 = vmatpush2.msra.mxu0 0.0
    %1730 = vmatprep.subr.mxu0 0.0
    %1731 = vmatpush2.msra.mxu0 0.0
    %1732 = vmatprep.subr.mxu0 0.0
    %1733 = vmatpush2.msra.mxu0 0.0
    %1734 = vmatprep.subr.mxu0 0.0
    %1735 = vmatpush2.msra.mxu0 0.0
    %1736 = vmatprep.subr.mxu0 0.0
    %1737 = vmatpush2.msra.mxu0 0.0
    %1738 = vmatprep.subr.mxu0 0.0
    %1739 = vmatpush2.msra.mxu0 0.0
    %1740 = vmatprep.subr.mxu0 0.0
    %1741 = vmatpush2.msra.mxu0 0.0
    %1742 = vmatprep.subr.mxu0 0.0
    %1743 = vmatpush2.msra.mxu0 0.0
    %1744 = vmatprep.subr.mxu0 0.0
    %1745 = vmatpush2.msra.mxu0 0.0
    %1746 = vmatprep.subr.mxu0 0.0
    %1747 = vmatpush2.msra.mxu0 0.0
    %1748 = vmatprep.subr.mxu0 0.0
    %1749 = vmatpush2.msra.mxu0 0.0
    %1750 = vmatprep.subr.mxu0 0.0
    %1751 = vmatpush2.msra.mxu0 0.0
    %1752 = vmatprep.subr.mxu0 0.0
    %1753 = vmatpush2.msra.mxu0 0.0
    %1754 = vmatprep.mubr.f32.mxu0 0.0
    %1755 = vmatmul.mubr.f32.gmra.mxu0 %v1683
    %v1756 = vpop.f32.mrf.mxu0
    %v1757 = vadd.f32 %v510, %v1756
    %v1758 = vpop.f32.mrf.mxu0
    %v1759 = vadd.f32 %v514, %v1758
    %1760 = vdwg.mxu0
    %1761 = vmatprep.subr.mxu0 0.0
    %1762 = vmatpush1.msra.mxu0 %v234
    %1763 = vmatprep.subr.mxu0 0.0
    %1764 = vmatpush1.msra.mxu0 %v231
    %1765 = vmatprep.subr.mxu0 0.0
    %1766 = vmatpush1.msra.mxu0 %v228
    %1767 = vmatprep.subr.mxu0 0.0
    %1768 = vmatpush1.msra.mxu0 %v225
    %1769 = vmatprep.subr.mxu0 0.0
    %1770 = vmatpush1.msra.mxu0 %v222
    %1771 = vmatprep.subr.mxu0 0.0
    %1772 = vmatpush1.msra.mxu0 %v219
    %1773 = vmatprep.subr.mxu0 0.0
    %1774 = vmatpush1.msra.mxu0 %v216
    %1775 = vmatprep.subr.mxu0 0.0
    %1776 = vmatpush1.msra.mxu0 %v213
    %1777 = vmatprep.subr.mxu0 0.0
    %1778 = vmatpush1.msra.mxu0 %v210
    %1779 = vmatprep.subr.mxu0 0.0
    %1780 = vmatpush1.msra.mxu0 %v207
    %1781 = vmatprep.subr.mxu0 0.0
    %1782 = vmatpush1.msra.mxu0 %v204
    %1783 = vmatprep.subr.mxu0 0.0
    %1784 = vmatpush1.msra.mxu0 %v201
    %1785 = vmatprep.subr.mxu0 0.0
    %1786 = vmatpush1.msra.mxu0 %v198
    %1787 = vmatprep.subr.mxu0 0.0
    %1788 = vmatpush1.msra.mxu0 %v195
    %1789 = vmatprep.subr.mxu0 0.0
    %1790 = vmatpush1.msra.mxu0 %v192
    %1791 = vmatprep.subr.mxu0 0.0
    %1792 = vmatpush1.msra.mxu0 %v189
    %1793 = vmatprep.subr.mxu0 0.0
    %1794 = vmatpush2.msra.mxu0 0.0
    %1795 = vmatprep.subr.mxu0 0.0
    %1796 = vmatpush2.msra.mxu0 0.0
    %1797 = vmatprep.subr.mxu0 0.0
    %1798 = vmatpush2.msra.mxu0 0.0
    %1799 = vmatprep.subr.mxu0 0.0
    %1800 = vmatpush2.msra.mxu0 0.0
    %1801 = vmatprep.subr.mxu0 0.0
    %1802 = vmatpush2.msra.mxu0 0.0
    %1803 = vmatprep.subr.mxu0 0.0
    %1804 = vmatpush2.msra.mxu0 0.0
    %1805 = vmatprep.subr.mxu0 0.0
    %1806 = vmatpush2.msra.mxu0 0.0
    %1807 = vmatprep.subr.mxu0 0.0
    %1808 = vmatpush2.msra.mxu0 0.0
    %1809 = vmatprep.subr.mxu0 0.0
    %1810 = vmatpush2.msra.mxu0 0.0
    %1811 = vmatprep.subr.mxu0 0.0
    %1812 = vmatpush2.msra.mxu0 0.0
    %1813 = vmatprep.subr.mxu0 0.0
    %1814 = vmatpush2.msra.mxu0 0.0
    %1815 = vmatprep.subr.mxu0 0.0
    %1816 = vmatpush2.msra.mxu0 0.0
    %1817 = vmatprep.subr.mxu0 0.0
    %1818 = vmatpush2.msra.mxu0 0.0
    %1819 = vmatprep.subr.mxu0 0.0
    %1820 = vmatpush2.msra.mxu0 0.0
    %1821 = vmatprep.subr.mxu0 0.0
    %1822 = vmatpush2.msra.mxu0 0.0
    %1823 = vmatprep.subr.mxu0 0.0
    %1824 = vmatpush2.msra.mxu0 0.0
    %1825 = vmatprep.mubr.f32.mxu0 0.0
    %1826 = vmatmul.mubr.f32.gmra.mxu0 %v1683
    %v1827 = vpop.f32.mrf.mxu0
    %v1828 = vadd.f32 %v518, %v1827
    %v1829 = vpop.f32.mrf.mxu0
    %1830 = vdwg.mxu0
    %v1831 = vadd.f32 %v1687, %v1757
    %v1832 = vxor.u32 %v1831, 2147483648
    %v1833 = vmul.f32 %v1832, 1.442695
    %v1834 = vpow.pop %v1833
    %v1835 = vadd.f32 %v1834, 1.0
    %v1836 = vrcp.pop %v1835
    %v1837 = vmul.f32 1.0, %v1836
    %v1838 = vadd.f32 %v1688, %v1759
    %v1839 = vxor.u32 %v1838, 2147483648
    %v1840 = vmul.f32 %v1839, 1.442695
    %v1841 = vpow.pop %v1840
    %v1842 = vadd.f32 %v1841, 1.0
    %v1843 = vrcp.pop %v1842
    %v1844 = vmul.f32 1.0, %v1843
    %v1845 = vmul.f32 %v1837, %v1828
    %v1846 = vadd.f32 %v1689, %v1845
    %v1847 = vtanh.pop %v1846
    %v1848 = vsub.f32 %v1683, %v1847
    %v1849 = vmul.f32 %v1844, %v1848
    %v1850 = vadd.f32 %v1847, %v1849
    %s1851 = scalar_lea.vmem [#allocation3], 56
    %1852 = vst [vmem:[%s1851] sm:$0xff] %v1850
    %v1853 = vld [vmem:[#allocation9] sm:$0xff]
    %v1854 = vld [vmem:[#allocation9 + $0x8] sm:$0xff]
    %v1855 = vld [vmem:[#allocation9 + $0x10] sm:$0xff]
    %v1856 = vld [vmem:[#allocation9 + $0x18] sm:$0xff]
    %v1857 = vld [vmem:[#allocation9 + $0x20] sm:$0xff]
    %v1858 = vld [vmem:[#allocation9 + $0x28] sm:$0xff]
    %v1859 = vld [vmem:[#allocation9 + $0x30] sm:$0xff]
    %v1860 = vld [vmem:[#allocation9 + $0x38] sm:$0xff]
    %v1861 = vld [vmem:[#allocation9 + $0x40] sm:$0xff]
    %v1862 = vld [vmem:[#allocation9 + $0x48] sm:$0xff]
    %v1863 = vld [vmem:[#allocation9 + $0x50] sm:$0xff]
    %v1864 = vld [vmem:[#allocation9 + $0x58] sm:$0xff]
    %v1865 = vld [vmem:[#allocation9 + $0x60] sm:$0xff]
    %v1866 = vld [vmem:[#allocation9 + $0x68] sm:$0xff]
    %v1867 = vld [vmem:[#allocation9 + $0x70] sm:$0xff]
    %v1868 = vld [vmem:[#allocation9 + $0x78] sm:$0xff]
    %v1869 = vld [vmem:[#allocation9 + $0x80] sm:$0xff]
    %v1870 = vld [vmem:[#allocation9 + $0x88] sm:$0xff]
    %v1871 = vld [vmem:[#allocation9 + $0x90] sm:$0xff]
    %v1872 = vld [vmem:[#allocation9 + $0x98] sm:$0xff]
    %v1873 = vld [vmem:[#allocation9 + $0xa0] sm:$0xff]
    %v1874 = vld [vmem:[#allocation9 + $0xa8] sm:$0xff]
    %v1875 = vld [vmem:[#allocation9 + $0xb0] sm:$0xff]
    %v1876 = vld [vmem:[#allocation9 + $0xb8] sm:$0xff]
    %v1877 = vld [vmem:[#allocation9 + $0xc0] sm:$0xff]
    %v1878 = vld [vmem:[#allocation9 + $0xc8] sm:$0xff]
    %v1879 = vld [vmem:[#allocation9 + $0xd0] sm:$0xff]
    %v1880 = vld [vmem:[#allocation9 + $0xd8] sm:$0xff]
    %v1881 = vld [vmem:[#allocation9 + $0xe0] sm:$0xff]
    %v1882 = vld [vmem:[#allocation9 + $0xe8] sm:$0xff]
    %v1883 = vld [vmem:[#allocation9 + $0xf0] sm:$0xff]
    %v1884 = vld [vmem:[#allocation9 + $0xf8] sm:$0xff]
    %v1885 = vld [vmem:[#allocation9 + $0x100] sm:$0xff]
    %v1886 = vld [vmem:[#allocation9 + $0x108] sm:$0xff]
    %v1887 = vld [vmem:[#allocation9 + $0x110] sm:$0xff]
    %v1888 = vld [vmem:[#allocation9 + $0x118] sm:$0xff]
    %v1889 = vld [vmem:[#allocation9 + $0x120] sm:$0xff]
    %v1890 = vld [vmem:[#allocation9 + $0x128] sm:$0xff]
    %v1891 = vld [vmem:[#allocation9 + $0x130] sm:$0xff]
    %v1892 = vld [vmem:[#allocation9 + $0x138] sm:$0xff]
    %v1893 = vld [vmem:[#allocation9 + $0x140] sm:$0xff]
    %v1894 = vld [vmem:[#allocation9 + $0x148] sm:$0xff]
    %v1895 = vld [vmem:[#allocation9 + $0x150] sm:$0xff]
    %v1896 = vld [vmem:[#allocation9 + $0x158] sm:$0xff]
    %v1897 = vld [vmem:[#allocation9 + $0x160] sm:$0xff]
    %v1898 = vld [vmem:[#allocation9 + $0x168] sm:$0xff]
    %v1899 = vld [vmem:[#allocation9 + $0x170] sm:$0xff]
    %v1900 = vld [vmem:[#allocation9 + $0x178] sm:$0xff]
    %v1901 = vld [vmem:[#allocation11] sm:$0xff]
    %v1902 = vld [vmem:[#allocation11 + $0x8] sm:$0xff]
    %v1903 = vld [vmem:[#allocation11 + $0x10] sm:$0xff]
    %v1904 = vld [vmem:[#allocation11 + $0x18] sm:$0xff]
    %v1905 = vld [vmem:[#allocation11 + $0x20] sm:$0xff]
    %v1906 = vld [vmem:[#allocation11 + $0x28] sm:$0xff]
    %v1907 = vld [vmem:[#allocation11 + $0x30] sm:$0xff]
    %v1908 = vld [vmem:[#allocation11 + $0x38] sm:$0xff]
    %v1909 = vld [vmem:[#allocation11 + $0x40] sm:$0xff]
    %v1910 = vld [vmem:[#allocation11 + $0x48] sm:$0xff]
    %v1911 = vld [vmem:[#allocation11 + $0x50] sm:$0xff]
    %v1912 = vld [vmem:[#allocation11 + $0x58] sm:$0xff]
    %v1913 = vld [vmem:[#allocation11 + $0x60] sm:$0xff]
    %v1914 = vld [vmem:[#allocation11 + $0x68] sm:$0xff]
    %v1915 = vld [vmem:[#allocation11 + $0x70] sm:$0xff]
    %v1916 = vld [vmem:[#allocation11 + $0x78] sm:$0xff]
    %v1917 = vld [vmem:[#allocation11 + $0x80] sm:$0xff]
    %v1918 = vld [vmem:[#allocation11 + $0x88] sm:$0xff]
    %v1919 = vld [vmem:[#allocation11 + $0x90] sm:$0xff]
    %v1920 = vld [vmem:[#allocation11 + $0x98] sm:$0xff]
    %v1921 = vld [vmem:[#allocation11 + $0xa0] sm:$0xff]
    %v1922 = vld [vmem:[#allocation11 + $0xa8] sm:$0xff]
    %v1923 = vld [vmem:[#allocation11 + $0xb0] sm:$0xff]
    %v1924 = vld [vmem:[#allocation11 + $0xb8] sm:$0xff]
    %v1925 = vld [vmem:[#allocation11 + $0xc0] sm:$0xff]
    %v1926 = vld [vmem:[#allocation11 + $0xc8] sm:$0xff]
    %v1927 = vld [vmem:[#allocation11 + $0xd0] sm:$0xff]
    %v1928 = vld [vmem:[#allocation11 + $0xd8] sm:$0xff]
    %v1929 = vld [vmem:[#allocation11 + $0xe0] sm:$0xff]
    %v1930 = vld [vmem:[#allocation11 + $0xe8] sm:$0xff]
    %v1931 = vld [vmem:[#allocation11 + $0xf0] sm:$0xff]
    %v1932 = vld [vmem:[#allocation11 + $0xf8] sm:$0xff]
    %v1933 = vld [vmem:[#allocation11 + $0x100] sm:$0xff]
    %v1934 = vld [vmem:[#allocation11 + $0x108] sm:$0xff]
    %v1935 = vld [vmem:[#allocation11 + $0x110] sm:$0xff]
    %v1936 = vld [vmem:[#allocation11 + $0x118] sm:$0xff]
    %v1937 = vld [vmem:[#allocation11 + $0x120] sm:$0xff]
    %v1938 = vld [vmem:[#allocation11 + $0x128] sm:$0xff]
    %v1939 = vld [vmem:[#allocation11 + $0x130] sm:$0xff]
    %v1940 = vld [vmem:[#allocation11 + $0x138] sm:$0xff]
    %v1941 = vld [vmem:[#allocation11 + $0x140] sm:$0xff]
    %v1942 = vld [vmem:[#allocation11 + $0x148] sm:$0xff]
    %v1943 = vld [vmem:[#allocation11 + $0x150] sm:$0xff]
    %v1944 = vld [vmem:[#allocation11 + $0x158] sm:$0xff]
    %v1945 = vld [vmem:[#allocation11 + $0x160] sm:$0xff]
    %v1946 = vld [vmem:[#allocation11 + $0x168] sm:$0xff]
    %v1947 = vld [vmem:[#allocation11 + $0x170] sm:$0xff]
    %v1948 = vld [vmem:[#allocation11 + $0x178] sm:$0xff]
    %v1949 = vld [vmem:[#allocation12] sm:$0x7]
    %v1950 = vld [vmem:[#allocation14] sm:$0x7]
    %v1951 = vld [vmem:[#allocation3] sm:$0xff]
    %v1952 = vld [vmem:[#allocation3 + $0x8] sm:$0xff]
    %v1953 = vld [vmem:[#allocation3 + $0x10] sm:$0xff]
    %v1954 = vld [vmem:[#allocation3 + $0x18] sm:$0xff]
    %v1955 = vld [vmem:[#allocation3 + $0x20] sm:$0xff]
    %v1956 = vld [vmem:[#allocation3 + $0x28] sm:$0xff]
    %v1957 = vld [vmem:[#allocation3 + $0x30] sm:$0xff]
    %v1958 = vld [vmem:[#allocation3 + $0x38] sm:$0xff]
    %v1960 = vlaneseq
    %v1961 = vshrl.u32 %v1960, 7
    %v1962 = vsub.s32 0, %v1961
    %v1963 = vrot.slane %v1949, %v1962
    %v1964 = vlaneseq
    %v1965 = vshrl.u32 %v1964, 7
    %v1966 = vsub.s32 1, %v1965
    %v1967 = vrot.slane %v1949, %v1966
    %v1968 = vlaneseq
    %v1969 = vshrl.u32 %v1968, 7
    %v1970 = vsub.s32 2, %v1969
    %v1971 = vrot.slane %v1949, %v1970
    %1975 = vmatprep.subr.mxu0 %v1899
    %1976 = vmatpush1.msra.mxu0 %v1898
    %1977 = vmatprep.subr.mxu0 %v1896
    %1978 = vmatpush1.msra.mxu0 %v1895
    %1979 = vmatprep.subr.mxu0 %v1893
    %1980 = vmatpush1.msra.mxu0 %v1892
    %1981 = vmatprep.subr.mxu0 %v1890
    %1982 = vmatpush1.msra.mxu0 %v1889
    %1983 = vmatprep.subr.mxu0 %v1887
    %1984 = vmatpush1.msra.mxu0 %v1886
    %1985 = vmatprep.subr.mxu0 %v1884
    %1986 = vmatpush1.msra.mxu0 %v1883
    %1987 = vmatprep.subr.mxu0 %v1881
    %1988 = vmatpush1.msra.mxu0 %v1880
    %1989 = vmatprep.subr.mxu0 %v1878
    %1990 = vmatpush1.msra.mxu0 %v1877
    %1991 = vmatprep.subr.mxu0 %v1875
    %1992 = vmatpush1.msra.mxu0 %v1874
    %1993 = vmatprep.subr.mxu0 %v1872
    %1994 = vmatpush1.msra.mxu0 %v1871
    %1995 = vmatprep.subr.mxu0 %v1869
    %1996 = vmatpush1.msra.mxu0 %v1868
    %1997 = vmatprep.subr.mxu0 %v1866
    %1998 = vmatpush1.msra.mxu0 %v1865
    %1999 = vmatprep.subr.mxu0 %v1863
    %2000 = vmatpush1.msra.mxu0 %v1862
    %2001 = vmatprep.subr.mxu0 %v1860
    %2002 = vmatpush1.msra.mxu0 %v1859
    %2003 = vmatprep.subr.mxu0 %v1857
    %2004 = vmatpush1.msra.mxu0 %v1856
    %2005 = vmatprep.subr.mxu0 %v1854
    %2006 = vmatpush1.msra.mxu0 %v1853
    %2007 = vmatprep.subr.mxu0 0.0
    %2008 = vmatpush2.msra.mxu0 0.0
    %2009 = vmatprep.subr.mxu0 0.0
    %2010 = vmatpush2.msra.mxu0 0.0
    %2011 = vmatprep.subr.mxu0 0.0
    %2012 = vmatpush2.msra.mxu0 0.0
    %2013 = vmatprep.subr.mxu0 0.0
    %2014 = vmatpush2.msra.mxu0 0.0
    %2015 = vmatprep.subr.mxu0 0.0
    %2016 = vmatpush2.msra.mxu0 0.0
    %2017 = vmatprep.subr.mxu0 0.0
    %2018 = vmatpush2.msra.mxu0 0.0
    %2019 = vmatprep.subr.mxu0 0.0
    %2020 = vmatpush2.msra.mxu0 0.0
    %2021 = vmatprep.subr.mxu0 0.0
    %2022 = vmatpush2.msra.mxu0 0.0
    %2023 = vmatprep.subr.mxu0 0.0
    %2024 = vmatpush2.msra.mxu0 0.0
    %2025 = vmatprep.subr.mxu0 0.0
    %2026 = vmatpush2.msra.mxu0 0.0
    %2027 = vmatprep.subr.mxu0 0.0
    %2028 = vmatpush2.msra.mxu0 0.0
    %2029 = vmatprep.subr.mxu0 0.0
    %2030 = vmatpush2.msra.mxu0 0.0
    %2031 = vmatprep.subr.mxu0 0.0
    %2032 = vmatpush2.msra.mxu0 0.0
    %2033 = vmatprep.subr.mxu0 0.0
    %2034 = vmatpush2.msra.mxu0 0.0
    %2035 = vmatprep.subr.mxu0 0.0
    %2036 = vmatpush2.msra.mxu0 0.0
    %2037 = vmatprep.subr.mxu0 0.0
    %2038 = vmatpush2.msra.mxu0 0.0
    %2039 = vmatprep.mubr.f32.mxu0 0.0
    %2040 = vmatmul.mubr.f32.gmra.mxu0 %v1951
    %v2041 = vpop.f32.mrf.mxu0
    %v2042 = vadd.f32 %v1963, %v2041
    %v2043 = vpop.f32.mrf.mxu0
    %v2044 = vadd.f32 %v1967, %v2043
    %2045 = vmatprep.mubr.f32.mxu0 0.0
    %2046 = vmatmul.mubr.f32.gmra.mxu0 %v1952
    %v2047 = vpop.f32.mrf.mxu0
    %v2048 = vadd.f32 %v1963, %v2047
    %v2049 = vpop.f32.mrf.mxu0
    %v2050 = vadd.f32 %v1967, %v2049
    %2051 = vmatprep.mubr.f32.mxu0 0.0
    %2052 = vmatmul.mubr.f32.gmra.mxu0 %v1953
    %v2053 = vpop.f32.mrf.mxu0
    %v2054 = vadd.f32 %v1963, %v2053
    %v2055 = vpop.f32.mrf.mxu0
    %v2056 = vadd.f32 %v1967, %v2055
    %2057 = vmatprep.mubr.f32.mxu0 0.0
    %2058 = vmatmul.mubr.f32.gmra.mxu0 %v1954
    %v2059 = vpop.f32.mrf.mxu0
    %v2060 = vadd.f32 %v1963, %v2059
    %v2061 = vpop.f32.mrf.mxu0
    %v2062 = vadd.f32 %v1967, %v2061
    %2063 = vmatprep.mubr.f32.mxu0 0.0
    %2064 = vmatmul.mubr.f32.gmra.mxu0 %v1955
    %v2065 = vpop.f32.mrf.mxu0
    %v2066 = vadd.f32 %v1963, %v2065
    %v2067 = vpop.f32.mrf.mxu0
    %v2068 = vadd.f32 %v1967, %v2067
    %2069 = vmatprep.mubr.f32.mxu0 0.0
    %2070 = vmatmul.mubr.f32.gmra.mxu0 %v1956
    %v2071 = vpop.f32.mrf.mxu0
    %v2072 = vadd.f32 %v1963, %v2071
    %v2073 = vpop.f32.mrf.mxu0
    %v2074 = vadd.f32 %v1967, %v2073
    %2075 = vmatprep.mubr.f32.mxu0 0.0
    %2076 = vmatmul.mubr.f32.gmra.mxu0 %v1957
    %v2077 = vpop.f32.mrf.mxu0
    %v2078 = vadd.f32 %v1963, %v2077
    %v2079 = vpop.f32.mrf.mxu0
    %v2080 = vadd.f32 %v1967, %v2079
    %2081 = vmatprep.mubr.f32.mxu0 0.0
    %2082 = vmatmul.mubr.f32.gmra.mxu0 %v1958
    %v2083 = vpop.f32.mrf.mxu0
    %v2084 = vadd.f32 %v1963, %v2083
    %v2085 = vpop.f32.mrf.mxu0
    %v2086 = vadd.f32 %v1967, %v2085
    %2087 = vdwg.mxu0
    %2088 = vmatprep.subr.mxu0 0.0
    %2089 = vmatpush1.msra.mxu0 %v1900
    %2090 = vmatprep.subr.mxu0 0.0
    %2091 = vmatpush1.msra.mxu0 %v1897
    %2092 = vmatprep.subr.mxu0 0.0
    %2093 = vmatpush1.msra.mxu0 %v1894
    %2094 = vmatprep.subr.mxu0 0.0
    %2095 = vmatpush1.msra.mxu0 %v1891
    %2096 = vmatprep.subr.mxu0 0.0
    %2097 = vmatpush1.msra.mxu0 %v1888
    %2098 = vmatprep.subr.mxu0 0.0
    %2099 = vmatpush1.msra.mxu0 %v1885
    %2100 = vmatprep.subr.mxu0 0.0
    %2101 = vmatpush1.msra.mxu0 %v1882
    %2102 = vmatprep.subr.mxu0 0.0
    %2103 = vmatpush1.msra.mxu0 %v1879
    %2104 = vmatprep.subr.mxu0 0.0
    %2105 = vmatpush1.msra.mxu0 %v1876
    %2106 = vmatprep.subr.mxu0 0.0
    %2107 = vmatpush1.msra.mxu0 %v1873
    %2108 = vmatprep.subr.mxu0 0.0
    %2109 = vmatpush1.msra.mxu0 %v1870
    %2110 = vmatprep.subr.mxu0 0.0
    %2111 = vmatpush1.msra.mxu0 %v1867
    %2112 = vmatprep.subr.mxu0 0.0
    %2113 = vmatpush1.msra.mxu0 %v1864
    %2114 = vmatprep.subr.mxu0 0.0
    %2115 = vmatpush1.msra.mxu0 %v1861
    %2116 = vmatprep.subr.mxu0 0.0
    %2117 = vmatpush1.msra.mxu0 %v1858
    %2118 = vmatprep.subr.mxu0 0.0
    %2119 = vmatpush1.msra.mxu0 %v1855
    %2120 = vmatprep.subr.mxu0 0.0
    %2121 = vmatpush2.msra.mxu0 0.0
    %2122 = vmatprep.subr.mxu0 0.0
    %2123 = vmatpush2.msra.mxu0 0.0
    %2124 = vmatprep.subr.mxu0 0.0
    %2125 = vmatpush2.msra.mxu0 0.0
    %2126 = vmatprep.subr.mxu0 0.0
    %2127 = vmatpush2.msra.mxu0 0.0
    %2128 = vmatprep.subr.mxu0 0.0
    %2129 = vmatpush2.msra.mxu0 0.0
    %2130 = vmatprep.subr.mxu0 0.0
    %2131 = vmatpush2.msra.mxu0 0.0
    %2132 = vmatprep.subr.mxu0 0.0
    %2133 = vmatpush2.msra.mxu0 0.0
    %2134 = vmatprep.subr.mxu0 0.0
    %2135 = vmatpush2.msra.mxu0 0.0
    %2136 = vmatprep.subr.mxu0 0.0
    %2137 = vmatpush2.msra.mxu0 0.0
    %2138 = vmatprep.subr.mxu0 0.0
    %2139 = vmatpush2.msra.mxu0 0.0
    %2140 = vmatprep.subr.mxu0 0.0
    %2141 = vmatpush2.msra.mxu0 0.0
    %2142 = vmatprep.subr.mxu0 0.0
    %2143 = vmatpush2.msra.mxu0 0.0
    %2144 = vmatprep.subr.mxu0 0.0
    %2145 = vmatpush2.msra.mxu0 0.0
    %2146 = vmatprep.subr.mxu0 0.0
    %2147 = vmatpush2.msra.mxu0 0.0
    %2148 = vmatprep.subr.mxu0 0.0
    %2149 = vmatpush2.msra.mxu0 0.0
    %2150 = vmatprep.subr.mxu0 0.0
    %2151 = vmatpush2.msra.mxu0 0.0
    %2152 = vmatprep.mubr.f32.mxu0 0.0
    %2153 = vmatmul.mubr.f32.gmra.mxu0 %v1951
    %v2154 = vpop.f32.mrf.mxu0
    %v2155 = vadd.f32 %v1971, %v2154
    %v2156 = vpop.f32.mrf.mxu0
    %2157 = vmatprep.mubr.f32.mxu0 0.0
    %2158 = vmatmul.mubr.f32.gmra.mxu0 %v1952
    %v2159 = vpop.f32.mrf.mxu0
    %v2160 = vadd.f32 %v1971, %v2159
    %v2161 = vpop.f32.mrf.mxu0
    %2162 = vmatprep.mubr.f32.mxu0 0.0
    %2163 = vmatmul.mubr.f32.gmra.mxu0 %v1953
    %v2164 = vpop.f32.mrf.mxu0
    %v2165 = vadd.f32 %v1971, %v2164
    %v2166 = vpop.f32.mrf.mxu0
    %2167 = vmatprep.mubr.f32.mxu0 0.0
    %2168 = vmatmul.mubr.f32.gmra.mxu0 %v1954
    %v2169 = vpop.f32.mrf.mxu0
    %v2170 = vadd.f32 %v1971, %v2169
    %v2171 = vpop.f32.mrf.mxu0
    %2172 = vmatprep.mubr.f32.mxu0 0.0
    %2173 = vmatmul.mubr.f32.gmra.mxu0 %v1955
    %v2174 = vpop.f32.mrf.mxu0
    %v2175 = vadd.f32 %v1971, %v2174
    %v2176 = vpop.f32.mrf.mxu0
    %2177 = vmatprep.mubr.f32.mxu0 0.0
    %2178 = vmatmul.mubr.f32.gmra.mxu0 %v1956
    %v2179 = vpop.f32.mrf.mxu0
    %v2180 = vadd.f32 %v1971, %v2179
    %v2181 = vpop.f32.mrf.mxu0
    %2182 = vmatprep.mubr.f32.mxu0 0.0
    %2183 = vmatmul.mubr.f32.gmra.mxu0 %v1957
    %v2184 = vpop.f32.mrf.mxu0
    %v2185 = vadd.f32 %v1971, %v2184
    %v2186 = vpop.f32.mrf.mxu0
    %2187 = vmatprep.mubr.f32.mxu0 0.0
    %2188 = vmatmul.mubr.f32.gmra.mxu0 %v1958
    %v2189 = vpop.f32.mrf.mxu0
    %v2190 = vadd.f32 %v1971, %v2189
    %v2191 = vpop.f32.mrf.mxu0
    %2192 = vdwg.mxu0
    %2193 = vst [vmem:[#allocation2] sm:$0xff] %v2042
    %2194 = vst [vmem:[#allocation2 + $0x8] sm:$0xff] %v2044
    %2195 = vst [vmem:[#allocation2 + $0x10] sm:$0xff] %v2155
    %2196 = vst [vmem:[#allocation2 + $0x18] sm:$0xff] %v2048
    %2197 = vst [vmem:[#allocation2 + $0x20] sm:$0xff] %v2050
    %2198 = vst [vmem:[#allocation2 + $0x28] sm:$0xff] %v2160
    %2199 = vst [vmem:[#allocation2 + $0x30] sm:$0xff] %v2054
    %2200 = vst [vmem:[#allocation2 + $0x38] sm:$0xff] %v2056
    %2201 = vst [vmem:[#allocation2 + $0x40] sm:$0xff] %v2165
    %2202 = vst [vmem:[#allocation2 + $0x48] sm:$0xff] %v2060
    %2203 = vst [vmem:[#allocation2 + $0x50] sm:$0xff] %v2062
    %2204 = vst [vmem:[#allocation2 + $0x58] sm:$0xff] %v2170
    %2205 = vst [vmem:[#allocation2 + $0x60] sm:$0xff] %v2066
    %2206 = vst [vmem:[#allocation2 + $0x68] sm:$0xff] %v2068
    %2207 = vst [vmem:[#allocation2 + $0x70] sm:$0xff] %v2175
    %2208 = vst [vmem:[#allocation2 + $0x78] sm:$0xff] %v2072
    %2209 = vst [vmem:[#allocation2 + $0x80] sm:$0xff] %v2074
    %2210 = vst [vmem:[#allocation2 + $0x88] sm:$0xff] %v2180
    %2211 = vst [vmem:[#allocation2 + $0x90] sm:$0xff] %v2078
    %2212 = vst [vmem:[#allocation2 + $0x98] sm:$0xff] %v2080
    %2213 = vst [vmem:[#allocation2 + $0xa0] sm:$0xff] %v2185
    %2214 = vst [vmem:[#allocation2 + $0xa8] sm:$0xff] %v2084
    %2215 = vst [vmem:[#allocation2 + $0xb0] sm:$0xff] %v2086
    %2216 = vst [vmem:[#allocation2 + $0xb8] sm:$0xff] %v2190
    %v2217 = vld [vmem:[#allocation2] sm:$0xff]
    %v2218 = vld [vmem:[#allocation2 + $0x8] sm:$0xff]
    %v2219 = vld [vmem:[#allocation2 + $0x10] sm:$0xff]
    %v2221 = vlaneseq
    %v2222 = vshrl.u32 %v2221, 7
    %v2223 = vsub.s32 0, %v2222
    %v2224 = vrot.slane %v1950, %v2223
    %v2225 = vlaneseq
    %v2226 = vshrl.u32 %v2225, 7
    %v2227 = vsub.s32 1, %v2226
    %v2228 = vrot.slane %v1950, %v2227
    %v2229 = vlaneseq
    %v2230 = vshrl.u32 %v2229, 7
    %v2231 = vsub.s32 2, %v2230
    %v2232 = vrot.slane %v1950, %v2231
    %2236 = vmatprep.subr.mxu0 %v1947
    %2237 = vmatpush1.msra.mxu0 %v1946
    %2238 = vmatprep.subr.mxu0 %v1944
    %2239 = vmatpush1.msra.mxu0 %v1943
    %2240 = vmatprep.subr.mxu0 %v1941
    %2241 = vmatpush1.msra.mxu0 %v1940
    %2242 = vmatprep.subr.mxu0 %v1938
    %2243 = vmatpush1.msra.mxu0 %v1937
    %2244 = vmatprep.subr.mxu0 %v1935
    %2245 = vmatpush1.msra.mxu0 %v1934
    %2246 = vmatprep.subr.mxu0 %v1932
    %2247 = vmatpush1.msra.mxu0 %v1931
    %2248 = vmatprep.subr.mxu0 %v1929
    %2249 = vmatpush1.msra.mxu0 %v1928
    %2250 = vmatprep.subr.mxu0 %v1926
    %2251 = vmatpush1.msra.mxu0 %v1925
    %2252 = vmatprep.subr.mxu0 %v1923
    %2253 = vmatpush1.msra.mxu0 %v1922
    %2254 = vmatprep.subr.mxu0 %v1920
    %2255 = vmatpush1.msra.mxu0 %v1919
    %2256 = vmatprep.subr.mxu0 %v1917
    %2257 = vmatpush1.msra.mxu0 %v1916
    %2258 = vmatprep.subr.mxu0 %v1914
    %2259 = vmatpush1.msra.mxu0 %v1913
    %2260 = vmatprep.subr.mxu0 %v1911
    %2261 = vmatpush1.msra.mxu0 %v1910
    %2262 = vmatprep.subr.mxu0 %v1908
    %2263 = vmatpush1.msra.mxu0 %v1907
    %2264 = vmatprep.subr.mxu0 %v1905
    %2265 = vmatpush1.msra.mxu0 %v1904
    %2266 = vmatprep.subr.mxu0 %v1902
    %2267 = vmatpush1.msra.mxu0 %v1901
    %2268 = vmatprep.subr.mxu0 0.0
    %2269 = vmatpush2.msra.mxu0 0.0
    %2270 = vmatprep.subr.mxu0 0.0
    %2271 = vmatpush2.msra.mxu0 0.0
    %2272 = vmatprep.subr.mxu0 0.0
    %2273 = vmatpush2.msra.mxu0 0.0
    %2274 = vmatprep.subr.mxu0 0.0
    %2275 = vmatpush2.msra.mxu0 0.0
    %2276 = vmatprep.subr.mxu0 0.0
    %2277 = vmatpush2.msra.mxu0 0.0
    %2278 = vmatprep.subr.mxu0 0.0
    %2279 = vmatpush2.msra.mxu0 0.0
    %2280 = vmatprep.subr.mxu0 0.0
    %2281 = vmatpush2.msra.mxu0 0.0
    %2282 = vmatprep.subr.mxu0 0.0
    %2283 = vmatpush2.msra.mxu0 0.0
    %2284 = vmatprep.subr.mxu0 0.0
    %2285 = vmatpush2.msra.mxu0 0.0
    %2286 = vmatprep.subr.mxu0 0.0
    %2287 = vmatpush2.msra.mxu0 0.0
    %2288 = vmatprep.subr.mxu0 0.0
    %2289 = vmatpush2.msra.mxu0 0.0
    %2290 = vmatprep.subr.mxu0 0.0
    %2291 = vmatpush2.msra.mxu0 0.0
    %2292 = vmatprep.subr.mxu0 0.0
    %2293 = vmatpush2.msra.mxu0 0.0
    %2294 = vmatprep.subr.mxu0 0.0
    %2295 = vmatpush2.msra.mxu0 0.0
    %2296 = vmatprep.subr.mxu0 0.0
    %2297 = vmatpush2.msra.mxu0 0.0
    %2298 = vmatprep.subr.mxu0 0.0
    %2299 = vmatpush2.msra.mxu0 0.0
    %2300 = vmatprep.mubr.f32.mxu0 0.0
    %2301 = vmatmul.mubr.f32.gmra.mxu0 0.0
    %v2302 = vpop.f32.mrf.mxu0
    %v2303 = vadd.f32 %v2224, %v2302
    %v2304 = vpop.f32.mrf.mxu0
    %v2305 = vadd.f32 %v2228, %v2304
    %2306 = vdwg.mxu0
    %2307 = vmatprep.subr.mxu0 0.0
    %2308 = vmatpush1.msra.mxu0 %v1948
    %2309 = vmatprep.subr.mxu0 0.0
    %2310 = vmatpush1.msra.mxu0 %v1945
    %2311 = vmatprep.subr.mxu0 0.0
    %2312 = vmatpush1.msra.mxu0 %v1942
    %2313 = vmatprep.subr.mxu0 0.0
    %2314 = vmatpush1.msra.mxu0 %v1939
    %2315 = vmatprep.subr.mxu0 0.0
    %2316 = vmatpush1.msra.mxu0 %v1936
    %2317 = vmatprep.subr.mxu0 0.0
    %2318 = vmatpush1.msra.mxu0 %v1933
    %2319 = vmatprep.subr.mxu0 0.0
    %2320 = vmatpush1.msra.mxu0 %v1930
    %2321 = vmatprep.subr.mxu0 0.0
    %2322 = vmatpush1.msra.mxu0 %v1927
    %2323 = vmatprep.subr.mxu0 0.0
    %2324 = vmatpush1.msra.mxu0 %v1924
    %2325 = vmatprep.subr.mxu0 0.0
    %2326 = vmatpush1.msra.mxu0 %v1921
    %2327 = vmatprep.subr.mxu0 0.0
    %2328 = vmatpush1.msra.mxu0 %v1918
    %2329 = vmatprep.subr.mxu0 0.0
    %2330 = vmatpush1.msra.mxu0 %v1915
    %2331 = vmatprep.subr.mxu0 0.0
    %2332 = vmatpush1.msra.mxu0 %v1912
    %2333 = vmatprep.subr.mxu0 0.0
    %2334 = vmatpush1.msra.mxu0 %v1909
    %2335 = vmatprep.subr.mxu0 0.0
    %2336 = vmatpush1.msra.mxu0 %v1906
    %2337 = vmatprep.subr.mxu0 0.0
    %2338 = vmatpush1.msra.mxu0 %v1903
    %2339 = vmatprep.subr.mxu0 0.0
    %2340 = vmatpush2.msra.mxu0 0.0
    %2341 = vmatprep.subr.mxu0 0.0
    %2342 = vmatpush2.msra.mxu0 0.0
    %2343 = vmatprep.subr.mxu0 0.0
    %2344 = vmatpush2.msra.mxu0 0.0
    %2345 = vmatprep.subr.mxu0 0.0
    %2346 = vmatpush2.msra.mxu0 0.0
    %2347 = vmatprep.subr.mxu0 0.0
    %2348 = vmatpush2.msra.mxu0 0.0
    %2349 = vmatprep.subr.mxu0 0.0
    %2350 = vmatpush2.msra.mxu0 0.0
    %2351 = vmatprep.subr.mxu0 0.0
    %2352 = vmatpush2.msra.mxu0 0.0
    %2353 = vmatprep.subr.mxu0 0.0
    %2354 = vmatpush2.msra.mxu0 0.0
    %2355 = vmatprep.subr.mxu0 0.0
    %2356 = vmatpush2.msra.mxu0 0.0
    %2357 = vmatprep.subr.mxu0 0.0
    %2358 = vmatpush2.msra.mxu0 0.0
    %2359 = vmatprep.subr.mxu0 0.0
    %2360 = vmatpush2.msra.mxu0 0.0
    %2361 = vmatprep.subr.mxu0 0.0
    %2362 = vmatpush2.msra.mxu0 0.0
    %2363 = vmatprep.subr.mxu0 0.0
    %2364 = vmatpush2.msra.mxu0 0.0
    %2365 = vmatprep.subr.mxu0 0.0
    %2366 = vmatpush2.msra.mxu0 0.0
    %2367 = vmatprep.subr.mxu0 0.0
    %2368 = vmatpush2.msra.mxu0 0.0
    %2369 = vmatprep.subr.mxu0 0.0
    %2370 = vmatpush2.msra.mxu0 0.0
    %2371 = vmatprep.mubr.f32.mxu0 0.0
    %2372 = vmatmul.mubr.f32.gmra.mxu0 0.0
    %v2373 = vpop.f32.mrf.mxu0
    %v2374 = vadd.f32 %v2232, %v2373
    %v2375 = vpop.f32.mrf.mxu0
    %2376 = vdwg.mxu0
    %v2377 = vadd.f32 %v2217, %v2303
    %v2378 = vxor.u32 %v2377, 2147483648
    %v2379 = vmul.f32 %v2378, 1.442695
    %v2380 = vpow.pop %v2379
    %v2381 = vadd.f32 %v2380, 1.0
    %v2382 = vrcp.pop %v2381
    %v2383 = vmul.f32 1.0, %v2382
    %v2384 = vadd.f32 %v2218, %v2305
    %v2385 = vxor.u32 %v2384, 2147483648
    %v2386 = vmul.f32 %v2385, 1.442695
    %v2387 = vpow.pop %v2386
    %v2388 = vadd.f32 %v2387, 1.0
    %v2389 = vrcp.pop %v2388
    %v2390 = vmul.f32 1.0, %v2389
    %v2391 = vmul.f32 %v2383, %v2374
    %v2392 = vadd.f32 %v2219, %v2391
    %v2393 = vtanh.pop %v2392
    %v2394 = vsub.f32 0.0, %v2393
    %v2395 = vmul.f32 %v2390, %v2394
    %v2396 = vadd.f32 %v2393, %v2395
    %v2397 = vld [vmem:[%s684] sm:$0xff]
    %v2398 = vld [vmem:[%s684 + $0x8] sm:$0xff]
    %v2399 = vld [vmem:[%s684 + $0x10] sm:$0xff]
    %2400 = vmatprep.subr.mxu0 %v1947
    %2401 = vmatpush1.msra.mxu0 %v1946
    %2402 = vmatprep.subr.mxu0 %v1944
    %2403 = vmatpush1.msra.mxu0 %v1943
    %2404 = vmatprep.subr.mxu0 %v1941
    %2405 = vmatpush1.msra.mxu0 %v1940
    %2406 = vmatprep.subr.mxu0 %v1938
    %2407 = vmatpush1.msra.mxu0 %v1937
    %2408 = vmatprep.subr.mxu0 %v1935
    %2409 = vmatpush1.msra.mxu0 %v1934
    %2410 = vmatprep.subr.mxu0 %v1932
    %2411 = vmatpush1.msra.mxu0 %v1931
    %2412 = vmatprep.subr.mxu0 %v1929
    %2413 = vmatpush1.msra.mxu0 %v1928
    %2414 = vmatprep.subr.mxu0 %v1926
    %2415 = vmatpush1.msra.mxu0 %v1925
    %2416 = vmatprep.subr.mxu0 %v1923
    %2417 = vmatpush1.msra.mxu0 %v1922
    %2418 = vmatprep.subr.mxu0 %v1920
    %2419 = vmatpush1.msra.mxu0 %v1919
    %2420 = vmatprep.subr.mxu0 %v1917
    %2421 = vmatpush1.msra.mxu0 %v1916
    %2422 = vmatprep.subr.mxu0 %v1914
    %2423 = vmatpush1.msra.mxu0 %v1913
    %2424 = vmatprep.subr.mxu0 %v1911
    %2425 = vmatpush1.msra.mxu0 %v1910
    %2426 = vmatprep.subr.mxu0 %v1908
    %2427 = vmatpush1.msra.mxu0 %v1907
    %2428 = vmatprep.subr.mxu0 %v1905
    %2429 = vmatpush1.msra.mxu0 %v1904
    %2430 = vmatprep.subr.mxu0 %v1902
    %2431 = vmatpush1.msra.mxu0 %v1901
    %2432 = vmatprep.subr.mxu0 0.0
    %2433 = vmatpush2.msra.mxu0 0.0
    %2434 = vmatprep.subr.mxu0 0.0
    %2435 = vmatpush2.msra.mxu0 0.0
    %2436 = vmatprep.subr.mxu0 0.0
    %2437 = vmatpush2.msra.mxu0 0.0
    %2438 = vmatprep.subr.mxu0 0.0
    %2439 = vmatpush2.msra.mxu0 0.0
    %2440 = vmatprep.subr.mxu0 0.0
    %2441 = vmatpush2.msra.mxu0 0.0
    %2442 = vmatprep.subr.mxu0 0.0
    %2443 = vmatpush2.msra.mxu0 0.0
    %2444 = vmatprep.subr.mxu0 0.0
    %2445 = vmatpush2.msra.mxu0 0.0
    %2446 = vmatprep.subr.mxu0 0.0
    %2447 = vmatpush2.msra.mxu0 0.0
    %2448 = vmatprep.subr.mxu0 0.0
    %2449 = vmatpush2.msra.mxu0 0.0
    %2450 = vmatprep.subr.mxu0 0.0
    %2451 = vmatpush2.msra.mxu0 0.0
    %2452 = vmatprep.subr.mxu0 0.0
    %2453 = vmatpush2.msra.mxu0 0.0
    %2454 = vmatprep.subr.mxu0 0.0
    %2455 = vmatpush2.msra.mxu0 0.0
    %2456 = vmatprep.subr.mxu0 0.0
    %2457 = vmatpush2.msra.mxu0 0.0
    %2458 = vmatprep.subr.mxu0 0.0
    %2459 = vmatpush2.msra.mxu0 0.0
    %2460 = vmatprep.subr.mxu0 0.0
    %2461 = vmatpush2.msra.mxu0 0.0
    %2462 = vmatprep.subr.mxu0 0.0
    %2463 = vmatpush2.msra.mxu0 0.0
    %2464 = vmatprep.mubr.f32.mxu0 0.0
    %2465 = vmatmul.mubr.f32.gmra.mxu0 %v2396
    %v2466 = vpop.f32.mrf.mxu0
    %v2467 = vadd.f32 %v2224, %v2466
    %v2468 = vpop.f32.mrf.mxu0
    %v2469 = vadd.f32 %v2228, %v2468
    %2470 = vdwg.mxu0
    %2471 = vmatprep.subr.mxu0 0.0
    %2472 = vmatpush1.msra.mxu0 %v1948
    %2473 = vmatprep.subr.mxu0 0.0
    %2474 = vmatpush1.msra.mxu0 %v1945
    %2475 = vmatprep.subr.mxu0 0.0
    %2476 = vmatpush1.msra.mxu0 %v1942
    %2477 = vmatprep.subr.mxu0 0.0
    %2478 = vmatpush1.msra.mxu0 %v1939
    %2479 = vmatprep.subr.mxu0 0.0
    %2480 = vmatpush1.msra.mxu0 %v1936
    %2481 = vmatprep.subr.mxu0 0.0
    %2482 = vmatpush1.msra.mxu0 %v1933
    %2483 = vmatprep.subr.mxu0 0.0
    %2484 = vmatpush1.msra.mxu0 %v1930
    %2485 = vmatprep.subr.mxu0 0.0
    %2486 = vmatpush1.msra.mxu0 %v1927
    %2487 = vmatprep.subr.mxu0 0.0
    %2488 = vmatpush1.msra.mxu0 %v1924
    %2489 = vmatprep.subr.mxu0 0.0
    %2490 = vmatpush1.msra.mxu0 %v1921
    %2491 = vmatprep.subr.mxu0 0.0
    %2492 = vmatpush1.msra.mxu0 %v1918
    %2493 = vmatprep.subr.mxu0 0.0
    %2494 = vmatpush1.msra.mxu0 %v1915
    %2495 = vmatprep.subr.mxu0 0.0
    %2496 = vmatpush1.msra.mxu0 %v1912
    %2497 = vmatprep.subr.mxu0 0.0
    %2498 = vmatpush1.msra.mxu0 %v1909
    %2499 = vmatprep.subr.mxu0 0.0
    %2500 = vmatpush1.msra.mxu0 %v1906
    %2501 = vmatprep.subr.mxu0 0.0
    %2502 = vmatpush1.msra.mxu0 %v1903
    %2503 = vmatprep.subr.mxu0 0.0
    %2504 = vmatpush2.msra.mxu0 0.0
    %2505 = vmatprep.subr.mxu0 0.0
    %2506 = vmatpush2.msra.mxu0 0.0
    %2507 = vmatprep.subr.mxu0 0.0
    %2508 = vmatpush2.msra.mxu0 0.0
    %2509 = vmatprep.subr.mxu0 0.0
    %2510 = vmatpush2.msra.mxu0 0.0
    %2511 = vmatprep.subr.mxu0 0.0
    %2512 = vmatpush2.msra.mxu0 0.0
    %2513 = vmatprep.subr.mxu0 0.0
    %2514 = vmatpush2.msra.mxu0 0.0
    %2515 = vmatprep.subr.mxu0 0.0
    %2516 = vmatpush2.msra.mxu0 0.0
    %2517 = vmatprep.subr.mxu0 0.0
    %2518 = vmatpush2.msra.mxu0 0.0
    %2519 = vmatprep.subr.mxu0 0.0
    %2520 = vmatpush2.msra.mxu0 0.0
    %2521 = vmatprep.subr.mxu0 0.0
    %2522 = vmatpush2.msra.mxu0 0.0
    %2523 = vmatprep.subr.mxu0 0.0
    %2524 = vmatpush2.msra.mxu0 0.0
    %2525 = vmatprep.subr.mxu0 0.0
    %2526 = vmatpush2.msra.mxu0 0.0
    %2527 = vmatprep.subr.mxu0 0.0
    %2528 = vmatpush2.msra.mxu0 0.0
    %2529 = vmatprep.subr.mxu0 0.0
    %2530 = vmatpush2.msra.mxu0 0.0
    %2531 = vmatprep.subr.mxu0 0.0
    %2532 = vmatpush2.msra.mxu0 0.0
    %2533 = vmatprep.subr.mxu0 0.0
    %2534 = vmatpush2.msra.mxu0 0.0
    %2535 = vmatprep.mubr.f32.mxu0 0.0
    %2536 = vmatmul.mubr.f32.gmra.mxu0 %v2396
    %v2537 = vpop.f32.mrf.mxu0
    %v2538 = vadd.f32 %v2232, %v2537
    %v2539 = vpop.f32.mrf.mxu0
    %2540 = vdwg.mxu0
    %v2541 = vadd.f32 %v2397, %v2467
    %v2542 = vxor.u32 %v2541, 2147483648
    %v2543 = vmul.f32 %v2542, 1.442695
    %v2544 = vpow.pop %v2543
    %v2545 = vadd.f32 %v2544, 1.0
    %v2546 = vrcp.pop %v2545
    %v2547 = vmul.f32 1.0, %v2546
    %v2548 = vadd.f32 %v2398, %v2469
    %v2549 = vxor.u32 %v2548, 2147483648
    %v2550 = vmul.f32 %v2549, 1.442695
    %v2551 = vpow.pop %v2550
    %v2552 = vadd.f32 %v2551, 1.0
    %v2553 = vrcp.pop %v2552
    %v2554 = vmul.f32 1.0, %v2553
    %v2555 = vmul.f32 %v2547, %v2538
    %v2556 = vadd.f32 %v2399, %v2555
    %v2557 = vtanh.pop %v2556
    %v2558 = vsub.f32 %v2396, %v2557
    %v2559 = vmul.f32 %v2554, %v2558
    %v2560 = vadd.f32 %v2557, %v2559
    %v2561 = vld [vmem:[%s851] sm:$0xff]
    %v2562 = vld [vmem:[%s851 + $0x8] sm:$0xff]
    %v2563 = vld [vmem:[%s851 + $0x10] sm:$0xff]
    %2564 = vmatprep.subr.mxu0 %v1947
    %2565 = vmatpush1.msra.mxu0 %v1946
    %2566 = vmatprep.subr.mxu0 %v1944
    %2567 = vmatpush1.msra.mxu0 %v1943
    %2568 = vmatprep.subr.mxu0 %v1941
    %2569 = vmatpush1.msra.mxu0 %v1940
    %2570 = vmatprep.subr.mxu0 %v1938
    %2571 = vmatpush1.msra.mxu0 %v1937
    %2572 = vmatprep.subr.mxu0 %v1935
    %2573 = vmatpush1.msra.mxu0 %v1934
    %2574 = vmatprep.subr.mxu0 %v1932
    %2575 = vmatpush1.msra.mxu0 %v1931
    %2576 = vmatprep.subr.mxu0 %v1929
    %2577 = vmatpush1.msra.mxu0 %v1928
    %2578 = vmatprep.subr.mxu0 %v1926
    %2579 = vmatpush1.msra.mxu0 %v1925
    %2580 = vmatprep.subr.mxu0 %v1923
    %2581 = vmatpush1.msra.mxu0 %v1922
    %2582 = vmatprep.subr.mxu0 %v1920
    %2583 = vmatpush1.msra.mxu0 %v1919
    %2584 = vmatprep.subr.mxu0 %v1917
    %2585 = vmatpush1.msra.mxu0 %v1916
    %2586 = vmatprep.subr.mxu0 %v1914
    %2587 = vmatpush1.msra.mxu0 %v1913
    %2588 = vmatprep.subr.mxu0 %v1911
    %2589 = vmatpush1.msra.mxu0 %v1910
    %2590 = vmatprep.subr.mxu0 %v1908
    %2591 = vmatpush1.msra.mxu0 %v1907
    %2592 = vmatprep.subr.mxu0 %v1905
    %2593 = vmatpush1.msra.mxu0 %v1904
    %2594 = vmatprep.subr.mxu0 %v1902
    %2595 = vmatpush1.msra.mxu0 %v1901
    %2596 = vmatprep.subr.mxu0 0.0
    %2597 = vmatpush2.msra.mxu0 0.0
    %2598 = vmatprep.subr.mxu0 0.0
    %2599 = vmatpush2.msra.mxu0 0.0
    %2600 = vmatprep.subr.mxu0 0.0
    %2601 = vmatpush2.msra.mxu0 0.0
    %2602 = vmatprep.subr.mxu0 0.0
    %2603 = vmatpush2.msra.mxu0 0.0
    %2604 = vmatprep.subr.mxu0 0.0
    %2605 = vmatpush2.msra.mxu0 0.0
    %2606 = vmatprep.subr.mxu0 0.0
    %2607 = vmatpush2.msra.mxu0 0.0
    %2608 = vmatprep.subr.mxu0 0.0
    %2609 = vmatpush2.msra.mxu0 0.0
    %2610 = vmatprep.subr.mxu0 0.0
    %2611 = vmatpush2.msra.mxu0 0.0
    %2612 = vmatprep.subr.mxu0 0.0
    %2613 = vmatpush2.msra.mxu0 0.0
    %2614 = vmatprep.subr.mxu0 0.0
    %2615 = vmatpush2.msra.mxu0 0.0
    %2616 = vmatprep.subr.mxu0 0.0
    %2617 = vmatpush2.msra.mxu0 0.0
    %2618 = vmatprep.subr.mxu0 0.0
    %2619 = vmatpush2.msra.mxu0 0.0
    %2620 = vmatprep.subr.mxu0 0.0
    %2621 = vmatpush2.msra.mxu0 0.0
    %2622 = vmatprep.subr.mxu0 0.0
    %2623 = vmatpush2.msra.mxu0 0.0
    %2624 = vmatprep.subr.mxu0 0.0
    %2625 = vmatpush2.msra.mxu0 0.0
    %2626 = vmatprep.subr.mxu0 0.0
    %2627 = vmatpush2.msra.mxu0 0.0
    %2628 = vmatprep.mubr.f32.mxu0 0.0
    %2629 = vmatmul.mubr.f32.gmra.mxu0 %v2560
    %v2630 = vpop.f32.mrf.mxu0
    %v2631 = vadd.f32 %v2224, %v2630
    %v2632 = vpop.f32.mrf.mxu0
    %v2633 = vadd.f32 %v2228, %v2632
    %2634 = vdwg.mxu0
    %2635 = vmatprep.subr.mxu0 0.0
    %2636 = vmatpush1.msra.mxu0 %v1948
    %2637 = vmatprep.subr.mxu0 0.0
    %2638 = vmatpush1.msra.mxu0 %v1945
    %2639 = vmatprep.subr.mxu0 0.0
    %2640 = vmatpush1.msra.mxu0 %v1942
    %2641 = vmatprep.subr.mxu0 0.0
    %2642 = vmatpush1.msra.mxu0 %v1939
    %2643 = vmatprep.subr.mxu0 0.0
    %2644 = vmatpush1.msra.mxu0 %v1936
    %2645 = vmatprep.subr.mxu0 0.0
    %2646 = vmatpush1.msra.mxu0 %v1933
    %2647 = vmatprep.subr.mxu0 0.0
    %2648 = vmatpush1.msra.mxu0 %v1930
    %2649 = vmatprep.subr.mxu0 0.0
    %2650 = vmatpush1.msra.mxu0 %v1927
    %2651 = vmatprep.subr.mxu0 0.0
    %2652 = vmatpush1.msra.mxu0 %v1924
    %2653 = vmatprep.subr.mxu0 0.0
    %2654 = vmatpush1.msra.mxu0 %v1921
    %2655 = vmatprep.subr.mxu0 0.0
    %2656 = vmatpush1.msra.mxu0 %v1918
    %2657 = vmatprep.subr.mxu0 0.0
    %2658 = vmatpush1.msra.mxu0 %v1915
    %2659 = vmatprep.subr.mxu0 0.0
    %2660 = vmatpush1.msra.mxu0 %v1912
    %2661 = vmatprep.subr.mxu0 0.0
    %2662 = vmatpush1.msra.mxu0 %v1909
    %2663 = vmatprep.subr.mxu0 0.0
    %2664 = vmatpush1.msra.mxu0 %v1906
    %2665 = vmatprep.subr.mxu0 0.0
    %2666 = vmatpush1.msra.mxu0 %v1903
    %2667 = vmatprep.subr.mxu0 0.0
    %2668 = vmatpush2.msra.mxu0 0.0
    %2669 = vmatprep.subr.mxu0 0.0
    %2670 = vmatpush2.msra.mxu0 0.0
    %2671 = vmatprep.subr.mxu0 0.0
    %2672 = vmatpush2.msra.mxu0 0.0
    %2673 = vmatprep.subr.mxu0 0.0
    %2674 = vmatpush2.msra.mxu0 0.0
    %2675 = vmatprep.subr.mxu0 0.0
    %2676 = vmatpush2.msra.mxu0 0.0
    %2677 = vmatprep.subr.mxu0 0.0
    %2678 = vmatpush2.msra.mxu0 0.0
    %2679 = vmatprep.subr.mxu0 0.0
    %2680 = vmatpush2.msra.mxu0 0.0
    %2681 = vmatprep.subr.mxu0 0.0
    %2682 = vmatpush2.msra.mxu0 0.0
    %2683 = vmatprep.subr.mxu0 0.0
    %2684 = vmatpush2.msra.mxu0 0.0
    %2685 = vmatprep.subr.mxu0 0.0
    %2686 = vmatpush2.msra.mxu0 0.0
    %2687 = vmatprep.subr.mxu0 0.0
    %2688 = vmatpush2.msra.mxu0 0.0
    %2689 = vmatprep.subr.mxu0 0.0
    %2690 = vmatpush2.msra.mxu0 0.0
    %2691 = vmatprep.subr.mxu0 0.0
    %2692 = vmatpush2.msra.mxu0 0.0
    %2693 = vmatprep.subr.mxu0 0.0
    %2694 = vmatpush2.msra.mxu0 0.0
    %2695 = vmatprep.subr.mxu0 0.0
    %2696 = vmatpush2.msra.mxu0 0.0
    %2697 = vmatprep.subr.mxu0 0.0
    %2698 = vmatpush2.msra.mxu0 0.0
    %2699 = vmatprep.mubr.f32.mxu0 0.0
    %2700 = vmatmul.mubr.f32.gmra.mxu0 %v2560
    %v2701 = vpop.f32.mrf.mxu0
    %v2702 = vadd.f32 %v2232, %v2701
    %v2703 = vpop.f32.mrf.mxu0
    %2704 = vdwg.mxu0
    %v2705 = vadd.f32 %v2561, %v2631
    %v2706 = vxor.u32 %v2705, 2147483648
    %v2707 = vmul.f32 %v2706, 1.442695
    %v2708 = vpow.pop %v2707
    %v2709 = vadd.f32 %v2708, 1.0
    %v2710 = vrcp.pop %v2709
    %v2711 = vmul.f32 1.0, %v2710
    %v2712 = vadd.f32 %v2562, %v2633
    %v2713 = vxor.u32 %v2712, 2147483648
    %v2714 = vmul.f32 %v2713, 1.442695
    %v2715 = vpow.pop %v2714
    %v2716 = vadd.f32 %v2715, 1.0
    %v2717 = vrcp.pop %v2716
    %v2718 = vmul.f32 1.0, %v2717
    %v2719 = vmul.f32 %v2711, %v2702
    %v2720 = vadd.f32 %v2563, %v2719
    %v2721 = vtanh.pop %v2720
    %v2722 = vsub.f32 %v2560, %v2721
    %v2723 = vmul.f32 %v2718, %v2722
    %v2724 = vadd.f32 %v2721, %v2723
    %v2725 = vld [vmem:[%s1018] sm:$0xff]
    %v2726 = vld [vmem:[%s1018 + $0x8] sm:$0xff]
    %v2727 = vld [vmem:[%s1018 + $0x10] sm:$0xff]
    %2728 = vmatprep.subr.mxu0 %v1947
    %2729 = vmatpush1.msra.mxu0 %v1946
    %2730 = vmatprep.subr.mxu0 %v1944
    %2731 = vmatpush1.msra.mxu0 %v1943
    %2732 = vmatprep.subr.mxu0 %v1941
    %2733 = vmatpush1.msra.mxu0 %v1940
    %2734 = vmatprep.subr.mxu0 %v1938
    %2735 = vmatpush1.msra.mxu0 %v1937
    %2736 = vmatprep.subr.mxu0 %v1935
    %2737 = vmatpush1.msra.mxu0 %v1934
    %2738 = vmatprep.subr.mxu0 %v1932
    %2739 = vmatpush1.msra.mxu0 %v1931
    %2740 = vmatprep.subr.mxu0 %v1929
    %2741 = vmatpush1.msra.mxu0 %v1928
    %2742 = vmatprep.subr.mxu0 %v1926
    %2743 = vmatpush1.msra.mxu0 %v1925
    %2744 = vmatprep.subr.mxu0 %v1923
    %2745 = vmatpush1.msra.mxu0 %v1922
    %2746 = vmatprep.subr.mxu0 %v1920
    %2747 = vmatpush1.msra.mxu0 %v1919
    %2748 = vmatprep.subr.mxu0 %v1917
    %2749 = vmatpush1.msra.mxu0 %v1916
    %2750 = vmatprep.subr.mxu0 %v1914
    %2751 = vmatpush1.msra.mxu0 %v1913
    %2752 = vmatprep.subr.mxu0 %v1911
    %2753 = vmatpush1.msra.mxu0 %v1910
    %2754 = vmatprep.subr.mxu0 %v1908
    %2755 = vmatpush1.msra.mxu0 %v1907
    %2756 = vmatprep.subr.mxu0 %v1905
    %2757 = vmatpush1.msra.mxu0 %v1904
    %2758 = vmatprep.subr.mxu0 %v1902
    %2759 = vmatpush1.msra.mxu0 %v1901
    %2760 = vmatprep.subr.mxu0 0.0
    %2761 = vmatpush2.msra.mxu0 0.0
    %2762 = vmatprep.subr.mxu0 0.0
    %2763 = vmatpush2.msra.mxu0 0.0
    %2764 = vmatprep.subr.mxu0 0.0
    %2765 = vmatpush2.msra.mxu0 0.0
    %2766 = vmatprep.subr.mxu0 0.0
    %2767 = vmatpush2.msra.mxu0 0.0
    %2768 = vmatprep.subr.mxu0 0.0
    %2769 = vmatpush2.msra.mxu0 0.0
    %2770 = vmatprep.subr.mxu0 0.0
    %2771 = vmatpush2.msra.mxu0 0.0
    %2772 = vmatprep.subr.mxu0 0.0
    %2773 = vmatpush2.msra.mxu0 0.0
    %2774 = vmatprep.subr.mxu0 0.0
    %2775 = vmatpush2.msra.mxu0 0.0
    %2776 = vmatprep.subr.mxu0 0.0
    %2777 = vmatpush2.msra.mxu0 0.0
    %2778 = vmatprep.subr.mxu0 0.0
    %2779 = vmatpush2.msra.mxu0 0.0
    %2780 = vmatprep.subr.mxu0 0.0
    %2781 = vmatpush2.msra.mxu0 0.0
    %2782 = vmatprep.subr.mxu0 0.0
    %2783 = vmatpush2.msra.mxu0 0.0
    %2784 = vmatprep.subr.mxu0 0.0
    %2785 = vmatpush2.msra.mxu0 0.0
    %2786 = vmatprep.subr.mxu0 0.0
    %2787 = vmatpush2.msra.mxu0 0.0
    %2788 = vmatprep.subr.mxu0 0.0
    %2789 = vmatpush2.msra.mxu0 0.0
    %2790 = vmatprep.subr.mxu0 0.0
    %2791 = vmatpush2.msra.mxu0 0.0
    %2792 = vmatprep.mubr.f32.mxu0 0.0
    %2793 = vmatmul.mubr.f32.gmra.mxu0 %v2724
    %v2794 = vpop.f32.mrf.mxu0
    %v2795 = vadd.f32 %v2224, %v2794
    %v2796 = vpop.f32.mrf.mxu0
    %v2797 = vadd.f32 %v2228, %v2796
    %2798 = vdwg.mxu0
    %2799 = vmatprep.subr.mxu0 0.0
    %2800 = vmatpush1.msra.mxu0 %v1948
    %2801 = vmatprep.subr.mxu0 0.0
    %2802 = vmatpush1.msra.mxu0 %v1945
    %2803 = vmatprep.subr.mxu0 0.0
    %2804 = vmatpush1.msra.mxu0 %v1942
    %2805 = vmatprep.subr.mxu0 0.0
    %2806 = vmatpush1.msra.mxu0 %v1939
    %2807 = vmatprep.subr.mxu0 0.0
    %2808 = vmatpush1.msra.mxu0 %v1936
    %2809 = vmatprep.subr.mxu0 0.0
    %2810 = vmatpush1.msra.mxu0 %v1933
    %2811 = vmatprep.subr.mxu0 0.0
    %2812 = vmatpush1.msra.mxu0 %v1930
    %2813 = vmatprep.subr.mxu0 0.0
    %2814 = vmatpush1.msra.mxu0 %v1927
    %2815 = vmatprep.subr.mxu0 0.0
    %2816 = vmatpush1.msra.mxu0 %v1924
    %2817 = vmatprep.subr.mxu0 0.0
    %2818 = vmatpush1.msra.mxu0 %v1921
    %2819 = vmatprep.subr.mxu0 0.0
    %2820 = vmatpush1.msra.mxu0 %v1918
    %2821 = vmatprep.subr.mxu0 0.0
    %2822 = vmatpush1.msra.mxu0 %v1915
    %2823 = vmatprep.subr.mxu0 0.0
    %2824 = vmatpush1.msra.mxu0 %v1912
    %2825 = vmatprep.subr.mxu0 0.0
    %2826 = vmatpush1.msra.mxu0 %v1909
    %2827 = vmatprep.subr.mxu0 0.0
    %2828 = vmatpush1.msra.mxu0 %v1906
    %2829 = vmatprep.subr.mxu0 0.0
    %2830 = vmatpush1.msra.mxu0 %v1903
    %2831 = vmatprep.subr.mxu0 0.0
    %2832 = vmatpush2.msra.mxu0 0.0
    %2833 = vmatprep.subr.mxu0 0.0
    %2834 = vmatpush2.msra.mxu0 0.0
    %2835 = vmatprep.subr.mxu0 0.0
    %2836 = vmatpush2.msra.mxu0 0.0
    %2837 = vmatprep.subr.mxu0 0.0
    %2838 = vmatpush2.msra.mxu0 0.0
    %2839 = vmatprep.subr.mxu0 0.0
    %2840 = vmatpush2.msra.mxu0 0.0
    %2841 = vmatprep.subr.mxu0 0.0
    %2842 = vmatpush2.msra.mxu0 0.0
    %2843 = vmatprep.subr.mxu0 0.0
    %2844 = vmatpush2.msra.mxu0 0.0
    %2845 = vmatprep.subr.mxu0 0.0
    %2846 = vmatpush2.msra.mxu0 0.0
    %2847 = vmatprep.subr.mxu0 0.0
    %2848 = vmatpush2.msra.mxu0 0.0
    %2849 = vmatprep.subr.mxu0 0.0
    %2850 = vmatpush2.msra.mxu0 0.0
    %2851 = vmatprep.subr.mxu0 0.0
    %2852 = vmatpush2.msra.mxu0 0.0
    %2853 = vmatprep.subr.mxu0 0.0
    %2854 = vmatpush2.msra.mxu0 0.0
    %2855 = vmatprep.subr.mxu0 0.0
    %2856 = vmatpush2.msra.mxu0 0.0
    %2857 = vmatprep.subr.mxu0 0.0
    %2858 = vmatpush2.msra.mxu0 0.0
    %2859 = vmatprep.subr.mxu0 0.0
    %2860 = vmatpush2.msra.mxu0 0.0
    %2861 = vmatprep.subr.mxu0 0.0
    %2862 = vmatpush2.msra.mxu0 0.0
    %2863 = vmatprep.mubr.f32.mxu0 0.0
    %2864 = vmatmul.mubr.f32.gmra.mxu0 %v2724
    %v2865 = vpop.f32.mrf.mxu0
    %v2866 = vadd.f32 %v2232, %v2865
    %v2867 = vpop.f32.mrf.mxu0
    %2868 = vdwg.mxu0
    %v2869 = vadd.f32 %v2725, %v2795
    %v2870 = vxor.u32 %v2869, 2147483648
    %v2871 = vmul.f32 %v2870, 1.442695
    %v2872 = vpow.pop %v2871
    %v2873 = vadd.f32 %v2872, 1.0
    %v2874 = vrcp.pop %v2873
    %v2875 = vmul.f32 1.0, %v2874
    %v2876 = vadd.f32 %v2726, %v2797
    %v2877 = vxor.u32 %v2876, 2147483648
    %v2878 = vmul.f32 %v2877, 1.442695
    %v2879 = vpow.pop %v2878
    %v2880 = vadd.f32 %v2879, 1.0
    %v2881 = vrcp.pop %v2880
    %v2882 = vmul.f32 1.0, %v2881
    %v2883 = vmul.f32 %v2875, %v2866
    %v2884 = vadd.f32 %v2727, %v2883
    %v2885 = vtanh.pop %v2884
    %v2886 = vsub.f32 %v2724, %v2885
    %v2887 = vmul.f32 %v2882, %v2886
    %v2888 = vadd.f32 %v2885, %v2887
    %v2889 = vld [vmem:[%s1185] sm:$0xff]
    %v2890 = vld [vmem:[%s1185 + $0x8] sm:$0xff]
    %v2891 = vld [vmem:[%s1185 + $0x10] sm:$0xff]
    %2892 = vmatprep.subr.mxu0 %v1947
    %2893 = vmatpush1.msra.mxu0 %v1946
    %2894 = vmatprep.subr.mxu0 %v1944
    %2895 = vmatpush1.msra.mxu0 %v1943
    %2896 = vmatprep.subr.mxu0 %v1941
    %2897 = vmatpush1.msra.mxu0 %v1940
    %2898 = vmatprep.subr.mxu0 %v1938
    %2899 = vmatpush1.msra.mxu0 %v1937
    %2900 = vmatprep.subr.mxu0 %v1935
    %2901 = vmatpush1.msra.mxu0 %v1934
    %2902 = vmatprep.subr.mxu0 %v1932
    %2903 = vmatpush1.msra.mxu0 %v1931
    %2904 = vmatprep.subr.mxu0 %v1929
    %2905 = vmatpush1.msra.mxu0 %v1928
    %2906 = vmatprep.subr.mxu0 %v1926
    %2907 = vmatpush1.msra.mxu0 %v1925
    %2908 = vmatprep.subr.mxu0 %v1923
    %2909 = vmatpush1.msra.mxu0 %v1922
    %2910 = vmatprep.subr.mxu0 %v1920
    %2911 = vmatpush1.msra.mxu0 %v1919
    %2912 = vmatprep.subr.mxu0 %v1917
    %2913 = vmatpush1.msra.mxu0 %v1916
    %2914 = vmatprep.subr.mxu0 %v1914
    %2915 = vmatpush1.msra.mxu0 %v1913
    %2916 = vmatprep.subr.mxu0 %v1911
    %2917 = vmatpush1.msra.mxu0 %v1910
    %2918 = vmatprep.subr.mxu0 %v1908
    %2919 = vmatpush1.msra.mxu0 %v1907
    %2920 = vmatprep.subr.mxu0 %v1905
    %2921 = vmatpush1.msra.mxu0 %v1904
    %2922 = vmatprep.subr.mxu0 %v1902
    %2923 = vmatpush1.msra.mxu0 %v1901
    %2924 = vmatprep.subr.mxu0 0.0
    %2925 = vmatpush2.msra.mxu0 0.0
    %2926 = vmatprep.subr.mxu0 0.0
    %2927 = vmatpush2.msra.mxu0 0.0
    %2928 = vmatprep.subr.mxu0 0.0
    %2929 = vmatpush2.msra.mxu0 0.0
    %2930 = vmatprep.subr.mxu0 0.0
    %2931 = vmatpush2.msra.mxu0 0.0
    %2932 = vmatprep.subr.mxu0 0.0
    %2933 = vmatpush2.msra.mxu0 0.0
    %2934 = vmatprep.subr.mxu0 0.0
    %2935 = vmatpush2.msra.mxu0 0.0
    %2936 = vmatprep.subr.mxu0 0.0
    %2937 = vmatpush2.msra.mxu0 0.0
    %2938 = vmatprep.subr.mxu0 0.0
    %2939 = vmatpush2.msra.mxu0 0.0
    %2940 = vmatprep.subr.mxu0 0.0
    %2941 = vmatpush2.msra.mxu0 0.0
    %2942 = vmatprep.subr.mxu0 0.0
    %2943 = vmatpush2.msra.mxu0 0.0
    %2944 = vmatprep.subr.mxu0 0.0
    %2945 = vmatpush2.msra.mxu0 0.0
    %2946 = vmatprep.subr.mxu0 0.0
    %2947 = vmatpush2.msra.mxu0 0.0
    %2948 = vmatprep.subr.mxu0 0.0
    %2949 = vmatpush2.msra.mxu0 0.0
    %2950 = vmatprep.subr.mxu0 0.0
    %2951 = vmatpush2.msra.mxu0 0.0
    %2952 = vmatprep.subr.mxu0 0.0
    %2953 = vmatpush2.msra.mxu0 0.0
    %2954 = vmatprep.subr.mxu0 0.0
    %2955 = vmatpush2.msra.mxu0 0.0
    %2956 = vmatprep.mubr.f32.mxu0 0.0
    %2957 = vmatmul.mubr.f32.gmra.mxu0 %v2888
    %v2958 = vpop.f32.mrf.mxu0
    %v2959 = vadd.f32 %v2224, %v2958
    %v2960 = vpop.f32.mrf.mxu0
    %v2961 = vadd.f32 %v2228, %v2960
    %2962 = vdwg.mxu0
    %2963 = vmatprep.subr.mxu0 0.0
    %2964 = vmatpush1.msra.mxu0 %v1948
    %2965 = vmatprep.subr.mxu0 0.0
    %2966 = vmatpush1.msra.mxu0 %v1945
    %2967 = vmatprep.subr.mxu0 0.0
    %2968 = vmatpush1.msra.mxu0 %v1942
    %2969 = vmatprep.subr.mxu0 0.0
    %2970 = vmatpush1.msra.mxu0 %v1939
    %2971 = vmatprep.subr.mxu0 0.0
    %2972 = vmatpush1.msra.mxu0 %v1936
    %2973 = vmatprep.subr.mxu0 0.0
    %2974 = vmatpush1.msra.mxu0 %v1933
    %2975 = vmatprep.subr.mxu0 0.0
    %2976 = vmatpush1.msra.mxu0 %v1930
    %2977 = vmatprep.subr.mxu0 0.0
    %2978 = vmatpush1.msra.mxu0 %v1927
    %2979 = vmatprep.subr.mxu0 0.0
    %2980 = vmatpush1.msra.mxu0 %v1924
    %2981 = vmatprep.subr.mxu0 0.0
    %2982 = vmatpush1.msra.mxu0 %v1921
    %2983 = vmatprep.subr.mxu0 0.0
    %2984 = vmatpush1.msra.mxu0 %v1918
    %2985 = vmatprep.subr.mxu0 0.0
    %2986 = vmatpush1.msra.mxu0 %v1915
    %2987 = vmatprep.subr.mxu0 0.0
    %2988 = vmatpush1.msra.mxu0 %v1912
    %2989 = vmatprep.subr.mxu0 0.0
    %2990 = vmatpush1.msra.mxu0 %v1909
    %2991 = vmatprep.subr.mxu0 0.0
    %2992 = vmatpush1.msra.mxu0 %v1906
    %2993 = vmatprep.subr.mxu0 0.0
    %2994 = vmatpush1.msra.mxu0 %v1903
    %2995 = vmatprep.subr.mxu0 0.0
    %2996 = vmatpush2.msra.mxu0 0.0
    %2997 = vmatprep.subr.mxu0 0.0
    %2998 = vmatpush2.msra.mxu0 0.0
    %2999 = vmatprep.subr.mxu0 0.0
    %3000 = vmatpush2.msra.mxu0 0.0
    %3001 = vmatprep.subr.mxu0 0.0
    %3002 = vmatpush2.msra.mxu0 0.0
    %3003 = vmatprep.subr.mxu0 0.0
    %3004 = vmatpush2.msra.mxu0 0.0
    %3005 = vmatprep.subr.mxu0 0.0
    %3006 = vmatpush2.msra.mxu0 0.0
    %3007 = vmatprep.subr.mxu0 0.0
    %3008 = vmatpush2.msra.mxu0 0.0
    %3009 = vmatprep.subr.mxu0 0.0
    %3010 = vmatpush2.msra.mxu0 0.0
    %3011 = vmatprep.subr.mxu0 0.0
    %3012 = vmatpush2.msra.mxu0 0.0
    %3013 = vmatprep.subr.mxu0 0.0
    %3014 = vmatpush2.msra.mxu0 0.0
    %3015 = vmatprep.subr.mxu0 0.0
    %3016 = vmatpush2.msra.mxu0 0.0
    %3017 = vmatprep.subr.mxu0 0.0
    %3018 = vmatpush2.msra.mxu0 0.0
    %3019 = vmatprep.subr.mxu0 0.0
    %3020 = vmatpush2.msra.mxu0 0.0
    %3021 = vmatprep.subr.mxu0 0.0
    %3022 = vmatpush2.msra.mxu0 0.0
    %3023 = vmatprep.subr.mxu0 0.0
    %3024 = vmatpush2.msra.mxu0 0.0
    %3025 = vmatprep.subr.mxu0 0.0
    %3026 = vmatpush2.msra.mxu0 0.0
    %3027 = vmatprep.mubr.f32.mxu0 0.0
    %3028 = vmatmul.mubr.f32.gmra.mxu0 %v2888
    %v3029 = vpop.f32.mrf.mxu0
    %v3030 = vadd.f32 %v2232, %v3029
    %v3031 = vpop.f32.mrf.mxu0
    %3032 = vdwg.mxu0
    %v3033 = vadd.f32 %v2889, %v2959
    %v3034 = vxor.u32 %v3033, 2147483648
    %v3035 = vmul.f32 %v3034, 1.442695
    %v3036 = vpow.pop %v3035
    %v3037 = vadd.f32 %v3036, 1.0
    %v3038 = vrcp.pop %v3037
    %v3039 = vmul.f32 1.0, %v3038
    %v3040 = vadd.f32 %v2890, %v2961
    %v3041 = vxor.u32 %v3040, 2147483648
    %v3042 = vmul.f32 %v3041, 1.442695
    %v3043 = vpow.pop %v3042
    %v3044 = vadd.f32 %v3043, 1.0
    %v3045 = vrcp.pop %v3044
    %v3046 = vmul.f32 1.0, %v3045
    %v3047 = vmul.f32 %v3039, %v3030
    %v3048 = vadd.f32 %v2891, %v3047
    %v3049 = vtanh.pop %v3048
    %v3050 = vsub.f32 %v2888, %v3049
    %v3051 = vmul.f32 %v3046, %v3050
    %v3052 = vadd.f32 %v3049, %v3051
    %v3053 = vld [vmem:[%s1352] sm:$0xff]
    %v3054 = vld [vmem:[%s1352 + $0x8] sm:$0xff]
    %v3055 = vld [vmem:[%s1352 + $0x10] sm:$0xff]
    %3056 = vmatprep.subr.mxu0 %v1947
    %3057 = vmatpush1.msra.mxu0 %v1946
    %3058 = vmatprep.subr.mxu0 %v1944
    %3059 = vmatpush1.msra.mxu0 %v1943
    %3060 = vmatprep.subr.mxu0 %v1941
    %3061 = vmatpush1.msra.mxu0 %v1940
    %3062 = vmatprep.subr.mxu0 %v1938
    %3063 = vmatpush1.msra.mxu0 %v1937
    %3064 = vmatprep.subr.mxu0 %v1935
    %3065 = vmatpush1.msra.mxu0 %v1934
    %3066 = vmatprep.subr.mxu0 %v1932
    %3067 = vmatpush1.msra.mxu0 %v1931
    %3068 = vmatprep.subr.mxu0 %v1929
    %3069 = vmatpush1.msra.mxu0 %v1928
    %3070 = vmatprep.subr.mxu0 %v1926
    %3071 = vmatpush1.msra.mxu0 %v1925
    %3072 = vmatprep.subr.mxu0 %v1923
    %3073 = vmatpush1.msra.mxu0 %v1922
    %3074 = vmatprep.subr.mxu0 %v1920
    %3075 = vmatpush1.msra.mxu0 %v1919
    %3076 = vmatprep.subr.mxu0 %v1917
    %3077 = vmatpush1.msra.mxu0 %v1916
    %3078 = vmatprep.subr.mxu0 %v1914
    %3079 = vmatpush1.msra.mxu0 %v1913
    %3080 = vmatprep.subr.mxu0 %v1911
    %3081 = vmatpush1.msra.mxu0 %v1910
    %3082 = vmatprep.subr.mxu0 %v1908
    %3083 = vmatpush1.msra.mxu0 %v1907
    %3084 = vmatprep.subr.mxu0 %v1905
    %3085 = vmatpush1.msra.mxu0 %v1904
    %3086 = vmatprep.subr.mxu0 %v1902
    %3087 = vmatpush1.msra.mxu0 %v1901
    %3088 = vmatprep.subr.mxu0 0.0
    %3089 = vmatpush2.msra.mxu0 0.0
    %3090 = vmatprep.subr.mxu0 0.0
    %3091 = vmatpush2.msra.mxu0 0.0
    %3092 = vmatprep.subr.mxu0 0.0
    %3093 = vmatpush2.msra.mxu0 0.0
    %3094 = vmatprep.subr.mxu0 0.0
    %3095 = vmatpush2.msra.mxu0 0.0
    %3096 = vmatprep.subr.mxu0 0.0
    %3097 = vmatpush2.msra.mxu0 0.0
    %3098 = vmatprep.subr.mxu0 0.0
    %3099 = vmatpush2.msra.mxu0 0.0
    %3100 = vmatprep.subr.mxu0 0.0
    %3101 = vmatpush2.msra.mxu0 0.0
    %3102 = vmatprep.subr.mxu0 0.0
    %3103 = vmatpush2.msra.mxu0 0.0
    %3104 = vmatprep.subr.mxu0 0.0
    %3105 = vmatpush2.msra.mxu0 0.0
    %3106 = vmatprep.subr.mxu0 0.0
    %3107 = vmatpush2.msra.mxu0 0.0
    %3108 = vmatprep.subr.mxu0 0.0
    %3109 = vmatpush2.msra.mxu0 0.0
    %3110 = vmatprep.subr.mxu0 0.0
    %3111 = vmatpush2.msra.mxu0 0.0
    %3112 = vmatprep.subr.mxu0 0.0
    %3113 = vmatpush2.msra.mxu0 0.0
    %3114 = vmatprep.subr.mxu0 0.0
    %3115 = vmatpush2.msra.mxu0 0.0
    %3116 = vmatprep.subr.mxu0 0.0
    %3117 = vmatpush2.msra.mxu0 0.0
    %3118 = vmatprep.subr.mxu0 0.0
    %3119 = vmatpush2.msra.mxu0 0.0
    %3120 = vmatprep.mubr.f32.mxu0 0.0
    %3121 = vmatmul.mubr.f32.gmra.mxu0 %v3052
    %v3122 = vpop.f32.mrf.mxu0
    %v3123 = vadd.f32 %v2224, %v3122
    %v3124 = vpop.f32.mrf.mxu0
    %v3125 = vadd.f32 %v2228, %v3124
    %3126 = vdwg.mxu0
    %3127 = vmatprep.subr.mxu0 0.0
    %3128 = vmatpush1.msra.mxu0 %v1948
    %3129 = vmatprep.subr.mxu0 0.0
    %3130 = vmatpush1.msra.mxu0 %v1945
    %3131 = vmatprep.subr.mxu0 0.0
    %3132 = vmatpush1.msra.mxu0 %v1942
    %3133 = vmatprep.subr.mxu0 0.0
    %3134 = vmatpush1.msra.mxu0 %v1939
    %3135 = vmatprep.subr.mxu0 0.0
    %3136 = vmatpush1.msra.mxu0 %v1936
    %3137 = vmatprep.subr.mxu0 0.0
    %3138 = vmatpush1.msra.mxu0 %v1933
    %3139 = vmatprep.subr.mxu0 0.0
    %3140 = vmatpush1.msra.mxu0 %v1930
    %3141 = vmatprep.subr.mxu0 0.0
    %3142 = vmatpush1.msra.mxu0 %v1927
    %3143 = vmatprep.subr.mxu0 0.0
    %3144 = vmatpush1.msra.mxu0 %v1924
    %3145 = vmatprep.subr.mxu0 0.0
    %3146 = vmatpush1.msra.mxu0 %v1921
    %3147 = vmatprep.subr.mxu0 0.0
    %3148 = vmatpush1.msra.mxu0 %v1918
    %3149 = vmatprep.subr.mxu0 0.0
    %3150 = vmatpush1.msra.mxu0 %v1915
    %3151 = vmatprep.subr.mxu0 0.0
    %3152 = vmatpush1.msra.mxu0 %v1912
    %3153 = vmatprep.subr.mxu0 0.0
    %3154 = vmatpush1.msra.mxu0 %v1909
    %3155 = vmatprep.subr.mxu0 0.0
    %3156 = vmatpush1.msra.mxu0 %v1906
    %3157 = vmatprep.subr.mxu0 0.0
    %3158 = vmatpush1.msra.mxu0 %v1903
    %3159 = vmatprep.subr.mxu0 0.0
    %3160 = vmatpush2.msra.mxu0 0.0
    %3161 = vmatprep.subr.mxu0 0.0
    %3162 = vmatpush2.msra.mxu0 0.0
    %3163 = vmatprep.subr.mxu0 0.0
    %3164 = vmatpush2.msra.mxu0 0.0
    %3165 = vmatprep.subr.mxu0 0.0
    %3166 = vmatpush2.msra.mxu0 0.0
    %3167 = vmatprep.subr.mxu0 0.0
    %3168 = vmatpush2.msra.mxu0 0.0
    %3169 = vmatprep.subr.mxu0 0.0
    %3170 = vmatpush2.msra.mxu0 0.0
    %3171 = vmatprep.subr.mxu0 0.0
    %3172 = vmatpush2.msra.mxu0 0.0
    %3173 = vmatprep.subr.mxu0 0.0
    %3174 = vmatpush2.msra.mxu0 0.0
    %3175 = vmatprep.subr.mxu0 0.0
    %3176 = vmatpush2.msra.mxu0 0.0
    %3177 = vmatprep.subr.mxu0 0.0
    %3178 = vmatpush2.msra.mxu0 0.0
    %3179 = vmatprep.subr.mxu0 0.0
    %3180 = vmatpush2.msra.mxu0 0.0
    %3181 = vmatprep.subr.mxu0 0.0
    %3182 = vmatpush2.msra.mxu0 0.0
    %3183 = vmatprep.subr.mxu0 0.0
    %3184 = vmatpush2.msra.mxu0 0.0
    %3185 = vmatprep.subr.mxu0 0.0
    %3186 = vmatpush2.msra.mxu0 0.0
    %3187 = vmatprep.subr.mxu0 0.0
    %3188 = vmatpush2.msra.mxu0 0.0
    %3189 = vmatprep.subr.mxu0 0.0
    %3190 = vmatpush2.msra.mxu0 0.0
    %3191 = vmatprep.mubr.f32.mxu0 0.0
    %3192 = vmatmul.mubr.f32.gmra.mxu0 %v3052
    %v3193 = vpop.f32.mrf.mxu0
    %v3194 = vadd.f32 %v2232, %v3193
    %v3195 = vpop.f32.mrf.mxu0
    %3196 = vdwg.mxu0
    %v3197 = vadd.f32 %v3053, %v3123
    %v3198 = vxor.u32 %v3197, 2147483648
    %v3199 = vmul.f32 %v3198, 1.442695
    %v3200 = vpow.pop %v3199
    %v3201 = vadd.f32 %v3200, 1.0
    %v3202 = vrcp.pop %v3201
    %v3203 = vmul.f32 1.0, %v3202
    %v3204 = vadd.f32 %v3054, %v3125
    %v3205 = vxor.u32 %v3204, 2147483648
    %v3206 = vmul.f32 %v3205, 1.442695
    %v3207 = vpow.pop %v3206
    %v3208 = vadd.f32 %v3207, 1.0
    %v3209 = vrcp.pop %v3208
    %v3210 = vmul.f32 1.0, %v3209
    %v3211 = vmul.f32 %v3203, %v3194
    %v3212 = vadd.f32 %v3055, %v3211
    %v3213 = vtanh.pop %v3212
    %v3214 = vsub.f32 %v3052, %v3213
    %v3215 = vmul.f32 %v3210, %v3214
    %v3216 = vadd.f32 %v3213, %v3215
    %v3217 = vld [vmem:[%s1519] sm:$0xff]
    %v3218 = vld [vmem:[%s1519 + $0x8] sm:$0xff]
    %v3219 = vld [vmem:[%s1519 + $0x10] sm:$0xff]
    %3220 = vmatprep.subr.mxu0 %v1947
    %3221 = vmatpush1.msra.mxu0 %v1946
    %3222 = vmatprep.subr.mxu0 %v1944
    %3223 = vmatpush1.msra.mxu0 %v1943
    %3224 = vmatprep.subr.mxu0 %v1941
    %3225 = vmatpush1.msra.mxu0 %v1940
    %3226 = vmatprep.subr.mxu0 %v1938
    %3227 = vmatpush1.msra.mxu0 %v1937
    %3228 = vmatprep.subr.mxu0 %v1935
    %3229 = vmatpush1.msra.mxu0 %v1934
    %3230 = vmatprep.subr.mxu0 %v1932
    %3231 = vmatpush1.msra.mxu0 %v1931
    %3232 = vmatprep.subr.mxu0 %v1929
    %3233 = vmatpush1.msra.mxu0 %v1928
    %3234 = vmatprep.subr.mxu0 %v1926
    %3235 = vmatpush1.msra.mxu0 %v1925
    %3236 = vmatprep.subr.mxu0 %v1923
    %3237 = vmatpush1.msra.mxu0 %v1922
    %3238 = vmatprep.subr.mxu0 %v1920
    %3239 = vmatpush1.msra.mxu0 %v1919
    %3240 = vmatprep.subr.mxu0 %v1917
    %3241 = vmatpush1.msra.mxu0 %v1916
    %3242 = vmatprep.subr.mxu0 %v1914
    %3243 = vmatpush1.msra.mxu0 %v1913
    %3244 = vmatprep.subr.mxu0 %v1911
    %3245 = vmatpush1.msra.mxu0 %v1910
    %3246 = vmatprep.subr.mxu0 %v1908
    %3247 = vmatpush1.msra.mxu0 %v1907
    %3248 = vmatprep.subr.mxu0 %v1905
    %3249 = vmatpush1.msra.mxu0 %v1904
    %3250 = vmatprep.subr.mxu0 %v1902
    %3251 = vmatpush1.msra.mxu0 %v1901
    %3252 = vmatprep.subr.mxu0 0.0
    %3253 = vmatpush2.msra.mxu0 0.0
    %3254 = vmatprep.subr.mxu0 0.0
    %3255 = vmatpush2.msra.mxu0 0.0
    %3256 = vmatprep.subr.mxu0 0.0
    %3257 = vmatpush2.msra.mxu0 0.0
    %3258 = vmatprep.subr.mxu0 0.0
    %3259 = vmatpush2.msra.mxu0 0.0
    %3260 = vmatprep.subr.mxu0 0.0
    %3261 = vmatpush2.msra.mxu0 0.0
    %3262 = vmatprep.subr.mxu0 0.0
    %3263 = vmatpush2.msra.mxu0 0.0
    %3264 = vmatprep.subr.mxu0 0.0
    %3265 = vmatpush2.msra.mxu0 0.0
    %3266 = vmatprep.subr.mxu0 0.0
    %3267 = vmatpush2.msra.mxu0 0.0
    %3268 = vmatprep.subr.mxu0 0.0
    %3269 = vmatpush2.msra.mxu0 0.0
    %3270 = vmatprep.subr.mxu0 0.0
    %3271 = vmatpush2.msra.mxu0 0.0
    %3272 = vmatprep.subr.mxu0 0.0
    %3273 = vmatpush2.msra.mxu0 0.0
    %3274 = vmatprep.subr.mxu0 0.0
    %3275 = vmatpush2.msra.mxu0 0.0
    %3276 = vmatprep.subr.mxu0 0.0
    %3277 = vmatpush2.msra.mxu0 0.0
    %3278 = vmatprep.subr.mxu0 0.0
    %3279 = vmatpush2.msra.mxu0 0.0
    %3280 = vmatprep.subr.mxu0 0.0
    %3281 = vmatpush2.msra.mxu0 0.0
    %3282 = vmatprep.subr.mxu0 0.0
    %3283 = vmatpush2.msra.mxu0 0.0
    %3284 = vmatprep.mubr.f32.mxu0 0.0
    %3285 = vmatmul.mubr.f32.gmra.mxu0 %v3216
    %v3286 = vpop.f32.mrf.mxu0
    %v3287 = vadd.f32 %v2224, %v3286
    %v3288 = vpop.f32.mrf.mxu0
    %v3289 = vadd.f32 %v2228, %v3288
    %3290 = vdwg.mxu0
    %3291 = vmatprep.subr.mxu0 0.0
    %3292 = vmatpush1.msra.mxu0 %v1948
    %3293 = vmatprep.subr.mxu0 0.0
    %3294 = vmatpush1.msra.mxu0 %v1945
    %3295 = vmatprep.subr.mxu0 0.0
    %3296 = vmatpush1.msra.mxu0 %v1942
    %3297 = vmatprep.subr.mxu0 0.0
    %3298 = vmatpush1.msra.mxu0 %v1939
    %3299 = vmatprep.subr.mxu0 0.0
    %3300 = vmatpush1.msra.mxu0 %v1936
    %3301 = vmatprep.subr.mxu0 0.0
    %3302 = vmatpush1.msra.mxu0 %v1933
    %3303 = vmatprep.subr.mxu0 0.0
    %3304 = vmatpush1.msra.mxu0 %v1930
    %3305 = vmatprep.subr.mxu0 0.0
    %3306 = vmatpush1.msra.mxu0 %v1927
    %3307 = vmatprep.subr.mxu0 0.0
    %3308 = vmatpush1.msra.mxu0 %v1924
    %3309 = vmatprep.subr.mxu0 0.0
    %3310 = vmatpush1.msra.mxu0 %v1921
    %3311 = vmatprep.subr.mxu0 0.0
    %3312 = vmatpush1.msra.mxu0 %v1918
    %3313 = vmatprep.subr.mxu0 0.0
    %3314 = vmatpush1.msra.mxu0 %v1915
    %3315 = vmatprep.subr.mxu0 0.0
    %3316 = vmatpush1.msra.mxu0 %v1912
    %3317 = vmatprep.subr.mxu0 0.0
    %3318 = vmatpush1.msra.mxu0 %v1909
    %3319 = vmatprep.subr.mxu0 0.0
    %3320 = vmatpush1.msra.mxu0 %v1906
    %3321 = vmatprep.subr.mxu0 0.0
    %3322 = vmatpush1.msra.mxu0 %v1903
    %3323 = vmatprep.subr.mxu0 0.0
    %3324 = vmatpush2.msra.mxu0 0.0
    %3325 = vmatprep.subr.mxu0 0.0
    %3326 = vmatpush2.msra.mxu0 0.0
    %3327 = vmatprep.subr.mxu0 0.0
    %3328 = vmatpush2.msra.mxu0 0.0
    %3329 = vmatprep.subr.mxu0 0.0
    %3330 = vmatpush2.msra.mxu0 0.0
    %3331 = vmatprep.subr.mxu0 0.0
    %3332 = vmatpush2.msra.mxu0 0.0
    %3333 = vmatprep.subr.mxu0 0.0
    %3334 = vmatpush2.msra.mxu0 0.0
    %3335 = vmatprep.subr.mxu0 0.0
    %3336 = vmatpush2.msra.mxu0 0.0
    %3337 = vmatprep.subr.mxu0 0.0
    %3338 = vmatpush2.msra.mxu0 0.0
    %3339 = vmatprep.subr.mxu0 0.0
    %3340 = vmatpush2.msra.mxu0 0.0
    %3341 = vmatprep.subr.mxu0 0.0
    %3342 = vmatpush2.msra.mxu0 0.0
    %3343 = vmatprep.subr.mxu0 0.0
    %3344 = vmatpush2.msra.mxu0 0.0
    %3345 = vmatprep.subr.mxu0 0.0
    %3346 = vmatpush2.msra.mxu0 0.0
    %3347 = vmatprep.subr.mxu0 0.0
    %3348 = vmatpush2.msra.mxu0 0.0
    %3349 = vmatprep.subr.mxu0 0.0
    %3350 = vmatpush2.msra.mxu0 0.0
    %3351 = vmatprep.subr.mxu0 0.0
    %3352 = vmatpush2.msra.mxu0 0.0
    %3353 = vmatprep.subr.mxu0 0.0
    %3354 = vmatpush2.msra.mxu0 0.0
    %3355 = vmatprep.mubr.f32.mxu0 0.0
    %3356 = vmatmul.mubr.f32.gmra.mxu0 %v3216
    %v3357 = vpop.f32.mrf.mxu0
    %v3358 = vadd.f32 %v2232, %v3357
    %v3359 = vpop.f32.mrf.mxu0
    %3360 = vdwg.mxu0
    %v3361 = vadd.f32 %v3217, %v3287
    %v3362 = vxor.u32 %v3361, 2147483648
    %v3363 = vmul.f32 %v3362, 1.442695
    %v3364 = vpow.pop %v3363
    %v3365 = vadd.f32 %v3364, 1.0
    %v3366 = vrcp.pop %v3365
    %v3367 = vmul.f32 1.0, %v3366
    %v3368 = vadd.f32 %v3218, %v3289
    %v3369 = vxor.u32 %v3368, 2147483648
    %v3370 = vmul.f32 %v3369, 1.442695
    %v3371 = vpow.pop %v3370
    %v3372 = vadd.f32 %v3371, 1.0
    %v3373 = vrcp.pop %v3372
    %v3374 = vmul.f32 1.0, %v3373
    %v3375 = vmul.f32 %v3367, %v3358
    %v3376 = vadd.f32 %v3219, %v3375
    %v3377 = vtanh.pop %v3376
    %v3378 = vsub.f32 %v3216, %v3377
    %v3379 = vmul.f32 %v3374, %v3378
    %v3380 = vadd.f32 %v3377, %v3379
    %v3381 = vld [vmem:[%s1686] sm:$0xff]
    %v3382 = vld [vmem:[%s1686 + $0x8] sm:$0xff]
    %v3383 = vld [vmem:[%s1686 + $0x10] sm:$0xff]
    %3384 = vmatprep.subr.mxu0 %v1947
    %3385 = vmatpush1.msra.mxu0 %v1946
    %3386 = vmatprep.subr.mxu0 %v1944
    %3387 = vmatpush1.msra.mxu0 %v1943
    %3388 = vmatprep.subr.mxu0 %v1941
    %3389 = vmatpush1.msra.mxu0 %v1940
    %3390 = vmatprep.subr.mxu0 %v1938
    %3391 = vmatpush1.msra.mxu0 %v1937
    %3392 = vmatprep.subr.mxu0 %v1935
    %3393 = vmatpush1.msra.mxu0 %v1934
    %3394 = vmatprep.subr.mxu0 %v1932
    %3395 = vmatpush1.msra.mxu0 %v1931
    %3396 = vmatprep.subr.mxu0 %v1929
    %3397 = vmatpush1.msra.mxu0 %v1928
    %3398 = vmatprep.subr.mxu0 %v1926
    %3399 = vmatpush1.msra.mxu0 %v1925
    %3400 = vmatprep.subr.mxu0 %v1923
    %3401 = vmatpush1.msra.mxu0 %v1922
    %3402 = vmatprep.subr.mxu0 %v1920
    %3403 = vmatpush1.msra.mxu0 %v1919
    %3404 = vmatprep.subr.mxu0 %v1917
    %3405 = vmatpush1.msra.mxu0 %v1916
    %3406 = vmatprep.subr.mxu0 %v1914
    %3407 = vmatpush1.msra.mxu0 %v1913
    %3408 = vmatprep.subr.mxu0 %v1911
    %3409 = vmatpush1.msra.mxu0 %v1910
    %3410 = vmatprep.subr.mxu0 %v1908
    %3411 = vmatpush1.msra.mxu0 %v1907
    %3412 = vmatprep.subr.mxu0 %v1905
    %3413 = vmatpush1.msra.mxu0 %v1904
    %3414 = vmatprep.subr.mxu0 %v1902
    %3415 = vmatpush1.msra.mxu0 %v1901
    %3416 = vmatprep.subr.mxu0 0.0
    %3417 = vmatpush2.msra.mxu0 0.0
    %3418 = vmatprep.subr.mxu0 0.0
    %3419 = vmatpush2.msra.mxu0 0.0
    %3420 = vmatprep.subr.mxu0 0.0
    %3421 = vmatpush2.msra.mxu0 0.0
    %3422 = vmatprep.subr.mxu0 0.0
    %3423 = vmatpush2.msra.mxu0 0.0
    %3424 = vmatprep.subr.mxu0 0.0
    %3425 = vmatpush2.msra.mxu0 0.0
    %3426 = vmatprep.subr.mxu0 0.0
    %3427 = vmatpush2.msra.mxu0 0.0
    %3428 = vmatprep.subr.mxu0 0.0
    %3429 = vmatpush2.msra.mxu0 0.0
    %3430 = vmatprep.subr.mxu0 0.0
    %3431 = vmatpush2.msra.mxu0 0.0
    %3432 = vmatprep.subr.mxu0 0.0
    %3433 = vmatpush2.msra.mxu0 0.0
    %3434 = vmatprep.subr.mxu0 0.0
    %3435 = vmatpush2.msra.mxu0 0.0
    %3436 = vmatprep.subr.mxu0 0.0
    %3437 = vmatpush2.msra.mxu0 0.0
    %3438 = vmatprep.subr.mxu0 0.0
    %3439 = vmatpush2.msra.mxu0 0.0
    %3440 = vmatprep.subr.mxu0 0.0
    %3441 = vmatpush2.msra.mxu0 0.0
    %3442 = vmatprep.subr.mxu0 0.0
    %3443 = vmatpush2.msra.mxu0 0.0
    %3444 = vmatprep.subr.mxu0 0.0
    %3445 = vmatpush2.msra.mxu0 0.0
    %3446 = vmatprep.subr.mxu0 0.0
    %3447 = vmatpush2.msra.mxu0 0.0
    %3448 = vmatprep.mubr.f32.mxu0 0.0
    %3449 = vmatmul.mubr.f32.gmra.mxu0 %v3380
    %v3450 = vpop.f32.mrf.mxu0
    %v3451 = vadd.f32 %v2224, %v3450
    %v3452 = vpop.f32.mrf.mxu0
    %v3453 = vadd.f32 %v2228, %v3452
    %3454 = vdwg.mxu0
    %3455 = vmatprep.subr.mxu0 0.0
    %3456 = vmatpush1.msra.mxu0 %v1948
    %3457 = vmatprep.subr.mxu0 0.0
    %3458 = vmatpush1.msra.mxu0 %v1945
    %3459 = vmatprep.subr.mxu0 0.0
    %3460 = vmatpush1.msra.mxu0 %v1942
    %3461 = vmatprep.subr.mxu0 0.0
    %3462 = vmatpush1.msra.mxu0 %v1939
    %3463 = vmatprep.subr.mxu0 0.0
    %3464 = vmatpush1.msra.mxu0 %v1936
    %3465 = vmatprep.subr.mxu0 0.0
    %3466 = vmatpush1.msra.mxu0 %v1933
    %3467 = vmatprep.subr.mxu0 0.0
    %3468 = vmatpush1.msra.mxu0 %v1930
    %3469 = vmatprep.subr.mxu0 0.0
    %3470 = vmatpush1.msra.mxu0 %v1927
    %3471 = vmatprep.subr.mxu0 0.0
    %3472 = vmatpush1.msra.mxu0 %v1924
    %3473 = vmatprep.subr.mxu0 0.0
    %3474 = vmatpush1.msra.mxu0 %v1921
    %3475 = vmatprep.subr.mxu0 0.0
    %3476 = vmatpush1.msra.mxu0 %v1918
    %3477 = vmatprep.subr.mxu0 0.0
    %3478 = vmatpush1.msra.mxu0 %v1915
    %3479 = vmatprep.subr.mxu0 0.0
    %3480 = vmatpush1.msra.mxu0 %v1912
    %3481 = vmatprep.subr.mxu0 0.0
    %3482 = vmatpush1.msra.mxu0 %v1909
    %3483 = vmatprep.subr.mxu0 0.0
    %3484 = vmatpush1.msra.mxu0 %v1906
    %3485 = vmatprep.subr.mxu0 0.0
    %3486 = vmatpush1.msra.mxu0 %v1903
    %3487 = vmatprep.subr.mxu0 0.0
    %3488 = vmatpush2.msra.mxu0 0.0
    %3489 = vmatprep.subr.mxu0 0.0
    %3490 = vmatpush2.msra.mxu0 0.0
    %3491 = vmatprep.subr.mxu0 0.0
    %3492 = vmatpush2.msra.mxu0 0.0
    %3493 = vmatprep.subr.mxu0 0.0
    %3494 = vmatpush2.msra.mxu0 0.0
    %3495 = vmatprep.subr.mxu0 0.0
    %3496 = vmatpush2.msra.mxu0 0.0
    %3497 = vmatprep.subr.mxu0 0.0
    %3498 = vmatpush2.msra.mxu0 0.0
    %3499 = vmatprep.subr.mxu0 0.0
    %3500 = vmatpush2.msra.mxu0 0.0
    %3501 = vmatprep.subr.mxu0 0.0
    %3502 = vmatpush2.msra.mxu0 0.0
    %3503 = vmatprep.subr.mxu0 0.0
    %3504 = vmatpush2.msra.mxu0 0.0
    %3505 = vmatprep.subr.mxu0 0.0
    %3506 = vmatpush2.msra.mxu0 0.0
    %3507 = vmatprep.subr.mxu0 0.0
    %3508 = vmatpush2.msra.mxu0 0.0
    %3509 = vmatprep.subr.mxu0 0.0
    %3510 = vmatpush2.msra.mxu0 0.0
    %3511 = vmatprep.subr.mxu0 0.0
    %3512 = vmatpush2.msra.mxu0 0.0
    %3513 = vmatprep.subr.mxu0 0.0
    %3514 = vmatpush2.msra.mxu0 0.0
    %3515 = vmatprep.subr.mxu0 0.0
    %3516 = vmatpush2.msra.mxu0 0.0
    %3517 = vmatprep.subr.mxu0 0.0
    %3518 = vmatpush2.msra.mxu0 0.0
    %3519 = vmatprep.mubr.f32.mxu0 0.0
    %3520 = vmatmul.mubr.f32.gmra.mxu0 %v3380
    %v3521 = vpop.f32.mrf.mxu0
    %v3522 = vadd.f32 %v2232, %v3521
    %v3523 = vpop.f32.mrf.mxu0
    %3524 = vdwg.mxu0
    %v3525 = vadd.f32 %v3381, %v3451
    %v3526 = vxor.u32 %v3525, 2147483648
    %v3527 = vmul.f32 %v3526, 1.442695
    %v3528 = vpow.pop %v3527
    %v3529 = vadd.f32 %v3528, 1.0
    %v3530 = vrcp.pop %v3529
    %v3531 = vmul.f32 1.0, %v3530
    %v3532 = vadd.f32 %v3382, %v3453
    %v3533 = vxor.u32 %v3532, 2147483648
    %v3534 = vmul.f32 %v3533, 1.442695
    %v3535 = vpow.pop %v3534
    %v3536 = vadd.f32 %v3535, 1.0
    %v3537 = vrcp.pop %v3536
    %v3538 = vmul.f32 1.0, %v3537
    %v3539 = vmul.f32 %v3531, %v3522
    %v3540 = vadd.f32 %v3383, %v3539
    %v3541 = vtanh.pop %v3540
    %v3542 = vsub.f32 %v3380, %v3541
    %v3543 = vmul.f32 %v3538, %v3542
    %v3544 = vadd.f32 %v3541, %v3543
    %v3545 = vld [vmem:[%s9] sm:$0xff]
    %v3546 = vld [vmem:[%s9 + $0x8] sm:$0xff]
    %v3547 = vld [vmem:[%s9 + $0x10] sm:$0xff]
    %v3548 = vld [vmem:[%s9 + $0x18] sm:$0xff]
    %v3549 = vld [vmem:[%s9 + $0x20] sm:$0xff]
    %v3550 = vld [vmem:[%s9 + $0x28] sm:$0xff]
    %v3551 = vld [vmem:[%s9 + $0x30] sm:$0xff]
    %v3552 = vld [vmem:[%s9 + $0x38] sm:$0xff]
    %v3553 = vld [vmem:[%s9 + $0x40] sm:$0xff]
    %v3554 = vld [vmem:[%s9 + $0x48] sm:$0xff]
    %v3555 = vld [vmem:[%s9 + $0x50] sm:$0xff]
    %v3556 = vld [vmem:[%s9 + $0x58] sm:$0xff]
    %v3557 = vld [vmem:[%s9 + $0x60] sm:$0xff]
    %v3558 = vld [vmem:[%s9 + $0x68] sm:$0xff]
    %v3559 = vld [vmem:[%s9 + $0x70] sm:$0xff]
    %v3560 = vld [vmem:[%s9 + $0x78] sm:$0xff]
    %v3561 = vld [vmem:[#allocation15] sm:$0x1]
    %v3563 = vlaneseq
    %v3564 = vshrl.u32 %v3563, 7
    %v3565 = vsub.s32 0, %v3564
    %v3566 = vrot.slane %v3561, %v3565
    %3568 = vmatprep.subr.mxu0 0.0
    %3569 = vmatpush1.msra.mxu0 %v3560
    %3570 = vmatprep.subr.mxu0 0.0
    %3571 = vmatpush1.msra.mxu0 %v3559
    %3572 = vmatprep.subr.mxu0 0.0
    %3573 = vmatpush1.msra.mxu0 %v3558
    %3574 = vmatprep.subr.mxu0 0.0
    %3575 = vmatpush1.msra.mxu0 %v3557
    %3576 = vmatprep.subr.mxu0 0.0
    %3577 = vmatpush1.msra.mxu0 %v3556
    %3578 = vmatprep.subr.mxu0 0.0
    %3579 = vmatpush1.msra.mxu0 %v3555
    %3580 = vmatprep.subr.mxu0 0.0
    %3581 = vmatpush1.msra.mxu0 %v3554
    %3582 = vmatprep.subr.mxu0 0.0
    %3583 = vmatpush1.msra.mxu0 %v3553
    %3584 = vmatprep.subr.mxu0 0.0
    %3585 = vmatpush1.msra.mxu0 %v3552
    %3586 = vmatprep.subr.mxu0 0.0
    %3587 = vmatpush1.msra.mxu0 %v3551
    %3588 = vmatprep.subr.mxu0 0.0
    %3589 = vmatpush1.msra.mxu0 %v3550
    %3590 = vmatprep.subr.mxu0 0.0
    %3591 = vmatpush1.msra.mxu0 %v3549
    %3592 = vmatprep.subr.mxu0 0.0
    %3593 = vmatpush1.msra.mxu0 %v3548
    %3594 = vmatprep.subr.mxu0 0.0
    %3595 = vmatpush1.msra.mxu0 %v3547
    %3596 = vmatprep.subr.mxu0 0.0
    %3597 = vmatpush1.msra.mxu0 %v3546
    %3598 = vmatprep.subr.mxu0 0.0
    %3599 = vmatpush1.msra.mxu0 %v3545
    %3600 = vmatprep.subr.mxu0 0.0
    %3601 = vmatpush2.msra.mxu0 0.0
    %3602 = vmatprep.subr.mxu0 0.0
    %3603 = vmatpush2.msra.mxu0 0.0
    %3604 = vmatprep.subr.mxu0 0.0
    %3605 = vmatpush2.msra.mxu0 0.0
    %3606 = vmatprep.subr.mxu0 0.0
    %3607 = vmatpush2.msra.mxu0 0.0
    %3608 = vmatprep.subr.mxu0 0.0
    %3609 = vmatpush2.msra.mxu0 0.0
    %3610 = vmatprep.subr.mxu0 0.0
    %3611 = vmatpush2.msra.mxu0 0.0
    %3612 = vmatprep.subr.mxu0 0.0
    %3613 = vmatpush2.msra.mxu0 0.0
    %3614 = vmatprep.subr.mxu0 0.0
    %3615 = vmatpush2.msra.mxu0 0.0
    %3616 = vmatprep.subr.mxu0 0.0
    %3617 = vmatpush2.msra.mxu0 0.0
    %3618 = vmatprep.subr.mxu0 0.0
    %3619 = vmatpush2.msra.mxu0 0.0
    %3620 = vmatprep.subr.mxu0 0.0
    %3621 = vmatpush2.msra.mxu0 0.0
    %3622 = vmatprep.subr.mxu0 0.0
    %3623 = vmatpush2.msra.mxu0 0.0
    %3624 = vmatprep.subr.mxu0 0.0
    %3625 = vmatpush2.msra.mxu0 0.0
    %3626 = vmatprep.subr.mxu0 0.0
    %3627 = vmatpush2.msra.mxu0 0.0
    %3628 = vmatprep.subr.mxu0 0.0
    %3629 = vmatpush2.msra.mxu0 0.0
    %3630 = vmatprep.subr.mxu0 0.0
    %3631 = vmatpush2.msra.mxu0 0.0
    %3632 = vmatprep.mubr.f32.mxu0 0.0
    %3633 = vmatmul.mubr.f32.gmra.mxu0 %v3544
    %v3634 = vpop.f32.mrf.mxu0
    %v3635 = vadd.f32 %v3566, %v3634
    %v3636 = vpop.f32.mrf.mxu0
    %3637 = vdwg.mxu0
    %v3638 = vmul.f32 %v3635, %v3635
    %3639 = vadd.xlane.f32.xlu0 %v3638
    %v3640 = vpop.xlane.xlu0 %3639
    %v3641 = vmax.f32 %v3640, 1e-24
    %v3642 = vrsqrt.pop %v3641
    %v3643 = vmul.f32 %v3635, %v3642
    %3644 = vst [vmem:[%s11] sm:$0xff] %v3643
    // Predicated region
    $region78: #{speaker_embedder_forward.1} parent=1 // pred_check
      _
    $region79: #{speaker_embedder_forward.1} parent=1 // pred_check_branch
      %3646 = sbr.rel (0) target = $region81
    $region80: #{speaker_embedder_forward.1} parent=1 // pred_region
      _
    $region81: #{speaker_embedder_forward.1} parent=1 // pred_fallthru
      _
    // Predicated region
    $region82: #{speaker_embedder_forward.1} parent=1 // pred_check
      _
    $region83: #{speaker_embedder_forward.1} parent=1 // pred_check_branch
      %3648 = sbr.rel (0) target = $region85
    $region84: #{speaker_embedder_forward.1} parent=1 // pred_region
      _
    $region85: #{speaker_embedder_forward.1} parent=1 // pred_fallthru
      _
    %3649 = vsyncpa [#allocation5], 1
    %3650 = vsyncpa [#allocation7], 1
    %3651 = vsyncpa [#allocation10], 1
    %3652 = vsyncpa [#allocation13], 1
    %3653 = vsyncpa [#allocation16], 1

</llo_original>
